<compile_context>
chip_gen: v6e
topology: v6e:2x2x1
jax: 0.10.0
libtpu: 0.0.40
codegen_flags: <defaults>
</compile_context>

<pallas_src>
import math

import jax
import jax.numpy as jnp
from jax.experimental import pallas as pl
from jax.experimental.pallas import tpu as pltpu

# ---- scaled-down ViT-B/32-style configuration (same forward structure) ----
IMG = 64          # image side (ViT-B/32: 224)
PATCH = 32        # patch size (same as vit_b_32)
CIN = 3           # RGB
D = 128           # hidden dim (ViT-B: 768)
HEADS = 4         # attention heads (ViT-B: 12)
DH = D // HEADS   # head dim = 32
MLP = 256         # mlp dim (ViT-B: 3072)
LAYERS = 2        # encoder layers (ViT-B: 12)
EPS = 1e-6        # torchvision ViT LayerNorm eps

NP_SIDE = IMG // PATCH
NPATCH = NP_SIDE * NP_SIDE        # 4 real patches
SEQ = NPATCH + 1                  # 5 real tokens (class token + patches)
SEQ_PAD = 8                       # padded to a sublane multiple
KDIM = CIN * PATCH * PATCH        # 3072 flattened patch length


# --------------------------- helpers (traced inside the kernel) ---------------------------
def _layernorm(x, g, b):
    mu = jnp.mean(x, axis=-1, keepdims=True)
    var = jnp.mean(jnp.square(x - mu), axis=-1, keepdims=True)
    return (x - mu) * jax.lax.rsqrt(var + EPS) * g + b


def _gelu(x):
    # tanh-approx GELU (jnp.tanh -> EUP slot).
    # TODO(synk): torchvision nn.GELU() is the exact erf form; erf has no
    # guaranteed Mosaic lowering here -- deviation is ~1e-3 absolute.
    c = math.sqrt(2.0 / math.pi)
    return 0.5 * x * (1.0 + jnp.tanh(c * (x + 0.044715 * x * x * x)))


# --------------------------- fused ViT forward kernel (one image per grid step) ---------------------------
def _vit_kernel(p_ref, base_ref, wp_ref,
                wqkv_ref, bqkv_ref, wo_ref, bo_ref,
                ln1g_ref, ln1b_ref, ln2g_ref, ln2b_ref,
                w1_ref, b1_ref, w2_ref, b2_ref,
                lng_ref, lnb_ref,
                o_ref, x_ref):
    # conv_proj(k=s=P) as a matmul on the NPATCH real rows only, scattered into
    # the padded token buffer (row 0 = cls slot, rows 1..SEQ-1 = patches,
    # rows SEQ..SEQ_PAD-1 = zero pad).  `base` already carries the cls token,
    # positional embedding and the conv bias; dropout p=0.0 -> identity.
    pe = jnp.dot(p_ref[...], wp_ref[...], preferred_element_type=jnp.float32)  # (NPATCH, D)
    x_ref[...] = base_ref[...]
    x_ref[1:SEQ, :] = x_ref[1:SEQ, :] + pe
    x = x_ref[...]                                          # (SEQ_PAD, D) f32 residual stream

    # additive mask for pad key columns (pad query rows are never read out)
    kcol = jax.lax.broadcasted_iota(jnp.int32, (1, SEQ_PAD), 1)
    kmask = jnp.where(kcol < SEQ, 0.0, -1e30).astype(jnp.float32)
    scale = 1.0 / math.sqrt(DH)

    for l in range(LAYERS):                                 # static unroll (small L)
        # ---- ln_1 + multi-head self-attention ----
        h = _layernorm(x, ln1g_ref[l], ln1b_ref[l]).astype(jnp.bfloat16)
        # fused lane-dense QKV: (S, 128) @ (128, 384), f32 accumulation
        qkv = jnp.dot(h, wqkv_ref[l], preferred_element_type=jnp.float32)
        qkv = (qkv + bqkv_ref[l]).astype(jnp.bfloat16)      # cast once, reuse

        ctx = []
        for hh in range(HEADS):                             # scores / P@V are per-head by nature
            qh = qkv[:, hh * DH:(hh + 1) * DH]
            kh = qkv[:, D + hh * DH:D + (hh + 1) * DH]
            vh = qkv[:, 2 * D + hh * DH:2 * D + (hh + 1) * DH]
            s = jax.lax.dot_general(qh, kh, (((1,), (1,)), ((), ())),
                                    preferred_element_type=jnp.float32)
            s = s * scale + kmask                           # (S, S) f32
            m = jnp.max(s, axis=-1, keepdims=True)
            e = jnp.exp(s - m)
            pr = e / jnp.sum(e, axis=-1, keepdims=True)     # exact divide (parity)
            ctx.append(jnp.dot(pr.astype(jnp.bfloat16), vh,
                               preferred_element_type=jnp.float32))
        ctx = jnp.concatenate(ctx, axis=1)                  # heads concat on lanes: (S, D)

        # fused lane-dense output projection: (S, 128) @ (128, 128)
        attn = jnp.dot(ctx.astype(jnp.bfloat16), wo_ref[l],
                       preferred_element_type=jnp.float32) + bo_ref[l]
        x = x + attn                                        # residual 1

        # ---- ln_2 + MLP ----
        y = _layernorm(x, ln2g_ref[l], ln2b_ref[l]).astype(jnp.bfloat16)
        h1 = jnp.dot(y, w1_ref[l], preferred_element_type=jnp.float32) + b1_ref[l]
        h1 = _gelu(h1)
        h2 = jnp.dot(h1.astype(jnp.bfloat16), w2_ref[l],
                     preferred_element_type=jnp.float32) + b2_ref[l]
        x = x + h2                                          # residual 2

    # final encoder LayerNorm on the class token only; heads = Identity
    o_ref[...] = _layernorm(x[0:1, :], lng_ref[...], lnb_ref[...])


# --------------------------- parameter init (deterministic, synthetic) ---------------------------
def init_params(key):
    keys = jax.random.split(key, 4 + LAYERS)

    def nrm(k, shape, scale=0.02):
        return (scale * jax.random.normal(k, shape)).astype(jnp.float32)

    params = {
        "conv_w": nrm(keys[0], (D, CIN, PATCH, PATCH)),   # Conv2d(3, D, k=32, s=32)
        "conv_b": nrm(keys[1], (D,)),
        "cls":    nrm(keys[2], (1, 1, D)),
        "pos":    nrm(keys[3], (1, SEQ, D)),
        "ln_g":   jnp.ones((D,), jnp.float32),            # encoder final LayerNorm
        "ln_b":   jnp.zeros((D,), jnp.float32),
    }
    blocks = []
    for l in range(LAYERS):
        bk = jax.random.split(keys[4 + l], 4)
        blocks.append({
            "ln1_g": jnp.ones((D,), jnp.float32), "ln1_b": jnp.zeros((D,), jnp.float32),
            "wqkv": nrm(bk[0], (D, 3 * D)), "bqkv": jnp.zeros((3 * D,), jnp.float32),
            "wo": nrm(bk[1], (D, D)), "bo": jnp.zeros((D,), jnp.float32),
            "ln2_g": jnp.ones((D,), jnp.float32), "ln2_b": jnp.zeros((D,), jnp.float32),
            "w1": nrm(bk[2], (D, MLP)), "b1": jnp.zeros((MLP,), jnp.float32),
            "w2": nrm(bk[3], (MLP, D)), "b2": jnp.zeros((D,), jnp.float32),
        })
    params["blocks"] = blocks
    return params


def _pack_params(params):
    """Stack per-layer weights: bf16 matmul operands, f32 biases / LN params."""
    blocks = params["blocks"]
    wp = params["conv_w"].reshape(D, KDIM).T.astype(jnp.bfloat16)                  # (KDIM, D)
    wqkv = jnp.stack([b["wqkv"] for b in blocks]).astype(jnp.bfloat16)             # (L, D, 3D)
    bqkv = jnp.stack([b["bqkv"].reshape(1, 3 * D) for b in blocks]).astype(jnp.float32)
    wo = jnp.stack([b["wo"] for b in blocks]).astype(jnp.bfloat16)                 # (L, D, D)
    bo = jnp.stack([b["bo"].reshape(1, D) for b in blocks]).astype(jnp.float32)
    ln1g = jnp.stack([b["ln1_g"].reshape(1, D) for b in blocks])
    ln1b = jnp.stack([b["ln1_b"].reshape(1, D) for b in blocks])
    ln2g = jnp.stack([b["ln2_g"].reshape(1, D) for b in blocks])
    ln2b = jnp.stack([b["ln2_b"].reshape(1, D) for b in blocks])
    w1 = jnp.stack([b["w1"] for b in blocks]).astype(jnp.bfloat16)                 # (L, D, MLP)
    b1 = jnp.stack([b["b1"].reshape(1, MLP) for b in blocks]).astype(jnp.float32)
    w2 = jnp.stack([b["w2"] for b in blocks]).astype(jnp.bfloat16)                 # (L, MLP, D)
    b2 = jnp.stack([b["b2"].reshape(1, D) for b in blocks]).astype(jnp.float32)
    lng = params["ln_g"].reshape(1, D)
    lnb = params["ln_b"].reshape(1, D)
    return (wp, wqkv, bqkv, wo, bo, ln1g, ln1b, ln2g, ln2b,
            w1, b1, w2, b2, lng, lnb)


def _resident_spec(arr):
    """Full-array block with a constant index map -> fetched once, VMEM-resident."""
    nd = arr.ndim

    def imap(i):
        return (0,) * nd

    return pl.BlockSpec(arr.shape, imap)


# --------------------------- full forward (single pallas_call, batch grid) ---------------------------
def image_encoder_forward(x, params):
    """x: (N, 3, IMG, IMG) NCHW, like the PyTorch module.  Returns (N, D)."""
    n = x.shape[0]

    # patchify (layout glue only): rows ordered (c, kh, kw) to match the Conv2d
    # weight flattening; patches ordered (hP, wP).  Only REAL patch rows are
    # passed to the kernel (no zero rows through the big matmul).
    p = x.reshape(n, CIN, NP_SIDE, PATCH, NP_SIDE, PATCH)
    p = p.transpose(0, 2, 4, 1, 3, 5).reshape(n, NPATCH, KDIM).astype(jnp.bfloat16)

    # per-token additive base: cls+pos at slot 0, pos+conv bias at patch slots,
    # zeros at pad slots.  Passed ONCE; reused for every image inside the kernel.
    base = jnp.zeros((SEQ_PAD, D), jnp.float32)
    base = base.at[0].set(params["cls"][0, 0] + params["pos"][0, 0])
    base = base.at[1:SEQ].set(params["pos"][0, 1:SEQ] + params["conv_b"][None, :])

    packed = _pack_params(params)
    operands = (p, base) + packed

    in_specs = [pl.BlockSpec((None, NPATCH, KDIM), lambda i: (i, 0, 0)),   # per-image patch rows
                _resident_spec(base)] + [_resident_spec(w) for w in packed]

    out = pl.pallas_call(
        _vit_kernel,
        out_shape=jax.ShapeDtypeStruct((n, 1, D), jnp.float32),
        grid=(n,),
        in_specs=in_specs,
        out_specs=pl.BlockSpec((None, 1, D), lambda i: (i, 0, 0)),          # class token only
        scratch_shapes=[pltpu.VMEM((SEQ_PAD, D), jnp.float32)],             # padded token buffer
        compiler_params=pltpu.CompilerParams(
            dimension_semantics=("parallel",)),                             # 2 TCs on v7x + DMA overlap
    )(*operands)

    # encoder heads = Identity -> the class-token embedding is the output
    return out.reshape(n, D)


if __name__ == "__main__":
    key = jax.random.PRNGKey(0)
    kx, kp = jax.random.split(key)
    params = init_params(kp)
    x = jax.random.normal(kx, (2, CIN, IMG, IMG), dtype=jnp.float32)
    fwd = jax.jit(image_encoder_forward)
    out = jax.block_until_ready(fwd(x, params))
    assert out.shape == (2, D) and out.dtype == jnp.float32
    assert bool(jnp.all(jnp.isfinite(out)))
    print("KERNEL_OK")
</pallas_src>

<mosaic_0001>
module attributes {stable_mosaic.version = 11 : i64} {
  func.func @_vit_kernel(%arg0: i32, %arg1: memref<1x4x3072xbf16, #tpu.memory_space<vmem>>, %arg2: memref<8x128xf32, #tpu.memory_space<vmem>>, %arg3: memref<3072x128xbf16, #tpu.memory_space<vmem>>, %arg4: memref<2x128x384xbf16, #tpu.memory_space<vmem>>, %arg5: memref<2x1x384xf32, #tpu.memory_space<vmem>>, %arg6: memref<2x128x128xbf16, #tpu.memory_space<vmem>>, %arg7: memref<2x1x128xf32, #tpu.memory_space<vmem>>, %arg8: memref<2x1x128xf32, #tpu.memory_space<vmem>>, %arg9: memref<2x1x128xf32, #tpu.memory_space<vmem>>, %arg10: memref<2x1x128xf32, #tpu.memory_space<vmem>>, %arg11: memref<2x1x128xf32, #tpu.memory_space<vmem>>, %arg12: memref<2x128x256xbf16, #tpu.memory_space<vmem>>, %arg13: memref<2x1x256xf32, #tpu.memory_space<vmem>>, %arg14: memref<2x256x128xbf16, #tpu.memory_space<vmem>>, %arg15: memref<2x1x128xf32, #tpu.memory_space<vmem>>, %arg16: memref<1x128xf32, #tpu.memory_space<vmem>>, %arg17: memref<1x128xf32, #tpu.memory_space<vmem>>, %arg18: memref<1x1x128xf32, #tpu.memory_space<vmem>>, %arg19: memref<8x128xf32, #tpu.memory_space<vmem>>) attributes {dimension_semantics = [#tpu.dimension_semantics<parallel>], iteration_bounds = array<i64: 2>, scalar_prefetch = 0 : i64, scratch_operands = 1 : i64, tpu.core_type = #tpu.core_type<tc>, window_params = [{transform_indices = @transform_0, window_bounds = array<i64: 1, 4, 3072>}, {pipeline_mode = #tpu.pipeline_mode<synchronous>, transform_indices = @transform_1, window_bounds = array<i64: 8, 128>}, {pipeline_mode = #tpu.pipeline_mode<synchronous>, transform_indices = @transform_2, window_bounds = array<i64: 3072, 128>}, {pipeline_mode = #tpu.pipeline_mode<synchronous>, transform_indices = @transform_3, window_bounds = array<i64: 2, 128, 384>}, {pipeline_mode = #tpu.pipeline_mode<synchronous>, transform_indices = @transform_4, window_bounds = array<i64: 2, 1, 384>}, {pipeline_mode = #tpu.pipeline_mode<synchronous>, transform_indices = @transform_5, window_bounds = array<i64: 2, 128, 128>}, {pipeline_mode = #tpu.pipeline_mode<synchronous>, transform_indices = @transform_6, window_bounds = array<i64: 2, 1, 128>}, {pipeline_mode = #tpu.pipeline_mode<synchronous>, transform_indices = @transform_7, window_bounds = array<i64: 2, 1, 128>}, {pipeline_mode = #tpu.pipeline_mode<synchronous>, transform_indices = @transform_8, window_bounds = array<i64: 2, 1, 128>}, {pipeline_mode = #tpu.pipeline_mode<synchronous>, transform_indices = @transform_9, window_bounds = array<i64: 2, 1, 128>}, {pipeline_mode = #tpu.pipeline_mode<synchronous>, transform_indices = @transform_10, window_bounds = array<i64: 2, 1, 128>}, {pipeline_mode = #tpu.pipeline_mode<synchronous>, transform_indices = @transform_11, window_bounds = array<i64: 2, 128, 256>}, {pipeline_mode = #tpu.pipeline_mode<synchronous>, transform_indices = @transform_12, window_bounds = array<i64: 2, 1, 256>}, {pipeline_mode = #tpu.pipeline_mode<synchronous>, transform_indices = @transform_13, window_bounds = array<i64: 2, 256, 128>}, {pipeline_mode = #tpu.pipeline_mode<synchronous>, transform_indices = @transform_14, window_bounds = array<i64: 2, 1, 128>}, {pipeline_mode = #tpu.pipeline_mode<synchronous>, transform_indices = @transform_15, window_bounds = array<i64: 1, 128>}, {pipeline_mode = #tpu.pipeline_mode<synchronous>, transform_indices = @transform_16, window_bounds = array<i64: 1, 128>}, {transform_indices = @transform_17, window_bounds = array<i64: 1, 1, 128>}]} {
    %c0 = arith.constant 0 : index
    %c0_0 = arith.constant 0 : index
    %c0_1 = arith.constant 0 : index
    %0 = vector.load %arg1[%c0, %c0_0, %c0_1] : memref<1x4x3072xbf16, #tpu.memory_space<vmem>>, vector<1x4x3072xbf16>
    %1 = vector.shape_cast %0 : vector<1x4x3072xbf16> to vector<4x3072xbf16>
    %c0_2 = arith.constant 0 : index
    %c0_3 = arith.constant 0 : index
    %2 = vector.load %arg3[%c0_2, %c0_3] : memref<3072x128xbf16, #tpu.memory_space<vmem>>, vector<3072x128xbf16>
    %cst = arith.constant dense<0.000000e+00> : vector<4x128xf32>
    %3 = tpu.matmul %1, %2, %cst {dimension_numbers = #tpu.dot_dimension_numbers<[1], [0], [0], [1], [0, 0, 1, 1], [], []>} : vector<4x3072xbf16>, vector<3072x128xbf16>, vector<4x128xf32> -> vector<4x128xf32>
    %c0_4 = arith.constant 0 : index
    %c0_5 = arith.constant 0 : index
    %4 = vector.load %arg2[%c0_4, %c0_5] : memref<8x128xf32, #tpu.memory_space<vmem>>, vector<8x128xf32>
    %c0_6 = arith.constant 0 : index
    %c0_7 = arith.constant 0 : index
    %5 = vector.load %arg19[%c0_6, %c0_7] : memref<8x128xf32, #tpu.memory_space<vmem>>, vector<8x128xf32>
    tpu.vector_store %arg19[%c0_6, %c0_7], %4 {strides = array<i32>} : memref<8x128xf32, #tpu.memory_space<vmem>>, vector<8x128xf32>,
    %c1 = arith.constant 1 : index
    %c0_8 = arith.constant 0 : index
    %6 = vector.load %arg19[%c1, %c0_8] : memref<8x128xf32, #tpu.memory_space<vmem>>, vector<4x128xf32>
    %7 = arith.addf %6, %3 : vector<4x128xf32>
    %c1_9 = arith.constant 1 : index
    %c0_10 = arith.constant 0 : index
    %8 = vector.load %arg19[%c1_9, %c0_10] : memref<8x128xf32, #tpu.memory_space<vmem>>, vector<4x128xf32>
    tpu.vector_store %arg19[%c1_9, %c0_10], %7 {strides = array<i32>} : memref<8x128xf32, #tpu.memory_space<vmem>>, vector<4x128xf32>,
    %c0_11 = arith.constant 0 : index
    %c0_12 = arith.constant 0 : index
    %9 = vector.load %arg19[%c0_11, %c0_12] : memref<8x128xf32, #tpu.memory_space<vmem>>, vector<8x128xf32>
    %10 = tpu.iota {dimensions = array<i32: 1>} : vector<1x8xi32>
    %c5_i32 = arith.constant 5 : i32
    %11 = vector.broadcast %c5_i32 : i32 to vector<1x8xi32>
    %12 = arith.cmpi slt, %10, %11 : vector<1x8xi32>
    %cst_13 = arith.constant 0.000000e+00 : f32
    %cst_14 = arith.constant -1.000000e+30 : f32
    %13 = vector.broadcast %cst_13 : f32 to vector<1x8xf32>
    %14 = vector.broadcast %cst_14 : f32 to vector<1x8xf32>
    %15 = arith.select %12, %13, %14 : vector<1x8xi1>, vector<1x8xf32>
    %c0_15 = arith.constant 0 : index
    %c0_16 = arith.constant 0 : index
    %c0_17 = arith.constant 0 : index
    %16 = vector.load %arg8[%c0_15, %c0_16, %c0_17] : memref<2x1x128xf32, #tpu.memory_space<vmem>>, vector<1x1x128xf32>
    %17 = vector.shape_cast %16 : vector<1x1x128xf32> to vector<1x128xf32>
    %c0_18 = arith.constant 0 : index
    %c0_19 = arith.constant 0 : index
    %c0_20 = arith.constant 0 : index
    %18 = vector.load %arg9[%c0_18, %c0_19, %c0_20] : memref<2x1x128xf32, #tpu.memory_space<vmem>>, vector<1x1x128xf32>
    %19 = vector.shape_cast %18 : vector<1x1x128xf32> to vector<1x128xf32>
    %cst_21 = arith.constant dense<0.000000e+00> : vector<8xf32>
    %20 = vector.multi_reduction <add>, %9, %cst_21 [1] : vector<8x128xf32> to vector<8xf32>
    %21 = vector.shape_cast %20 : vector<8xf32> to vector<8x1xf32>
    %cst_22 = arith.constant 1.280000e+02 : f32
    %22 = vector.broadcast %cst_22 : f32 to vector<8x1xf32>
    %23 = arith.divf %21, %22 : vector<8x1xf32>
    %24 = vector.broadcast %23 : vector<8x1xf32> to vector<8x128xf32>
    %25 = arith.subf %9, %24 : vector<8x128xf32>
    %26 = arith.mulf %25, %25 : vector<8x128xf32>
    %cst_23 = arith.constant dense<0.000000e+00> : vector<8xf32>
    %27 = vector.multi_reduction <add>, %26, %cst_23 [1] : vector<8x128xf32> to vector<8xf32>
    %28 = vector.shape_cast %27 : vector<8xf32> to vector<8x1xf32>
    %cst_24 = arith.constant 1.280000e+02 : f32
    %29 = vector.broadcast %cst_24 : f32 to vector<8x1xf32>
    %30 = arith.divf %28, %29 : vector<8x1xf32>
    %31 = vector.broadcast %23 : vector<8x1xf32> to vector<8x128xf32>
    %32 = arith.subf %9, %31 : vector<8x128xf32>
    %cst_25 = arith.constant 9.99999997E-7 : f32
    %33 = vector.broadcast %cst_25 : f32 to vector<8x1xf32>
    %34 = arith.addf %30, %33 : vector<8x1xf32>
    %35 = math.rsqrt %34 : vector<8x1xf32>
    %36 = vector.broadcast %35 : vector<8x1xf32> to vector<8x128xf32>
    %37 = arith.mulf %32, %36 : vector<8x128xf32>
    %38 = vector.broadcast %17 : vector<1x128xf32> to vector<8x128xf32>
    %39 = arith.mulf %37, %38 : vector<8x128xf32>
    %40 = vector.broadcast %19 : vector<1x128xf32> to vector<8x128xf32>
    %41 = arith.addf %39, %40 : vector<8x128xf32>
    %42 = arith.truncf %41 : vector<8x128xf32> to vector<8x128xbf16>
    %c0_26 = arith.constant 0 : index
    %c0_27 = arith.constant 0 : index
    %c0_28 = arith.constant 0 : index
    %43 = vector.load %arg4[%c0_26, %c0_27, %c0_28] : memref<2x128x384xbf16, #tpu.memory_space<vmem>>, vector<1x128x384xbf16>
    %44 = vector.shape_cast %43 : vector<1x128x384xbf16> to vector<128x384xbf16>
    %cst_29 = arith.constant dense<0.000000e+00> : vector<8x384xf32>
    %45 = tpu.matmul %42, %44, %cst_29 {dimension_numbers = #tpu.dot_dimension_numbers<[1], [0], [0], [1], [0, 0, 1, 1], [], []>} : vector<8x128xbf16>, vector<128x384xbf16>, vector<8x384xf32> -> vector<8x384xf32>
    %c0_30 = arith.constant 0 : index
    %c0_31 = arith.constant 0 : index
    %c0_32 = arith.constant 0 : index
    %46 = vector.load %arg5[%c0_30, %c0_31, %c0_32] : memref<2x1x384xf32, #tpu.memory_space<vmem>>, vector<1x1x384xf32>
    %47 = vector.shape_cast %46 : vector<1x1x384xf32> to vector<1x384xf32>
    %48 = vector.broadcast %47 : vector<1x384xf32> to vector<8x384xf32>
    %49 = arith.addf %45, %48 : vector<8x384xf32>
    %50 = arith.truncf %49 : vector<8x384xf32> to vector<8x384xbf16>
    %51 = vector.extract_strided_slice %50 {offsets = [0, 0], sizes = [8, 32], strides = [1, 1]} : vector<8x384xbf16> to vector<8x32xbf16>
    %52 = vector.extract_strided_slice %50 {offsets = [0, 128], sizes = [8, 32], strides = [1, 1]} : vector<8x384xbf16> to vector<8x32xbf16>
    %53 = vector.extract_strided_slice %50 {offsets = [0, 256], sizes = [8, 32], strides = [1, 1]} : vector<8x384xbf16> to vector<8x32xbf16>
    %cst_33 = arith.constant dense<0.000000e+00> : vector<8x8xf32>
    %54 = tpu.matmul %51, %52, %cst_33 {dimension_numbers = #tpu.dot_dimension_numbers<[1], [1], [0], [0], [0, 0, 1, 0], [], []>} : vector<8x32xbf16>, vector<8x32xbf16>, vector<8x8xf32> -> vector<8x8xf32>
    %cst_34 = arith.constant 0.176776692 : f32
    %55 = vector.broadcast %cst_34 : f32 to vector<8x8xf32>
    %56 = arith.mulf %54, %55 : vector<8x8xf32>
    %57 = vector.broadcast %15 : vector<1x8xf32> to vector<8x8xf32>
    %58 = arith.addf %56, %57 : vector<8x8xf32>
    %cst_35 = arith.constant dense<0xFF800000> : vector<8xf32>
    %59 = vector.multi_reduction <maximumf>, %58, %cst_35 [1] : vector<8x8xf32> to vector<8xf32>
    %60 = vector.shape_cast %59 : vector<8xf32> to vector<8x1xf32>
    %61 = vector.broadcast %60 : vector<8x1xf32> to vector<8x8xf32>
    %62 = arith.subf %58, %61 : vector<8x8xf32>
    %63 = math.exp %62 : vector<8x8xf32>
    %cst_36 = arith.constant dense<0.000000e+00> : vector<8xf32>
    %64 = vector.multi_reduction <add>, %63, %cst_36 [1] : vector<8x8xf32> to vector<8xf32>
    %65 = vector.shape_cast %64 : vector<8xf32> to vector<8x1xf32>
    %66 = vector.broadcast %65 : vector<8x1xf32> to vector<8x8xf32>
    %67 = arith.divf %63, %66 : vector<8x8xf32>
    %68 = arith.truncf %67 : vector<8x8xf32> to vector<8x8xbf16>
    %cst_37 = arith.constant dense<0.000000e+00> : vector<8x32xf32>
    %69 = tpu.matmul %68, %53, %cst_37 {dimension_numbers = #tpu.dot_dimension_numbers<[1], [0], [0], [1], [0, 0, 1, 1], [], []>} : vector<8x8xbf16>, vector<8x32xbf16>, vector<8x32xf32> -> vector<8x32xf32>
    %70 = vector.extract_strided_slice %50 {offsets = [0, 32], sizes = [8, 32], strides = [1, 1]} : vector<8x384xbf16> to vector<8x32xbf16>
    %71 = vector.extract_strided_slice %50 {offsets = [0, 160], sizes = [8, 32], strides = [1, 1]} : vector<8x384xbf16> to vector<8x32xbf16>
    %72 = vector.extract_strided_slice %50 {offsets = [0, 288], sizes = [8, 32], strides = [1, 1]} : vector<8x384xbf16> to vector<8x32xbf16>
    %cst_38 = arith.constant dense<0.000000e+00> : vector<8x8xf32>
    %73 = tpu.matmul %70, %71, %cst_38 {dimension_numbers = #tpu.dot_dimension_numbers<[1], [1], [0], [0], [0, 0, 1, 0], [], []>} : vector<8x32xbf16>, vector<8x32xbf16>, vector<8x8xf32> -> vector<8x8xf32>
    %cst_39 = arith.constant 0.176776692 : f32
    %74 = vector.broadcast %cst_39 : f32 to vector<8x8xf32>
    %75 = arith.mulf %73, %74 : vector<8x8xf32>
    %76 = vector.broadcast %15 : vector<1x8xf32> to vector<8x8xf32>
    %77 = arith.addf %75, %76 : vector<8x8xf32>
    %cst_40 = arith.constant dense<0xFF800000> : vector<8xf32>
    %78 = vector.multi_reduction <maximumf>, %77, %cst_40 [1] : vector<8x8xf32> to vector<8xf32>
    %79 = vector.shape_cast %78 : vector<8xf32> to vector<8x1xf32>
    %80 = vector.broadcast %79 : vector<8x1xf32> to vector<8x8xf32>
    %81 = arith.subf %77, %80 : vector<8x8xf32>
    %82 = math.exp %81 : vector<8x8xf32>
    %cst_41 = arith.constant dense<0.000000e+00> : vector<8xf32>
    %83 = vector.multi_reduction <add>, %82, %cst_41 [1] : vector<8x8xf32> to vector<8xf32>
    %84 = vector.shape_cast %83 : vector<8xf32> to vector<8x1xf32>
    %85 = vector.broadcast %84 : vector<8x1xf32> to vector<8x8xf32>
    %86 = arith.divf %82, %85 : vector<8x8xf32>
    %87 = arith.truncf %86 : vector<8x8xf32> to vector<8x8xbf16>
    %cst_42 = arith.constant dense<0.000000e+00> : vector<8x32xf32>
    %88 = tpu.matmul %87, %72, %cst_42 {dimension_numbers = #tpu.dot_dimension_numbers<[1], [0], [0], [1], [0, 0, 1, 1], [], []>} : vector<8x8xbf16>, vector<8x32xbf16>, vector<8x32xf32> -> vector<8x32xf32>
    %89 = vector.extract_strided_slice %50 {offsets = [0, 64], sizes = [8, 32], strides = [1, 1]} : vector<8x384xbf16> to vector<8x32xbf16>
    %90 = vector.extract_strided_slice %50 {offsets = [0, 192], sizes = [8, 32], strides = [1, 1]} : vector<8x384xbf16> to vector<8x32xbf16>
    %91 = vector.extract_strided_slice %50 {offsets = [0, 320], sizes = [8, 32], strides = [1, 1]} : vector<8x384xbf16> to vector<8x32xbf16>
    %cst_43 = arith.constant dense<0.000000e+00> : vector<8x8xf32>
    %92 = tpu.matmul %89, %90, %cst_43 {dimension_numbers = #tpu.dot_dimension_numbers<[1], [1], [0], [0], [0, 0, 1, 0], [], []>} : vector<8x32xbf16>, vector<8x32xbf16>, vector<8x8xf32> -> vector<8x8xf32>
    %cst_44 = arith.constant 0.176776692 : f32
    %93 = vector.broadcast %cst_44 : f32 to vector<8x8xf32>
    %94 = arith.mulf %92, %93 : vector<8x8xf32>
    %95 = vector.broadcast %15 : vector<1x8xf32> to vector<8x8xf32>
    %96 = arith.addf %94, %95 : vector<8x8xf32>
    %cst_45 = arith.constant dense<0xFF800000> : vector<8xf32>
    %97 = vector.multi_reduction <maximumf>, %96, %cst_45 [1] : vector<8x8xf32> to vector<8xf32>
    %98 = vector.shape_cast %97 : vector<8xf32> to vector<8x1xf32>
    %99 = vector.broadcast %98 : vector<8x1xf32> to vector<8x8xf32>
    %100 = arith.subf %96, %99 : vector<8x8xf32>
    %101 = math.exp %100 : vector<8x8xf32>
    %cst_46 = arith.constant dense<0.000000e+00> : vector<8xf32>
    %102 = vector.multi_reduction <add>, %101, %cst_46 [1] : vector<8x8xf32> to vector<8xf32>
    %103 = vector.shape_cast %102 : vector<8xf32> to vector<8x1xf32>
    %104 = vector.broadcast %103 : vector<8x1xf32> to vector<8x8xf32>
    %105 = arith.divf %101, %104 : vector<8x8xf32>
    %106 = arith.truncf %105 : vector<8x8xf32> to vector<8x8xbf16>
    %cst_47 = arith.constant dense<0.000000e+00> : vector<8x32xf32>
    %107 = tpu.matmul %106, %91, %cst_47 {dimension_numbers = #tpu.dot_dimension_numbers<[1], [0], [0], [1], [0, 0, 1, 1], [], []>} : vector<8x8xbf16>, vector<8x32xbf16>, vector<8x32xf32> -> vector<8x32xf32>
    %108 = vector.extract_strided_slice %50 {offsets = [0, 96], sizes = [8, 32], strides = [1, 1]} : vector<8x384xbf16> to vector<8x32xbf16>
    %109 = vector.extract_strided_slice %50 {offsets = [0, 224], sizes = [8, 32], strides = [1, 1]} : vector<8x384xbf16> to vector<8x32xbf16>
    %110 = vector.extract_strided_slice %50 {offsets = [0, 352], sizes = [8, 32], strides = [1, 1]} : vector<8x384xbf16> to vector<8x32xbf16>
    %cst_48 = arith.constant dense<0.000000e+00> : vector<8x8xf32>
    %111 = tpu.matmul %108, %109, %cst_48 {dimension_numbers = #tpu.dot_dimension_numbers<[1], [1], [0], [0], [0, 0, 1, 0], [], []>} : vector<8x32xbf16>, vector<8x32xbf16>, vector<8x8xf32> -> vector<8x8xf32>
    %cst_49 = arith.constant 0.176776692 : f32
    %112 = vector.broadcast %cst_49 : f32 to vector<8x8xf32>
    %113 = arith.mulf %111, %112 : vector<8x8xf32>
    %114 = vector.broadcast %15 : vector<1x8xf32> to vector<8x8xf32>
    %115 = arith.addf %113, %114 : vector<8x8xf32>
    %cst_50 = arith.constant dense<0xFF800000> : vector<8xf32>
    %116 = vector.multi_reduction <maximumf>, %115, %cst_50 [1] : vector<8x8xf32> to vector<8xf32>
    %117 = vector.shape_cast %116 : vector<8xf32> to vector<8x1xf32>
    %118 = vector.broadcast %117 : vector<8x1xf32> to vector<8x8xf32>
    %119 = arith.subf %115, %118 : vector<8x8xf32>
    %120 = math.exp %119 : vector<8x8xf32>
    %cst_51 = arith.constant dense<0.000000e+00> : vector<8xf32>
    %121 = vector.multi_reduction <add>, %120, %cst_51 [1] : vector<8x8xf32> to vector<8xf32>
    %122 = vector.shape_cast %121 : vector<8xf32> to vector<8x1xf32>
    %123 = vector.broadcast %122 : vector<8x1xf32> to vector<8x8xf32>
    %124 = arith.divf %120, %123 : vector<8x8xf32>
    %125 = arith.truncf %124 : vector<8x8xf32> to vector<8x8xbf16>
    %cst_52 = arith.constant dense<0.000000e+00> : vector<8x32xf32>
    %126 = tpu.matmul %125, %110, %cst_52 {dimension_numbers = #tpu.dot_dimension_numbers<[1], [0], [0], [1], [0, 0, 1, 1], [], []>} : vector<8x8xbf16>, vector<8x32xbf16>, vector<8x32xf32> -> vector<8x32xf32>
    %127 = tpu.concatenate %69, %88, %107, %126 in 1 : vector<8x32xf32>, vector<8x32xf32>, vector<8x32xf32>, vector<8x32xf32> -> vector<8x128xf32>
    %128 = arith.truncf %127 : vector<8x128xf32> to vector<8x128xbf16>
    %c0_53 = arith.constant 0 : index
    %c0_54 = arith.constant 0 : index
    %c0_55 = arith.constant 0 : index
    %129 = vector.load %arg6[%c0_53, %c0_54, %c0_55] : memref<2x128x128xbf16, #tpu.memory_space<vmem>>, vector<1x128x128xbf16>
    %130 = vector.shape_cast %129 : vector<1x128x128xbf16> to vector<128x128xbf16>
    %cst_56 = arith.constant dense<0.000000e+00> : vector<8x128xf32>
    %131 = tpu.matmul %128, %130, %cst_56 {dimension_numbers = #tpu.dot_dimension_numbers<[1], [0], [0], [1], [0, 0, 1, 1], [], []>} : vector<8x128xbf16>, vector<128x128xbf16>, vector<8x128xf32> -> vector<8x128xf32>
    %c0_57 = arith.constant 0 : index
    %c0_58 = arith.constant 0 : index
    %c0_59 = arith.constant 0 : index
    %132 = vector.load %arg7[%c0_57, %c0_58, %c0_59] : memref<2x1x128xf32, #tpu.memory_space<vmem>>, vector<1x1x128xf32>
    %133 = vector.shape_cast %132 : vector<1x1x128xf32> to vector<1x128xf32>
    %134 = vector.broadcast %133 : vector<1x128xf32> to vector<8x128xf32>
    %135 = arith.addf %131, %134 : vector<8x128xf32>
    %136 = arith.addf %9, %135 : vector<8x128xf32>
    %c0_60 = arith.constant 0 : index
    %c0_61 = arith.constant 0 : index
    %c0_62 = arith.constant 0 : index
    %137 = vector.load %arg10[%c0_60, %c0_61, %c0_62] : memref<2x1x128xf32, #tpu.memory_space<vmem>>, vector<1x1x128xf32>
    %138 = vector.shape_cast %137 : vector<1x1x128xf32> to vector<1x128xf32>
    %c0_63 = arith.constant 0 : index
    %c0_64 = arith.constant 0 : index
    %c0_65 = arith.constant 0 : index
    %139 = vector.load %arg11[%c0_63, %c0_64, %c0_65] : memref<2x1x128xf32, #tpu.memory_space<vmem>>, vector<1x1x128xf32>
    %140 = vector.shape_cast %139 : vector<1x1x128xf32> to vector<1x128xf32>
    %cst_66 = arith.constant dense<0.000000e+00> : vector<8xf32>
    %141 = vector.multi_reduction <add>, %136, %cst_66 [1] : vector<8x128xf32> to vector<8xf32>
    %142 = vector.shape_cast %141 : vector<8xf32> to vector<8x1xf32>
    %cst_67 = arith.constant 1.280000e+02 : f32
    %143 = vector.broadcast %cst_67 : f32 to vector<8x1xf32>
    %144 = arith.divf %142, %143 : vector<8x1xf32>
    %145 = vector.broadcast %144 : vector<8x1xf32> to vector<8x128xf32>
    %146 = arith.subf %136, %145 : vector<8x128xf32>
    %147 = arith.mulf %146, %146 : vector<8x128xf32>
    %cst_68 = arith.constant dense<0.000000e+00> : vector<8xf32>
    %148 = vector.multi_reduction <add>, %147, %cst_68 [1] : vector<8x128xf32> to vector<8xf32>
    %149 = vector.shape_cast %148 : vector<8xf32> to vector<8x1xf32>
    %cst_69 = arith.constant 1.280000e+02 : f32
    %150 = vector.broadcast %cst_69 : f32 to vector<8x1xf32>
    %151 = arith.divf %149, %150 : vector<8x1xf32>
    %152 = vector.broadcast %144 : vector<8x1xf32> to vector<8x128xf32>
    %153 = arith.subf %136, %152 : vector<8x128xf32>
    %cst_70 = arith.constant 9.99999997E-7 : f32
    %154 = vector.broadcast %cst_70 : f32 to vector<8x1xf32>
    %155 = arith.addf %151, %154 : vector<8x1xf32>
    %156 = math.rsqrt %155 : vector<8x1xf32>
    %157 = vector.broadcast %156 : vector<8x1xf32> to vector<8x128xf32>
    %158 = arith.mulf %153, %157 : vector<8x128xf32>
    %159 = vector.broadcast %138 : vector<1x128xf32> to vector<8x128xf32>
    %160 = arith.mulf %158, %159 : vector<8x128xf32>
    %161 = vector.broadcast %140 : vector<1x128xf32> to vector<8x128xf32>
    %162 = arith.addf %160, %161 : vector<8x128xf32>
    %163 = arith.truncf %162 : vector<8x128xf32> to vector<8x128xbf16>
    %c0_71 = arith.constant 0 : index
    %c0_72 = arith.constant 0 : index
    %c0_73 = arith.constant 0 : index
    %164 = vector.load %arg12[%c0_71, %c0_72, %c0_73] : memref<2x128x256xbf16, #tpu.memory_space<vmem>>, vector<1x128x256xbf16>
    %165 = vector.shape_cast %164 : vector<1x128x256xbf16> to vector<128x256xbf16>
    %cst_74 = arith.constant dense<0.000000e+00> : vector<8x256xf32>
    %166 = tpu.matmul %163, %165, %cst_74 {dimension_numbers = #tpu.dot_dimension_numbers<[1], [0], [0], [1], [0, 0, 1, 1], [], []>} : vector<8x128xbf16>, vector<128x256xbf16>, vector<8x256xf32> -> vector<8x256xf32>
    %c0_75 = arith.constant 0 : index
    %c0_76 = arith.constant 0 : index
    %c0_77 = arith.constant 0 : index
    %167 = vector.load %arg13[%c0_75, %c0_76, %c0_77] : memref<2x1x256xf32, #tpu.memory_space<vmem>>, vector<1x1x256xf32>
    %168 = vector.shape_cast %167 : vector<1x1x256xf32> to vector<1x256xf32>
    %169 = vector.broadcast %168 : vector<1x256xf32> to vector<8x256xf32>
    %170 = arith.addf %166, %169 : vector<8x256xf32>
    %cst_78 = arith.constant 5.000000e-01 : f32
    %171 = vector.broadcast %cst_78 : f32 to vector<8x256xf32>
    %172 = arith.mulf %171, %170 : vector<8x256xf32>
    %cst_79 = arith.constant 4.471500e-02 : f32
    %173 = vector.broadcast %cst_79 : f32 to vector<8x256xf32>
    %174 = arith.mulf %173, %170 : vector<8x256xf32>
    %175 = arith.mulf %174, %170 : vector<8x256xf32>
    %176 = arith.mulf %175, %170 : vector<8x256xf32>
    %177 = arith.addf %170, %176 : vector<8x256xf32>
    %cst_80 = arith.constant 0.797884583 : f32
    %178 = vector.broadcast %cst_80 : f32 to vector<8x256xf32>
    %179 = arith.mulf %178, %177 : vector<8x256xf32>
    %180 = math.tanh %179 : vector<8x256xf32>
    %cst_81 = arith.constant 1.000000e+00 : f32
    %181 = vector.broadcast %cst_81 : f32 to vector<8x256xf32>
    %182 = arith.addf %181, %180 : vector<8x256xf32>
    %183 = arith.mulf %172, %182 : vector<8x256xf32>
    %184 = arith.truncf %183 : vector<8x256xf32> to vector<8x256xbf16>
    %c0_82 = arith.constant 0 : index
    %c0_83 = arith.constant 0 : index
    %c0_84 = arith.constant 0 : index
    %185 = vector.load %arg14[%c0_82, %c0_83, %c0_84] : memref<2x256x128xbf16, #tpu.memory_space<vmem>>, vector<1x256x128xbf16>
    %186 = vector.shape_cast %185 : vector<1x256x128xbf16> to vector<256x128xbf16>
    %cst_85 = arith.constant dense<0.000000e+00> : vector<8x128xf32>
    %187 = tpu.matmul %184, %186, %cst_85 {dimension_numbers = #tpu.dot_dimension_numbers<[1], [0], [0], [1], [0, 0, 1, 1], [], []>} : vector<8x256xbf16>, vector<256x128xbf16>, vector<8x128xf32> -> vector<8x128xf32>
    %c0_86 = arith.constant 0 : index
    %c0_87 = arith.constant 0 : index
    %c0_88 = arith.constant 0 : index
    %188 = vector.load %arg15[%c0_86, %c0_87, %c0_88] : memref<2x1x128xf32, #tpu.memory_space<vmem>>, vector<1x1x128xf32>
    %189 = vector.shape_cast %188 : vector<1x1x128xf32> to vector<1x128xf32>
    %190 = vector.broadcast %189 : vector<1x128xf32> to vector<8x128xf32>
    %191 = arith.addf %187, %190 : vector<8x128xf32>
    %192 = arith.addf %136, %191 : vector<8x128xf32>
    %c1_89 = arith.constant 1 : index
    %c0_90 = arith.constant 0 : index
    %c0_91 = arith.constant 0 : index
    %193 = vector.load %arg8[%c1_89, %c0_90, %c0_91] : memref<2x1x128xf32, #tpu.memory_space<vmem>>, vector<1x1x128xf32>
    %194 = vector.shape_cast %193 : vector<1x1x128xf32> to vector<1x128xf32>
    %c1_92 = arith.constant 1 : index
    %c0_93 = arith.constant 0 : index
    %c0_94 = arith.constant 0 : index
    %195 = vector.load %arg9[%c1_92, %c0_93, %c0_94] : memref<2x1x128xf32, #tpu.memory_space<vmem>>, vector<1x1x128xf32>
    %196 = vector.shape_cast %195 : vector<1x1x128xf32> to vector<1x128xf32>
    %cst_95 = arith.constant dense<0.000000e+00> : vector<8xf32>
    %197 = vector.multi_reduction <add>, %192, %cst_95 [1] : vector<8x128xf32> to vector<8xf32>
    %198 = vector.shape_cast %197 : vector<8xf32> to vector<8x1xf32>
    %cst_96 = arith.constant 1.280000e+02 : f32
    %199 = vector.broadcast %cst_96 : f32 to vector<8x1xf32>
    %200 = arith.divf %198, %199 : vector<8x1xf32>
    %201 = vector.broadcast %200 : vector<8x1xf32> to vector<8x128xf32>
    %202 = arith.subf %192, %201 : vector<8x128xf32>
    %203 = arith.mulf %202, %202 : vector<8x128xf32>
    %cst_97 = arith.constant dense<0.000000e+00> : vector<8xf32>
    %204 = vector.multi_reduction <add>, %203, %cst_97 [1] : vector<8x128xf32> to vector<8xf32>
    %205 = vector.shape_cast %204 : vector<8xf32> to vector<8x1xf32>
    %cst_98 = arith.constant 1.280000e+02 : f32
    %206 = vector.broadcast %cst_98 : f32 to vector<8x1xf32>
    %207 = arith.divf %205, %206 : vector<8x1xf32>
    %208 = vector.broadcast %200 : vector<8x1xf32> to vector<8x128xf32>
    %209 = arith.subf %192, %208 : vector<8x128xf32>
    %cst_99 = arith.constant 9.99999997E-7 : f32
    %210 = vector.broadcast %cst_99 : f32 to vector<8x1xf32>
    %211 = arith.addf %207, %210 : vector<8x1xf32>
    %212 = math.rsqrt %211 : vector<8x1xf32>
    %213 = vector.broadcast %212 : vector<8x1xf32> to vector<8x128xf32>
    %214 = arith.mulf %209, %213 : vector<8x128xf32>
    %215 = vector.broadcast %194 : vector<1x128xf32> to vector<8x128xf32>
    %216 = arith.mulf %214, %215 : vector<8x128xf32>
    %217 = vector.broadcast %196 : vector<1x128xf32> to vector<8x128xf32>
    %218 = arith.addf %216, %217 : vector<8x128xf32>
    %219 = arith.truncf %218 : vector<8x128xf32> to vector<8x128xbf16>
    %c1_100 = arith.constant 1 : index
    %c0_101 = arith.constant 0 : index
    %c0_102 = arith.constant 0 : index
    %220 = vector.load %arg4[%c1_100, %c0_101, %c0_102] : memref<2x128x384xbf16, #tpu.memory_space<vmem>>, vector<1x128x384xbf16>
    %221 = vector.shape_cast %220 : vector<1x128x384xbf16> to vector<128x384xbf16>
    %cst_103 = arith.constant dense<0.000000e+00> : vector<8x384xf32>
    %222 = tpu.matmul %219, %221, %cst_103 {dimension_numbers = #tpu.dot_dimension_numbers<[1], [0], [0], [1], [0, 0, 1, 1], [], []>} : vector<8x128xbf16>, vector<128x384xbf16>, vector<8x384xf32> -> vector<8x384xf32>
    %c1_104 = arith.constant 1 : index
    %c0_105 = arith.constant 0 : index
    %c0_106 = arith.constant 0 : index
    %223 = vector.load %arg5[%c1_104, %c0_105, %c0_106] : memref<2x1x384xf32, #tpu.memory_space<vmem>>, vector<1x1x384xf32>
    %224 = vector.shape_cast %223 : vector<1x1x384xf32> to vector<1x384xf32>
    %225 = vector.broadcast %224 : vector<1x384xf32> to vector<8x384xf32>
    %226 = arith.addf %222, %225 : vector<8x384xf32>
    %227 = arith.truncf %226 : vector<8x384xf32> to vector<8x384xbf16>
    %228 = vector.extract_strided_slice %227 {offsets = [0, 0], sizes = [8, 32], strides = [1, 1]} : vector<8x384xbf16> to vector<8x32xbf16>
    %229 = vector.extract_strided_slice %227 {offsets = [0, 128], sizes = [8, 32], strides = [1, 1]} : vector<8x384xbf16> to vector<8x32xbf16>
    %230 = vector.extract_strided_slice %227 {offsets = [0, 256], sizes = [8, 32], strides = [1, 1]} : vector<8x384xbf16> to vector<8x32xbf16>
    %cst_107 = arith.constant dense<0.000000e+00> : vector<8x8xf32>
    %231 = tpu.matmul %228, %229, %cst_107 {dimension_numbers = #tpu.dot_dimension_numbers<[1], [1], [0], [0], [0, 0, 1, 0], [], []>} : vector<8x32xbf16>, vector<8x32xbf16>, vector<8x8xf32> -> vector<8x8xf32>
    %cst_108 = arith.constant 0.176776692 : f32
    %232 = vector.broadcast %cst_108 : f32 to vector<8x8xf32>
    %233 = arith.mulf %231, %232 : vector<8x8xf32>
    %234 = vector.broadcast %15 : vector<1x8xf32> to vector<8x8xf32>
    %235 = arith.addf %233, %234 : vector<8x8xf32>
    %cst_109 = arith.constant dense<0xFF800000> : vector<8xf32>
    %236 = vector.multi_reduction <maximumf>, %235, %cst_109 [1] : vector<8x8xf32> to vector<8xf32>
    %237 = vector.shape_cast %236 : vector<8xf32> to vector<8x1xf32>
    %238 = vector.broadcast %237 : vector<8x1xf32> to vector<8x8xf32>
    %239 = arith.subf %235, %238 : vector<8x8xf32>
    %240 = math.exp %239 : vector<8x8xf32>
    %cst_110 = arith.constant dense<0.000000e+00> : vector<8xf32>
    %241 = vector.multi_reduction <add>, %240, %cst_110 [1] : vector<8x8xf32> to vector<8xf32>
    %242 = vector.shape_cast %241 : vector<8xf32> to vector<8x1xf32>
    %243 = vector.broadcast %242 : vector<8x1xf32> to vector<8x8xf32>
    %244 = arith.divf %240, %243 : vector<8x8xf32>
    %245 = arith.truncf %244 : vector<8x8xf32> to vector<8x8xbf16>
    %cst_111 = arith.constant dense<0.000000e+00> : vector<8x32xf32>
    %246 = tpu.matmul %245, %230, %cst_111 {dimension_numbers = #tpu.dot_dimension_numbers<[1], [0], [0], [1], [0, 0, 1, 1], [], []>} : vector<8x8xbf16>, vector<8x32xbf16>, vector<8x32xf32> -> vector<8x32xf32>
    %247 = vector.extract_strided_slice %227 {offsets = [0, 32], sizes = [8, 32], strides = [1, 1]} : vector<8x384xbf16> to vector<8x32xbf16>
    %248 = vector.extract_strided_slice %227 {offsets = [0, 160], sizes = [8, 32], strides = [1, 1]} : vector<8x384xbf16> to vector<8x32xbf16>
    %249 = vector.extract_strided_slice %227 {offsets = [0, 288], sizes = [8, 32], strides = [1, 1]} : vector<8x384xbf16> to vector<8x32xbf16>
    %cst_112 = arith.constant dense<0.000000e+00> : vector<8x8xf32>
    %250 = tpu.matmul %247, %248, %cst_112 {dimension_numbers = #tpu.dot_dimension_numbers<[1], [1], [0], [0], [0, 0, 1, 0], [], []>} : vector<8x32xbf16>, vector<8x32xbf16>, vector<8x8xf32> -> vector<8x8xf32>
    %cst_113 = arith.constant 0.176776692 : f32
    %251 = vector.broadcast %cst_113 : f32 to vector<8x8xf32>
    %252 = arith.mulf %250, %251 : vector<8x8xf32>
    %253 = vector.broadcast %15 : vector<1x8xf32> to vector<8x8xf32>
    %254 = arith.addf %252, %253 : vector<8x8xf32>
    %cst_114 = arith.constant dense<0xFF800000> : vector<8xf32>
    %255 = vector.multi_reduction <maximumf>, %254, %cst_114 [1] : vector<8x8xf32> to vector<8xf32>
    %256 = vector.shape_cast %255 : vector<8xf32> to vector<8x1xf32>
    %257 = vector.broadcast %256 : vector<8x1xf32> to vector<8x8xf32>
    %258 = arith.subf %254, %257 : vector<8x8xf32>
    %259 = math.exp %258 : vector<8x8xf32>
    %cst_115 = arith.constant dense<0.000000e+00> : vector<8xf32>
    %260 = vector.multi_reduction <add>, %259, %cst_115 [1] : vector<8x8xf32> to vector<8xf32>
    %261 = vector.shape_cast %260 : vector<8xf32> to vector<8x1xf32>
    %262 = vector.broadcast %261 : vector<8x1xf32> to vector<8x8xf32>
    %263 = arith.divf %259, %262 : vector<8x8xf32>
    %264 = arith.truncf %263 : vector<8x8xf32> to vector<8x8xbf16>
    %cst_116 = arith.constant dense<0.000000e+00> : vector<8x32xf32>
    %265 = tpu.matmul %264, %249, %cst_116 {dimension_numbers = #tpu.dot_dimension_numbers<[1], [0], [0], [1], [0, 0, 1, 1], [], []>} : vector<8x8xbf16>, vector<8x32xbf16>, vector<8x32xf32> -> vector<8x32xf32>
    %266 = vector.extract_strided_slice %227 {offsets = [0, 64], sizes = [8, 32], strides = [1, 1]} : vector<8x384xbf16> to vector<8x32xbf16>
    %267 = vector.extract_strided_slice %227 {offsets = [0, 192], sizes = [8, 32], strides = [1, 1]} : vector<8x384xbf16> to vector<8x32xbf16>
    %268 = vector.extract_strided_slice %227 {offsets = [0, 320], sizes = [8, 32], strides = [1, 1]} : vector<8x384xbf16> to vector<8x32xbf16>
    %cst_117 = arith.constant dense<0.000000e+00> : vector<8x8xf32>
    %269 = tpu.matmul %266, %267, %cst_117 {dimension_numbers = #tpu.dot_dimension_numbers<[1], [1], [0], [0], [0, 0, 1, 0], [], []>} : vector<8x32xbf16>, vector<8x32xbf16>, vector<8x8xf32> -> vector<8x8xf32>
    %cst_118 = arith.constant 0.176776692 : f32
    %270 = vector.broadcast %cst_118 : f32 to vector<8x8xf32>
    %271 = arith.mulf %269, %270 : vector<8x8xf32>
    %272 = vector.broadcast %15 : vector<1x8xf32> to vector<8x8xf32>
    %273 = arith.addf %271, %272 : vector<8x8xf32>
    %cst_119 = arith.constant dense<0xFF800000> : vector<8xf32>
    %274 = vector.multi_reduction <maximumf>, %273, %cst_119 [1] : vector<8x8xf32> to vector<8xf32>
    %275 = vector.shape_cast %274 : vector<8xf32> to vector<8x1xf32>
    %276 = vector.broadcast %275 : vector<8x1xf32> to vector<8x8xf32>
    %277 = arith.subf %273, %276 : vector<8x8xf32>
    %278 = math.exp %277 : vector<8x8xf32>
    %cst_120 = arith.constant dense<0.000000e+00> : vector<8xf32>
    %279 = vector.multi_reduction <add>, %278, %cst_120 [1] : vector<8x8xf32> to vector<8xf32>
    %280 = vector.shape_cast %279 : vector<8xf32> to vector<8x1xf32>
    %281 = vector.broadcast %280 : vector<8x1xf32> to vector<8x8xf32>
    %282 = arith.divf %278, %281 : vector<8x8xf32>
    %283 = arith.truncf %282 : vector<8x8xf32> to vector<8x8xbf16>
    %cst_121 = arith.constant dense<0.000000e+00> : vector<8x32xf32>
    %284 = tpu.matmul %283, %268, %cst_121 {dimension_numbers = #tpu.dot_dimension_numbers<[1], [0], [0], [1], [0, 0, 1, 1], [], []>} : vector<8x8xbf16>, vector<8x32xbf16>, vector<8x32xf32> -> vector<8x32xf32>
    %285 = vector.extract_strided_slice %227 {offsets = [0, 96], sizes = [8, 32], strides = [1, 1]} : vector<8x384xbf16> to vector<8x32xbf16>
    %286 = vector.extract_strided_slice %227 {offsets = [0, 224], sizes = [8, 32], strides = [1, 1]} : vector<8x384xbf16> to vector<8x32xbf16>
    %287 = vector.extract_strided_slice %227 {offsets = [0, 352], sizes = [8, 32], strides = [1, 1]} : vector<8x384xbf16> to vector<8x32xbf16>
    %cst_122 = arith.constant dense<0.000000e+00> : vector<8x8xf32>
    %288 = tpu.matmul %285, %286, %cst_122 {dimension_numbers = #tpu.dot_dimension_numbers<[1], [1], [0], [0], [0, 0, 1, 0], [], []>} : vector<8x32xbf16>, vector<8x32xbf16>, vector<8x8xf32> -> vector<8x8xf32>
    %cst_123 = arith.constant 0.176776692 : f32
    %289 = vector.broadcast %cst_123 : f32 to vector<8x8xf32>
    %290 = arith.mulf %288, %289 : vector<8x8xf32>
    %291 = vector.broadcast %15 : vector<1x8xf32> to vector<8x8xf32>
    %292 = arith.addf %290, %291 : vector<8x8xf32>
    %cst_124 = arith.constant dense<0xFF800000> : vector<8xf32>
    %293 = vector.multi_reduction <maximumf>, %292, %cst_124 [1] : vector<8x8xf32> to vector<8xf32>
    %294 = vector.shape_cast %293 : vector<8xf32> to vector<8x1xf32>
    %295 = vector.broadcast %294 : vector<8x1xf32> to vector<8x8xf32>
    %296 = arith.subf %292, %295 : vector<8x8xf32>
    %297 = math.exp %296 : vector<8x8xf32>
    %cst_125 = arith.constant dense<0.000000e+00> : vector<8xf32>
    %298 = vector.multi_reduction <add>, %297, %cst_125 [1] : vector<8x8xf32> to vector<8xf32>
    %299 = vector.shape_cast %298 : vector<8xf32> to vector<8x1xf32>
    %300 = vector.broadcast %299 : vector<8x1xf32> to vector<8x8xf32>
    %301 = arith.divf %297, %300 : vector<8x8xf32>
    %302 = arith.truncf %301 : vector<8x8xf32> to vector<8x8xbf16>
    %cst_126 = arith.constant dense<0.000000e+00> : vector<8x32xf32>
    %303 = tpu.matmul %302, %287, %cst_126 {dimension_numbers = #tpu.dot_dimension_numbers<[1], [0], [0], [1], [0, 0, 1, 1], [], []>} : vector<8x8xbf16>, vector<8x32xbf16>, vector<8x32xf32> -> vector<8x32xf32>
    %304 = tpu.concatenate %246, %265, %284, %303 in 1 : vector<8x32xf32>, vector<8x32xf32>, vector<8x32xf32>, vector<8x32xf32> -> vector<8x128xf32>
    %305 = arith.truncf %304 : vector<8x128xf32> to vector<8x128xbf16>
    %c1_127 = arith.constant 1 : index
    %c0_128 = arith.constant 0 : index
    %c0_129 = arith.constant 0 : index
    %306 = vector.load %arg6[%c1_127, %c0_128, %c0_129] : memref<2x128x128xbf16, #tpu.memory_space<vmem>>, vector<1x128x128xbf16>
    %307 = vector.shape_cast %306 : vector<1x128x128xbf16> to vector<128x128xbf16>
    %cst_130 = arith.constant dense<0.000000e+00> : vector<8x128xf32>
    %308 = tpu.matmul %305, %307, %cst_130 {dimension_numbers = #tpu.dot_dimension_numbers<[1], [0], [0], [1], [0, 0, 1, 1], [], []>} : vector<8x128xbf16>, vector<128x128xbf16>, vector<8x128xf32> -> vector<8x128xf32>
    %c1_131 = arith.constant 1 : index
    %c0_132 = arith.constant 0 : index
    %c0_133 = arith.constant 0 : index
    %309 = vector.load %arg7[%c1_131, %c0_132, %c0_133] : memref<2x1x128xf32, #tpu.memory_space<vmem>>, vector<1x1x128xf32>
    %310 = vector.shape_cast %309 : vector<1x1x128xf32> to vector<1x128xf32>
    %311 = vector.broadcast %310 : vector<1x128xf32> to vector<8x128xf32>
    %312 = arith.addf %308, %311 : vector<8x128xf32>
    %313 = arith.addf %192, %312 : vector<8x128xf32>
    %c1_134 = arith.constant 1 : index
    %c0_135 = arith.constant 0 : index
    %c0_136 = arith.constant 0 : index
    %314 = vector.load %arg10[%c1_134, %c0_135, %c0_136] : memref<2x1x128xf32, #tpu.memory_space<vmem>>, vector<1x1x128xf32>
    %315 = vector.shape_cast %314 : vector<1x1x128xf32> to vector<1x128xf32>
    %c1_137 = arith.constant 1 : index
    %c0_138 = arith.constant 0 : index
    %c0_139 = arith.constant 0 : index
    %316 = vector.load %arg11[%c1_137, %c0_138, %c0_139] : memref<2x1x128xf32, #tpu.memory_space<vmem>>, vector<1x1x128xf32>
    %317 = vector.shape_cast %316 : vector<1x1x128xf32> to vector<1x128xf32>
    %cst_140 = arith.constant dense<0.000000e+00> : vector<8xf32>
    %318 = vector.multi_reduction <add>, %313, %cst_140 [1] : vector<8x128xf32> to vector<8xf32>
    %319 = vector.shape_cast %318 : vector<8xf32> to vector<8x1xf32>
    %cst_141 = arith.constant 1.280000e+02 : f32
    %320 = vector.broadcast %cst_141 : f32 to vector<8x1xf32>
    %321 = arith.divf %319, %320 : vector<8x1xf32>
    %322 = vector.broadcast %321 : vector<8x1xf32> to vector<8x128xf32>
    %323 = arith.subf %313, %322 : vector<8x128xf32>
    %324 = arith.mulf %323, %323 : vector<8x128xf32>
    %cst_142 = arith.constant dense<0.000000e+00> : vector<8xf32>
    %325 = vector.multi_reduction <add>, %324, %cst_142 [1] : vector<8x128xf32> to vector<8xf32>
    %326 = vector.shape_cast %325 : vector<8xf32> to vector<8x1xf32>
    %cst_143 = arith.constant 1.280000e+02 : f32
    %327 = vector.broadcast %cst_143 : f32 to vector<8x1xf32>
    %328 = arith.divf %326, %327 : vector<8x1xf32>
    %329 = vector.broadcast %321 : vector<8x1xf32> to vector<8x128xf32>
    %330 = arith.subf %313, %329 : vector<8x128xf32>
    %cst_144 = arith.constant 9.99999997E-7 : f32
    %331 = vector.broadcast %cst_144 : f32 to vector<8x1xf32>
    %332 = arith.addf %328, %331 : vector<8x1xf32>
    %333 = math.rsqrt %332 : vector<8x1xf32>
    %334 = vector.broadcast %333 : vector<8x1xf32> to vector<8x128xf32>
    %335 = arith.mulf %330, %334 : vector<8x128xf32>
    %336 = vector.broadcast %315 : vector<1x128xf32> to vector<8x128xf32>
    %337 = arith.mulf %335, %336 : vector<8x128xf32>
    %338 = vector.broadcast %317 : vector<1x128xf32> to vector<8x128xf32>
    %339 = arith.addf %337, %338 : vector<8x128xf32>
    %340 = arith.truncf %339 : vector<8x128xf32> to vector<8x128xbf16>
    %c1_145 = arith.constant 1 : index
    %c0_146 = arith.constant 0 : index
    %c0_147 = arith.constant 0 : index
    %341 = vector.load %arg12[%c1_145, %c0_146, %c0_147] : memref<2x128x256xbf16, #tpu.memory_space<vmem>>, vector<1x128x256xbf16>
    %342 = vector.shape_cast %341 : vector<1x128x256xbf16> to vector<128x256xbf16>
    %cst_148 = arith.constant dense<0.000000e+00> : vector<8x256xf32>
    %343 = tpu.matmul %340, %342, %cst_148 {dimension_numbers = #tpu.dot_dimension_numbers<[1], [0], [0], [1], [0, 0, 1, 1], [], []>} : vector<8x128xbf16>, vector<128x256xbf16>, vector<8x256xf32> -> vector<8x256xf32>
    %c1_149 = arith.constant 1 : index
    %c0_150 = arith.constant 0 : index
    %c0_151 = arith.constant 0 : index
    %344 = vector.load %arg13[%c1_149, %c0_150, %c0_151] : memref<2x1x256xf32, #tpu.memory_space<vmem>>, vector<1x1x256xf32>
    %345 = vector.shape_cast %344 : vector<1x1x256xf32> to vector<1x256xf32>
    %346 = vector.broadcast %345 : vector<1x256xf32> to vector<8x256xf32>
    %347 = arith.addf %343, %346 : vector<8x256xf32>
    %cst_152 = arith.constant 5.000000e-01 : f32
    %348 = vector.broadcast %cst_152 : f32 to vector<8x256xf32>
    %349 = arith.mulf %348, %347 : vector<8x256xf32>
    %cst_153 = arith.constant 4.471500e-02 : f32
    %350 = vector.broadcast %cst_153 : f32 to vector<8x256xf32>
    %351 = arith.mulf %350, %347 : vector<8x256xf32>
    %352 = arith.mulf %351, %347 : vector<8x256xf32>
    %353 = arith.mulf %352, %347 : vector<8x256xf32>
    %354 = arith.addf %347, %353 : vector<8x256xf32>
    %cst_154 = arith.constant 0.797884583 : f32
    %355 = vector.broadcast %cst_154 : f32 to vector<8x256xf32>
    %356 = arith.mulf %355, %354 : vector<8x256xf32>
    %357 = math.tanh %356 : vector<8x256xf32>
    %cst_155 = arith.constant 1.000000e+00 : f32
    %358 = vector.broadcast %cst_155 : f32 to vector<8x256xf32>
    %359 = arith.addf %358, %357 : vector<8x256xf32>
    %360 = arith.mulf %349, %359 : vector<8x256xf32>
    %361 = arith.truncf %360 : vector<8x256xf32> to vector<8x256xbf16>
    %c1_156 = arith.constant 1 : index
    %c0_157 = arith.constant 0 : index
    %c0_158 = arith.constant 0 : index
    %362 = vector.load %arg14[%c1_156, %c0_157, %c0_158] : memref<2x256x128xbf16, #tpu.memory_space<vmem>>, vector<1x256x128xbf16>
    %363 = vector.shape_cast %362 : vector<1x256x128xbf16> to vector<256x128xbf16>
    %cst_159 = arith.constant dense<0.000000e+00> : vector<8x128xf32>
    %364 = tpu.matmul %361, %363, %cst_159 {dimension_numbers = #tpu.dot_dimension_numbers<[1], [0], [0], [1], [0, 0, 1, 1], [], []>} : vector<8x256xbf16>, vector<256x128xbf16>, vector<8x128xf32> -> vector<8x128xf32>
    %c1_160 = arith.constant 1 : index
    %c0_161 = arith.constant 0 : index
    %c0_162 = arith.constant 0 : index
    %365 = vector.load %arg15[%c1_160, %c0_161, %c0_162] : memref<2x1x128xf32, #tpu.memory_space<vmem>>, vector<1x1x128xf32>
    %366 = vector.shape_cast %365 : vector<1x1x128xf32> to vector<1x128xf32>
    %367 = vector.broadcast %366 : vector<1x128xf32> to vector<8x128xf32>
    %368 = arith.addf %364, %367 : vector<8x128xf32>
    %369 = arith.addf %313, %368 : vector<8x128xf32>
    %370 = vector.extract_strided_slice %369 {offsets = [0, 0], sizes = [1, 128], strides = [1, 1]} : vector<8x128xf32> to vector<1x128xf32>
    %c0_163 = arith.constant 0 : index
    %c0_164 = arith.constant 0 : index
    %371 = vector.load %arg16[%c0_163, %c0_164] : memref<1x128xf32, #tpu.memory_space<vmem>>, vector<1x128xf32>
    %c0_165 = arith.constant 0 : index
    %c0_166 = arith.constant 0 : index
    %372 = vector.load %arg17[%c0_165, %c0_166] : memref<1x128xf32, #tpu.memory_space<vmem>>, vector<1x128xf32>
    %cst_167 = arith.constant dense<0.000000e+00> : vector<1xf32>
    %373 = vector.multi_reduction <add>, %370, %cst_167 [1] : vector<1x128xf32> to vector<1xf32>
    %374 = vector.shape_cast %373 : vector<1xf32> to vector<1x1xf32>
    %cst_168 = arith.constant 1.280000e+02 : f32
    %375 = vector.broadcast %cst_168 : f32 to vector<1x1xf32>
    %376 = arith.divf %374, %375 : vector<1x1xf32>
    %377 = vector.broadcast %376 : vector<1x1xf32> to vector<1x128xf32>
    %378 = arith.subf %370, %377 : vector<1x128xf32>
    %379 = arith.mulf %378, %378 : vector<1x128xf32>
    %cst_169 = arith.constant dense<0.000000e+00> : vector<1xf32>
    %380 = vector.multi_reduction <add>, %379, %cst_169 [1] : vector<1x128xf32> to vector<1xf32>
    %381 = vector.shape_cast %380 : vector<1xf32> to vector<1x1xf32>
    %cst_170 = arith.constant 1.280000e+02 : f32
    %382 = vector.broadcast %cst_170 : f32 to vector<1x1xf32>
    %383 = arith.divf %381, %382 : vector<1x1xf32>
    %384 = vector.broadcast %376 : vector<1x1xf32> to vector<1x128xf32>
    %385 = arith.subf %370, %384 : vector<1x128xf32>
    %cst_171 = arith.constant 9.99999997E-7 : f32
    %386 = vector.broadcast %cst_171 : f32 to vector<1x1xf32>
    %387 = arith.addf %383, %386 : vector<1x1xf32>
    %388 = math.rsqrt %387 : vector<1x1xf32>
    %389 = vector.broadcast %388 : vector<1x1xf32> to vector<1x128xf32>
    %390 = arith.mulf %385, %389 : vector<1x128xf32>
    %391 = arith.mulf %390, %371 : vector<1x128xf32>
    %392 = arith.addf %391, %372 : vector<1x128xf32>
    %c0_172 = arith.constant 0 : index
    %c0_173 = arith.constant 0 : index
    %c0_174 = arith.constant 0 : index
    %393 = vector.load %arg18[%c0_172, %c0_173, %c0_174] : memref<1x1x128xf32, #tpu.memory_space<vmem>>, vector<1x1x128xf32>
    %394 = vector.shape_cast %393 : vector<1x1x128xf32> to vector<1x128xf32>
    %395 = vector.shape_cast %392 : vector<1x128xf32> to vector<1x1x128xf32>
    tpu.vector_store %arg18[%c0_172, %c0_173, %c0_174], %395 {strides = array<i32>} : memref<1x1x128xf32, #tpu.memory_space<vmem>>, vector<1x1x128xf32>,
    return
  }
  func.func @transform_0(%arg0: i32) -> (i32, i32, i32) {
    %c0_i32 = arith.constant 0 : i32
    %c0_i32_0 = arith.constant 0 : i32
    %c0_i32_1 = arith.constant 0 : i32
    return %arg0, %c0_i32, %c0_i32_0 : i32, i32, i32
  }
  func.func @transform_1(%arg0: i32) -> (i32, i32) {
    %c0_i32 = arith.constant 0 : i32
    %c0_i32_0 = arith.constant 0 : i32
    %c0_i32_1 = arith.constant 0 : i32
    return %c0_i32, %c0_i32_0 : i32, i32
  }
  func.func @transform_2(%arg0: i32) -> (i32, i32) {
    %c0_i32 = arith.constant 0 : i32
    %c0_i32_0 = arith.constant 0 : i32
    %c0_i32_1 = arith.constant 0 : i32
    return %c0_i32, %c0_i32_0 : i32, i32
  }
  func.func @transform_3(%arg0: i32) -> (i32, i32, i32) {
    %c0_i32 = arith.constant 0 : i32
    %c0_i32_0 = arith.constant 0 : i32
    %c0_i32_1 = arith.constant 0 : i32
    %c0_i32_2 = arith.constant 0 : i32
    return %c0_i32, %c0_i32_0, %c0_i32_1 : i32, i32, i32
  }
  func.func @transform_4(%arg0: i32) -> (i32, i32, i32) {
    %c0_i32 = arith.constant 0 : i32
    %c0_i32_0 = arith.constant 0 : i32
    %c0_i32_1 = arith.constant 0 : i32
    %c0_i32_2 = arith.constant 0 : i32
    return %c0_i32, %c0_i32_0, %c0_i32_1 : i32, i32, i32
  }
  func.func @transform_5(%arg0: i32) -> (i32, i32, i32) {
    %c0_i32 = arith.constant 0 : i32
    %c0_i32_0 = arith.constant 0 : i32
    %c0_i32_1 = arith.constant 0 : i32
    %c0_i32_2 = arith.constant 0 : i32
    return %c0_i32, %c0_i32_0, %c0_i32_1 : i32, i32, i32
  }
  func.func @transform_6(%arg0: i32) -> (i32, i32, i32) {
    %c0_i32 = arith.constant 0 : i32
    %c0_i32_0 = arith.constant 0 : i32
    %c0_i32_1 = arith.constant 0 : i32
    %c0_i32_2 = arith.constant 0 : i32
    return %c0_i32, %c0_i32_0, %c0_i32_1 : i32, i32, i32
  }
  func.func @transform_7(%arg0: i32) -> (i32, i32, i32) {
    %c0_i32 = arith.constant 0 : i32
    %c0_i32_0 = arith.constant 0 : i32
    %c0_i32_1 = arith.constant 0 : i32
    %c0_i32_2 = arith.constant 0 : i32
    return %c0_i32, %c0_i32_0, %c0_i32_1 : i32, i32, i32
  }
  func.func @transform_8(%arg0: i32) -> (i32, i32, i32) {
    %c0_i32 = arith.constant 0 : i32
    %c0_i32_0 = arith.constant 0 : i32
    %c0_i32_1 = arith.constant 0 : i32
    %c0_i32_2 = arith.constant 0 : i32
    return %c0_i32, %c0_i32_0, %c0_i32_1 : i32, i32, i32
  }
  func.func @transform_9(%arg0: i32) -> (i32, i32, i32) {
    %c0_i32 = arith.constant 0 : i32
    %c0_i32_0 = arith.constant 0 : i32
    %c0_i32_1 = arith.constant 0 : i32
    %c0_i32_2 = arith.constant 0 : i32
    return %c0_i32, %c0_i32_0, %c0_i32_1 : i32, i32, i32
  }
  func.func @transform_10(%arg0: i32) -> (i32, i32, i32) {
    %c0_i32 = arith.constant 0 : i32
    %c0_i32_0 = arith.constant 0 : i32
    %c0_i32_1 = arith.constant 0 : i32
    %c0_i32_2 = arith.constant 0 : i32
    return %c0_i32, %c0_i32_0, %c0_i32_1 : i32, i32, i32
  }
  func.func @transform_11(%arg0: i32) -> (i32, i32, i32) {
    %c0_i32 = arith.constant 0 : i32
    %c0_i32_0 = arith.constant 0 : i32
    %c0_i32_1 = arith.constant 0 : i32
    %c0_i32_2 = arith.constant 0 : i32
    return %c0_i32, %c0_i32_0, %c0_i32_1 : i32, i32, i32
  }
  func.func @transform_12(%arg0: i32) -> (i32, i32, i32) {
    %c0_i32 = arith.constant 0 : i32
    %c0_i32_0 = arith.constant 0 : i32
    %c0_i32_1 = arith.constant 0 : i32
    %c0_i32_2 = arith.constant 0 : i32
    return %c0_i32, %c0_i32_0, %c0_i32_1 : i32, i32, i32
  }
  func.func @transform_13(%arg0: i32) -> (i32, i32, i32) {
    %c0_i32 = arith.constant 0 : i32
    %c0_i32_0 = arith.constant 0 : i32
    %c0_i32_1 = arith.constant 0 : i32
    %c0_i32_2 = arith.constant 0 : i32
    return %c0_i32, %c0_i32_0, %c0_i32_1 : i32, i32, i32
  }
  func.func @transform_14(%arg0: i32) -> (i32, i32, i32) {
    %c0_i32 = arith.constant 0 : i32
    %c0_i32_0 = arith.constant 0 : i32
    %c0_i32_1 = arith.constant 0 : i32
    %c0_i32_2 = arith.constant 0 : i32
    return %c0_i32, %c0_i32_0, %c0_i32_1 : i32, i32, i32
  }
  func.func @transform_15(%arg0: i32) -> (i32, i32) {
    %c0_i32 = arith.constant 0 : i32
    %c0_i32_0 = arith.constant 0 : i32
    %c0_i32_1 = arith.constant 0 : i32
    return %c0_i32, %c0_i32_0 : i32, i32
  }
  func.func @transform_16(%arg0: i32) -> (i32, i32) {
    %c0_i32 = arith.constant 0 : i32
    %c0_i32_0 = arith.constant 0 : i32
    %c0_i32_1 = arith.constant 0 : i32
    return %c0_i32, %c0_i32_0 : i32, i32
  }
  func.func @transform_17(%arg0: i32) -> (i32, i32, i32) {
    %c0_i32 = arith.constant 0 : i32
    %c0_i32_0 = arith.constant 0 : i32
    %c0_i32_1 = arith.constant 0 : i32
    return %arg0, %c0_i32, %c0_i32_0 : i32, i32, i32
  }
}

</mosaic_0001>

<llo_original>
// kernel: image_encoder_forward.1
$region0: #{image_encoder_forward.1}
  #allocation0 [shape = 'u32[]', space=smem, size = 0x4, offset = 0x4, fixed_abs, tag = 'smem constant byte address 0x4 - core index']
  #allocation1 [shape = 'u32[144,128]{1,0:T(1,128)}', space=vmem, size = 0x12000, scoped, tag = 'internal scratch']
  #allocation2 [shape = 'f32[8,128]{1,0:T(8,128)}', space=vmem, size = 0x1000, scoped, tag = 'scratch operand']
  %s0 = inlined_call_operand.vmem [shape: bf16[2,4,3072], index: 0, kind: input, shape index: {}]
  %s1 = inlined_call_operand.vmem [shape: f32[8,128], index: 1, kind: input, shape index: {}]
  %s2 = inlined_call_operand.vmem [shape: bf16[3072,128], index: 2, kind: input, shape index: {}]
  %s3 = inlined_call_operand.vmem [shape: bf16[2,128,384], index: 3, kind: input, shape index: {}]
  %s4 = inlined_call_operand.vmem [shape: f32[2,1,384], index: 4, kind: input, shape index: {}]
  %s5 = inlined_call_operand.vmem [shape: bf16[2,128,128], index: 5, kind: input, shape index: {}]
  %s6 = inlined_call_operand.vmem [shape: f32[2,1,128], index: 6, kind: input, shape index: {}]
  %s7 = inlined_call_operand.vmem [shape: f32[2,1,128], index: 7, kind: input, shape index: {}]
  %s8 = inlined_call_operand.vmem [shape: f32[2,1,128], index: 8, kind: input, shape index: {}]
  %s9 = inlined_call_operand.vmem [shape: f32[2,1,128], index: 9, kind: input, shape index: {}]
  %s10 = inlined_call_operand.vmem [shape: f32[2,1,128], index: 10, kind: input, shape index: {}]
  %s11 = inlined_call_operand.vmem [shape: bf16[2,128,256], index: 11, kind: input, shape index: {}]
  %s12 = inlined_call_operand.vmem [shape: f32[2,1,256], index: 12, kind: input, shape index: {}]
  %s13 = inlined_call_operand.vmem [shape: bf16[2,256,128], index: 13, kind: input, shape index: {}]
  %s14 = inlined_call_operand.vmem [shape: f32[2,1,128], index: 14, kind: input, shape index: {}]
  %s15 = inlined_call_operand.vmem [shape: f32[1,128], index: 15, kind: input, shape index: {}]
  %s16 = inlined_call_operand.vmem [shape: f32[1,128], index: 16, kind: input, shape index: {}]
  %s17 = inlined_call_operand.hbm [shape: f32[2,1,128], index: 17, kind: output, shape index: {}]
  %s18 = sld [smem:[#allocation0]]
  $region101: #{image_encoder_forward.1} parent=0
    _
  %s20 = ssub.s32 1, %s18
  %s21 = scalar_select 0, %s20, %s18
  $region1: #{image_encoder_forward.1} parent=0
    #allocation3 [shape = 'u8[1024]{0}', space=vmem, size = 0x400, scoped, tag = 'output window, operand 0']
    #allocation4 [shape = 's32[2]{0}', space=sflag, size = 0x8, scoped, tag = 'scoped memory for image_encoder_forward.1']
    %22 = vsyncpa [#allocation4], 0
    %s23 = scalar_lea.sflag [#allocation4], 1
    %24 = vsyncpa %s23, 0
    loop: start=0, step=1, limit=4
    $region2: #{image_encoder_forward.1} parent=1 // loop_pre_header
      _
    $region3: #{image_encoder_forward.1} parent=1 // loop_header
      %s26 = sphi 0, %s30
      %p27 = scmp.ge.s32.totalorder %s26, 4
      %s36 = sphi 0, %s38
      %s39 = sphi 0, %s36
      %s40 = sphi 0, %s39
      %s56 = sphi 0, %s40
      %s60 = sphi 0, %s60
      %s62 = sphi 0, %s60
      %s63 = sphi 0, %s62
      %s77 = sphi 0, %s63
      %s81 = sphi 0, %s81
      %s83 = sphi 0, %s81
      %s84 = sphi 0, %s83
      %s98 = sphi 0, %s84
      %s102 = sphi 0, %s102
      %s104 = sphi 0, %s102
      %s105 = sphi 0, %s104
      %s119 = sphi 0, %s105
      %s123 = sphi 0, %s123
      %s125 = sphi 0, %s123
      %s126 = sphi 0, %s125
      %s140 = sphi 0, %s126
      %s144 = sphi 0, %s144
      %s146 = sphi 0, %s144
      %s147 = sphi 0, %s146
      %s161 = sphi 0, %s147
      %s165 = sphi 0, %s165
      %s167 = sphi 0, %s165
      %s168 = sphi 0, %s167
      %s182 = sphi 0, %s168
      %s186 = sphi 0, %s186
      %s188 = sphi 0, %s186
      %s189 = sphi 0, %s188
      %s203 = sphi 0, %s189
      %s207 = sphi 0, %s207
      %s209 = sphi 0, %s207
      %s210 = sphi 0, %s209
      %s224 = sphi 0, %s210
      %s228 = sphi 0, %s228
      %s230 = sphi 0, %s228
      %s231 = sphi 0, %s230
      %s245 = sphi 0, %s231
      %s249 = sphi 0, %s249
      %s251 = sphi 0, %s249
      %s252 = sphi 0, %s251
      %s266 = sphi 0, %s252
      %s270 = sphi 0, %s270
      %s272 = sphi 0, %s270
      %s273 = sphi 0, %s272
      %s287 = sphi 0, %s273
      %s291 = sphi 0, %s291
      %s293 = sphi 0, %s291
      %s294 = sphi 0, %s293
      %s308 = sphi 0, %s294
      %s312 = sphi 0, %s312
      %s314 = sphi 0, %s312
      %s315 = sphi 0, %s314
      %s329 = sphi 0, %s315
      %s333 = sphi 0, %s333
      %s335 = sphi 0, %s333
      %s336 = sphi 0, %s335
      %s350 = sphi 0, %s336
      %s354 = sphi 0, %s354
      %s356 = sphi 0, %s354
      %s357 = sphi 0, %s356
      %s371 = sphi 0, %s357
      %s375 = sphi 0, %s375
      %s377 = sphi 0, %s375
      %s378 = sphi 0, %s377
      %s392 = sphi 0, %s378
      %s398 = sphi 0, %s400
      %s401 = sphi 0, %s398
      %s402 = sphi 0, %s401
      %s418 = sphi 0, %s402
    $region4: #{image_encoder_forward.1} parent=1 // loop_header_branch
      %29 = sbr.rel (%p27) target = $region8
    $region5: #{image_encoder_forward.1} parent=1 // loop_body
      %s31 = ssub.s32 %s26, 1
      %s32 = ssub.s32 %s26, 2
      %s33 = sadd.s32 %s26, 1
      %s34 = ssub.s32 %s26, %s33
      %p35 = scmp.eq.s32.totalorder %s34, 0
      %s37 = sadd.s32 %s36, 1
      %s38 = scalar_select %p35, %s36, %s37
      %p41 = pneg %p35
      %p42 = scmp.eq.s32.totalorder %s26, 1
      %p43 = por %p41, %p42
      %p44 = scmp.ne.s32.totalorder %s36, %s39
      %p45 = scmp.eq.s32.totalorder %s26, 0
      %p46 = por %p44, %p45
      %p47 = scmp.ne.s32.totalorder %s36, %s39
      %p48 = scmp.eq.s32.totalorder %s31, 1
      %p49 = por %p47, %p48
      %p50 = scmp.ne.s32.totalorder %s39, %s40
      %p51 = scmp.eq.s32.totalorder %s31, 0
      %p52 = por %p50, %p51
      %p53 = scmp.ne.s32.totalorder %s39, %s40
      %p54 = scmp.eq.s32.totalorder %s32, 1
      %p55 = por %p53, %p54
      %p57 = scmp.ne.s32.totalorder %s40, %s56
      %p58 = scmp.eq.s32.totalorder %s32, 0
      %p59 = por %p57, %p58
      %s61 = sadd.s32 %s60, 1
      %p64 = scmp.eq.s32.totalorder %s26, 1
      %p65 = scmp.ne.s32.totalorder %s60, %s62
      %p66 = scmp.eq.s32.totalorder %s26, 0
      %p67 = por %p65, %p66
      %p68 = scmp.ne.s32.totalorder %s60, %s62
      %p69 = scmp.eq.s32.totalorder %s31, 1
      %p70 = por %p68, %p69
      %p71 = scmp.ne.s32.totalorder %s62, %s63
      %p72 = scmp.eq.s32.totalorder %s31, 0
      %p73 = por %p71, %p72
      %p74 = scmp.ne.s32.totalorder %s62, %s63
      %p75 = scmp.eq.s32.totalorder %s32, 1
      %p76 = por %p74, %p75
      %p78 = scmp.ne.s32.totalorder %s63, %s77
      %p79 = scmp.eq.s32.totalorder %s32, 0
      %p80 = por %p78, %p79
      %s82 = sadd.s32 %s81, 1
      %p85 = scmp.eq.s32.totalorder %s26, 1
      %p86 = scmp.ne.s32.totalorder %s81, %s83
      %p87 = scmp.eq.s32.totalorder %s26, 0
      %p88 = por %p86, %p87
      %p89 = scmp.ne.s32.totalorder %s81, %s83
      %p90 = scmp.eq.s32.totalorder %s31, 1
      %p91 = por %p89, %p90
      %p92 = scmp.ne.s32.totalorder %s83, %s84
      %p93 = scmp.eq.s32.totalorder %s31, 0
      %p94 = por %p92, %p93
      %p95 = scmp.ne.s32.totalorder %s83, %s84
      %p96 = scmp.eq.s32.totalorder %s32, 1
      %p97 = por %p95, %p96
      %p99 = scmp.ne.s32.totalorder %s84, %s98
      %p100 = scmp.eq.s32.totalorder %s32, 0
      %p101 = por %p99, %p100
      %s103 = sadd.s32 %s102, 1
      %p106 = scmp.eq.s32.totalorder %s26, 1
      %p107 = scmp.ne.s32.totalorder %s102, %s104
      %p108 = scmp.eq.s32.totalorder %s26, 0
      %p109 = por %p107, %p108
      %p110 = scmp.ne.s32.totalorder %s102, %s104
      %p111 = scmp.eq.s32.totalorder %s31, 1
      %p112 = por %p110, %p111
      %p113 = scmp.ne.s32.totalorder %s104, %s105
      %p114 = scmp.eq.s32.totalorder %s31, 0
      %p115 = por %p113, %p114
      %p116 = scmp.ne.s32.totalorder %s104, %s105
      %p117 = scmp.eq.s32.totalorder %s32, 1
      %p118 = por %p116, %p117
      %p120 = scmp.ne.s32.totalorder %s105, %s119
      %p121 = scmp.eq.s32.totalorder %s32, 0
      %p122 = por %p120, %p121
      %s124 = sadd.s32 %s123, 1
      %p127 = scmp.eq.s32.totalorder %s26, 1
      %p128 = scmp.ne.s32.totalorder %s123, %s125
      %p129 = scmp.eq.s32.totalorder %s26, 0
      %p130 = por %p128, %p129
      %p131 = scmp.ne.s32.totalorder %s123, %s125
      %p132 = scmp.eq.s32.totalorder %s31, 1
      %p133 = por %p131, %p132
      %p134 = scmp.ne.s32.totalorder %s125, %s126
      %p135 = scmp.eq.s32.totalorder %s31, 0
      %p136 = por %p134, %p135
      %p137 = scmp.ne.s32.totalorder %s125, %s126
      %p138 = scmp.eq.s32.totalorder %s32, 1
      %p139 = por %p137, %p138
      %p141 = scmp.ne.s32.totalorder %s126, %s140
      %p142 = scmp.eq.s32.totalorder %s32, 0
      %p143 = por %p141, %p142
      %s145 = sadd.s32 %s144, 1
      %p148 = scmp.eq.s32.totalorder %s26, 1
      %p149 = scmp.ne.s32.totalorder %s144, %s146
      %p150 = scmp.eq.s32.totalorder %s26, 0
      %p151 = por %p149, %p150
      %p152 = scmp.ne.s32.totalorder %s144, %s146
      %p153 = scmp.eq.s32.totalorder %s31, 1
      %p154 = por %p152, %p153
      %p155 = scmp.ne.s32.totalorder %s146, %s147
      %p156 = scmp.eq.s32.totalorder %s31, 0
      %p157 = por %p155, %p156
      %p158 = scmp.ne.s32.totalorder %s146, %s147
      %p159 = scmp.eq.s32.totalorder %s32, 1
      %p160 = por %p158, %p159
      %p162 = scmp.ne.s32.totalorder %s147, %s161
      %p163 = scmp.eq.s32.totalorder %s32, 0
      %p164 = por %p162, %p163
      %s166 = sadd.s32 %s165, 1
      %p169 = scmp.eq.s32.totalorder %s26, 1
      %p170 = scmp.ne.s32.totalorder %s165, %s167
      %p171 = scmp.eq.s32.totalorder %s26, 0
      %p172 = por %p170, %p171
      %p173 = scmp.ne.s32.totalorder %s165, %s167
      %p174 = scmp.eq.s32.totalorder %s31, 1
      %p175 = por %p173, %p174
      %p176 = scmp.ne.s32.totalorder %s167, %s168
      %p177 = scmp.eq.s32.totalorder %s31, 0
      %p178 = por %p176, %p177
      %p179 = scmp.ne.s32.totalorder %s167, %s168
      %p180 = scmp.eq.s32.totalorder %s32, 1
      %p181 = por %p179, %p180
      %p183 = scmp.ne.s32.totalorder %s168, %s182
      %p184 = scmp.eq.s32.totalorder %s32, 0
      %p185 = por %p183, %p184
      %s187 = sadd.s32 %s186, 1
      %p190 = scmp.eq.s32.totalorder %s26, 1
      %p191 = scmp.ne.s32.totalorder %s186, %s188
      %p192 = scmp.eq.s32.totalorder %s26, 0
      %p193 = por %p191, %p192
      %p194 = scmp.ne.s32.totalorder %s186, %s188
      %p195 = scmp.eq.s32.totalorder %s31, 1
      %p196 = por %p194, %p195
      %p197 = scmp.ne.s32.totalorder %s188, %s189
      %p198 = scmp.eq.s32.totalorder %s31, 0
      %p199 = por %p197, %p198
      %p200 = scmp.ne.s32.totalorder %s188, %s189
      %p201 = scmp.eq.s32.totalorder %s32, 1
      %p202 = por %p200, %p201
      %p204 = scmp.ne.s32.totalorder %s189, %s203
      %p205 = scmp.eq.s32.totalorder %s32, 0
      %p206 = por %p204, %p205
      %s208 = sadd.s32 %s207, 1
      %p211 = scmp.eq.s32.totalorder %s26, 1
      %p212 = scmp.ne.s32.totalorder %s207, %s209
      %p213 = scmp.eq.s32.totalorder %s26, 0
      %p214 = por %p212, %p213
      %p215 = scmp.ne.s32.totalorder %s207, %s209
      %p216 = scmp.eq.s32.totalorder %s31, 1
      %p217 = por %p215, %p216
      %p218 = scmp.ne.s32.totalorder %s209, %s210
      %p219 = scmp.eq.s32.totalorder %s31, 0
      %p220 = por %p218, %p219
      %p221 = scmp.ne.s32.totalorder %s209, %s210
      %p222 = scmp.eq.s32.totalorder %s32, 1
      %p223 = por %p221, %p222
      %p225 = scmp.ne.s32.totalorder %s210, %s224
      %p226 = scmp.eq.s32.totalorder %s32, 0
      %p227 = por %p225, %p226
      %s229 = sadd.s32 %s228, 1
      %p232 = scmp.eq.s32.totalorder %s26, 1
      %p233 = scmp.ne.s32.totalorder %s228, %s230
      %p234 = scmp.eq.s32.totalorder %s26, 0
      %p235 = por %p233, %p234
      %p236 = scmp.ne.s32.totalorder %s228, %s230
      %p237 = scmp.eq.s32.totalorder %s31, 1
      %p238 = por %p236, %p237
      %p239 = scmp.ne.s32.totalorder %s230, %s231
      %p240 = scmp.eq.s32.totalorder %s31, 0
      %p241 = por %p239, %p240
      %p242 = scmp.ne.s32.totalorder %s230, %s231
      %p243 = scmp.eq.s32.totalorder %s32, 1
      %p244 = por %p242, %p243
      %p246 = scmp.ne.s32.totalorder %s231, %s245
      %p247 = scmp.eq.s32.totalorder %s32, 0
      %p248 = por %p246, %p247
      %s250 = sadd.s32 %s249, 1
      %p253 = scmp.eq.s32.totalorder %s26, 1
      %p254 = scmp.ne.s32.totalorder %s249, %s251
      %p255 = scmp.eq.s32.totalorder %s26, 0
      %p256 = por %p254, %p255
      %p257 = scmp.ne.s32.totalorder %s249, %s251
      %p258 = scmp.eq.s32.totalorder %s31, 1
      %p259 = por %p257, %p258
      %p260 = scmp.ne.s32.totalorder %s251, %s252
      %p261 = scmp.eq.s32.totalorder %s31, 0
      %p262 = por %p260, %p261
      %p263 = scmp.ne.s32.totalorder %s251, %s252
      %p264 = scmp.eq.s32.totalorder %s32, 1
      %p265 = por %p263, %p264
      %p267 = scmp.ne.s32.totalorder %s252, %s266
      %p268 = scmp.eq.s32.totalorder %s32, 0
      %p269 = por %p267, %p268
      %s271 = sadd.s32 %s270, 1
      %p274 = scmp.eq.s32.totalorder %s26, 1
      %p275 = scmp.ne.s32.totalorder %s270, %s272
      %p276 = scmp.eq.s32.totalorder %s26, 0
      %p277 = por %p275, %p276
      %p278 = scmp.ne.s32.totalorder %s270, %s272
      %p279 = scmp.eq.s32.totalorder %s31, 1
      %p280 = por %p278, %p279
      %p281 = scmp.ne.s32.totalorder %s272, %s273
      %p282 = scmp.eq.s32.totalorder %s31, 0
      %p283 = por %p281, %p282
      %p284 = scmp.ne.s32.totalorder %s272, %s273
      %p285 = scmp.eq.s32.totalorder %s32, 1
      %p286 = por %p284, %p285
      %p288 = scmp.ne.s32.totalorder %s273, %s287
      %p289 = scmp.eq.s32.totalorder %s32, 0
      %p290 = por %p288, %p289
      %s292 = sadd.s32 %s291, 1
      %p295 = scmp.eq.s32.totalorder %s26, 1
      %p296 = scmp.ne.s32.totalorder %s291, %s293
      %p297 = scmp.eq.s32.totalorder %s26, 0
      %p298 = por %p296, %p297
      %p299 = scmp.ne.s32.totalorder %s291, %s293
      %p300 = scmp.eq.s32.totalorder %s31, 1
      %p301 = por %p299, %p300
      %p302 = scmp.ne.s32.totalorder %s293, %s294
      %p303 = scmp.eq.s32.totalorder %s31, 0
      %p304 = por %p302, %p303
      %p305 = scmp.ne.s32.totalorder %s293, %s294
      %p306 = scmp.eq.s32.totalorder %s32, 1
      %p307 = por %p305, %p306
      %p309 = scmp.ne.s32.totalorder %s294, %s308
      %p310 = scmp.eq.s32.totalorder %s32, 0
      %p311 = por %p309, %p310
      %s313 = sadd.s32 %s312, 1
      %p316 = scmp.eq.s32.totalorder %s26, 1
      %p317 = scmp.ne.s32.totalorder %s312, %s314
      %p318 = scmp.eq.s32.totalorder %s26, 0
      %p319 = por %p317, %p318
      %p320 = scmp.ne.s32.totalorder %s312, %s314
      %p321 = scmp.eq.s32.totalorder %s31, 1
      %p322 = por %p320, %p321
      %p323 = scmp.ne.s32.totalorder %s314, %s315
      %p324 = scmp.eq.s32.totalorder %s31, 0
      %p325 = por %p323, %p324
      %p326 = scmp.ne.s32.totalorder %s314, %s315
      %p327 = scmp.eq.s32.totalorder %s32, 1
      %p328 = por %p326, %p327
      %p330 = scmp.ne.s32.totalorder %s315, %s329
      %p331 = scmp.eq.s32.totalorder %s32, 0
      %p332 = por %p330, %p331
      %s334 = sadd.s32 %s333, 1
      %p337 = scmp.eq.s32.totalorder %s26, 1
      %p338 = scmp.ne.s32.totalorder %s333, %s335
      %p339 = scmp.eq.s32.totalorder %s26, 0
      %p340 = por %p338, %p339
      %p341 = scmp.ne.s32.totalorder %s333, %s335
      %p342 = scmp.eq.s32.totalorder %s31, 1
      %p343 = por %p341, %p342
      %p344 = scmp.ne.s32.totalorder %s335, %s336
      %p345 = scmp.eq.s32.totalorder %s31, 0
      %p346 = por %p344, %p345
      %p347 = scmp.ne.s32.totalorder %s335, %s336
      %p348 = scmp.eq.s32.totalorder %s32, 1
      %p349 = por %p347, %p348
      %p351 = scmp.ne.s32.totalorder %s336, %s350
      %p352 = scmp.eq.s32.totalorder %s32, 0
      %p353 = por %p351, %p352
      %s355 = sadd.s32 %s354, 1
      %p358 = scmp.eq.s32.totalorder %s26, 1
      %p359 = scmp.ne.s32.totalorder %s354, %s356
      %p360 = scmp.eq.s32.totalorder %s26, 0
      %p361 = por %p359, %p360
      %p362 = scmp.ne.s32.totalorder %s354, %s356
      %p363 = scmp.eq.s32.totalorder %s31, 1
      %p364 = por %p362, %p363
      %p365 = scmp.ne.s32.totalorder %s356, %s357
      %p366 = scmp.eq.s32.totalorder %s31, 0
      %p367 = por %p365, %p366
      %p368 = scmp.ne.s32.totalorder %s356, %s357
      %p369 = scmp.eq.s32.totalorder %s32, 1
      %p370 = por %p368, %p369
      %p372 = scmp.ne.s32.totalorder %s357, %s371
      %p373 = scmp.eq.s32.totalorder %s32, 0
      %p374 = por %p372, %p373
      %s376 = sadd.s32 %s375, 1
      %p379 = scmp.eq.s32.totalorder %s26, 1
      %p380 = scmp.ne.s32.totalorder %s375, %s377
      %p381 = scmp.eq.s32.totalorder %s26, 0
      %p382 = por %p380, %p381
      %p383 = scmp.ne.s32.totalorder %s375, %s377
      %p384 = scmp.eq.s32.totalorder %s31, 1
      %p385 = por %p383, %p384
      %p386 = scmp.ne.s32.totalorder %s377, %s378
      %p387 = scmp.eq.s32.totalorder %s31, 0
      %p388 = por %p386, %p387
      %p389 = scmp.ne.s32.totalorder %s377, %s378
      %p390 = scmp.eq.s32.totalorder %s32, 1
      %p391 = por %p389, %p390
      %p393 = scmp.ne.s32.totalorder %s378, %s392
      %p394 = scmp.eq.s32.totalorder %s32, 0
      %p395 = por %p393, %p394
      %s396 = ssub.s32 %s26, %s33
      %p397 = scmp.eq.s32.totalorder %s396, 0
      %s399 = sadd.s32 %s398, 1
      %s400 = scalar_select %p397, %s398, %s399
      %p403 = pneg %p397
      %p404 = scmp.eq.s32.totalorder %s26, 1
      %p405 = por %p403, %p404
      %p406 = scmp.ne.s32.totalorder %s398, %s401
      %p407 = scmp.eq.s32.totalorder %s26, 0
      %p408 = por %p406, %p407
      %p409 = scmp.ne.s32.totalorder %s398, %s401
      %p410 = scmp.eq.s32.totalorder %s31, 1
      %p411 = por %p409, %p410
      %p412 = scmp.ne.s32.totalorder %s401, %s402
      %p413 = scmp.eq.s32.totalorder %s31, 0
      %p414 = por %p412, %p413
      %p415 = scmp.ne.s32.totalorder %s401, %s402
      %p416 = scmp.eq.s32.totalorder %s32, 1
      %p417 = por %p415, %p416
      %p419 = scmp.ne.s32.totalorder %s402, %s418
      %p420 = scmp.eq.s32.totalorder %s32, 0
      %p421 = por %p419, %p420
      %p422 = scmp.le.s32.totalorder 1, %s26
      %p423 = scmp.lt.s32.totalorder %s26, 3
      %p424 = pnand %p422, %p423
      %p425 = pneg %p424
      // Predicated region
      $region9: #{image_encoder_forward.1} parent=5 // pred_check
        _
      $region10: #{image_encoder_forward.1} parent=5 // pred_check_branch
        %427 = sbr.rel (%p424) target = $region12
      $region11: #{image_encoder_forward.1} parent=5 // pred_region
        %s428 = ssub.s32 %s26, 1
        // Predicated region
        $region13: #{image_encoder_forward.1} parent=11 // pred_check
          %p429 = pneg %p73
        $region14: #{image_encoder_forward.1} parent=11 // pred_check_branch
          %431 = sbr.rel (%p429) target = $region16
        $region15: #{image_encoder_forward.1} parent=11 // pred_region
          _
        $region16: #{image_encoder_forward.1} parent=11 // pred_fallthru
          _
        // Predicated region
        $region17: #{image_encoder_forward.1} parent=11 // pred_check
          %p432 = pneg %p94
        $region18: #{image_encoder_forward.1} parent=11 // pred_check_branch
          %434 = sbr.rel (%p432) target = $region20
        $region19: #{image_encoder_forward.1} parent=11 // pred_region
          _
        $region20: #{image_encoder_forward.1} parent=11 // pred_fallthru
          _
        // Predicated region
        $region21: #{image_encoder_forward.1} parent=11 // pred_check
          %p435 = pneg %p115
        $region22: #{image_encoder_forward.1} parent=11 // pred_check_branch
          %437 = sbr.rel (%p435) target = $region24
        $region23: #{image_encoder_forward.1} parent=11 // pred_region
          _
        $region24: #{image_encoder_forward.1} parent=11 // pred_fallthru
          _
        // Predicated region
        $region25: #{image_encoder_forward.1} parent=11 // pred_check
          %p438 = pneg %p136
        $region26: #{image_encoder_forward.1} parent=11 // pred_check_branch
          %440 = sbr.rel (%p438) target = $region28
        $region27: #{image_encoder_forward.1} parent=11 // pred_region
          _
        $region28: #{image_encoder_forward.1} parent=11 // pred_fallthru
          _
        // Predicated region
        $region29: #{image_encoder_forward.1} parent=11 // pred_check
          %p441 = pneg %p157
        $region30: #{image_encoder_forward.1} parent=11 // pred_check_branch
          %443 = sbr.rel (%p441) target = $region32
        $region31: #{image_encoder_forward.1} parent=11 // pred_region
          _
        $region32: #{image_encoder_forward.1} parent=11 // pred_fallthru
          _
        // Predicated region
        $region33: #{image_encoder_forward.1} parent=11 // pred_check
          %p444 = pneg %p178
        $region34: #{image_encoder_forward.1} parent=11 // pred_check_branch
          %446 = sbr.rel (%p444) target = $region36
        $region35: #{image_encoder_forward.1} parent=11 // pred_region
          _
        $region36: #{image_encoder_forward.1} parent=11 // pred_fallthru
          _
        // Predicated region
        $region37: #{image_encoder_forward.1} parent=11 // pred_check
          %p447 = pneg %p199
        $region38: #{image_encoder_forward.1} parent=11 // pred_check_branch
          %449 = sbr.rel (%p447) target = $region40
        $region39: #{image_encoder_forward.1} parent=11 // pred_region
          _
        $region40: #{image_encoder_forward.1} parent=11 // pred_fallthru
          _
        // Predicated region
        $region41: #{image_encoder_forward.1} parent=11 // pred_check
          %p450 = pneg %p220
        $region42: #{image_encoder_forward.1} parent=11 // pred_check_branch
          %452 = sbr.rel (%p450) target = $region44
        $region43: #{image_encoder_forward.1} parent=11 // pred_region
          _
        $region44: #{image_encoder_forward.1} parent=11 // pred_fallthru
          _
        // Predicated region
        $region45: #{image_encoder_forward.1} parent=11 // pred_check
          %p453 = pneg %p241
        $region46: #{image_encoder_forward.1} parent=11 // pred_check_branch
          %455 = sbr.rel (%p453) target = $region48
        $region47: #{image_encoder_forward.1} parent=11 // pred_region
          _
        $region48: #{image_encoder_forward.1} parent=11 // pred_fallthru
          _
        // Predicated region
        $region49: #{image_encoder_forward.1} parent=11 // pred_check
          %p456 = pneg %p262
        $region50: #{image_encoder_forward.1} parent=11 // pred_check_branch
          %458 = sbr.rel (%p456) target = $region52
        $region51: #{image_encoder_forward.1} parent=11 // pred_region
          _
        $region52: #{image_encoder_forward.1} parent=11 // pred_fallthru
          _
        // Predicated region
        $region53: #{image_encoder_forward.1} parent=11 // pred_check
          %p459 = pneg %p283
        $region54: #{image_encoder_forward.1} parent=11 // pred_check_branch
          %461 = sbr.rel (%p459) target = $region56
        $region55: #{image_encoder_forward.1} parent=11 // pred_region
          _
        $region56: #{image_encoder_forward.1} parent=11 // pred_fallthru
          _
        // Predicated region
        $region57: #{image_encoder_forward.1} parent=11 // pred_check
          %p462 = pneg %p304
        $region58: #{image_encoder_forward.1} parent=11 // pred_check_branch
          %464 = sbr.rel (%p462) target = $region60
        $region59: #{image_encoder_forward.1} parent=11 // pred_region
          _
        $region60: #{image_encoder_forward.1} parent=11 // pred_fallthru
          _
        // Predicated region
        $region61: #{image_encoder_forward.1} parent=11 // pred_check
          %p465 = pneg %p325
        $region62: #{image_encoder_forward.1} parent=11 // pred_check_branch
          %467 = sbr.rel (%p465) target = $region64
        $region63: #{image_encoder_forward.1} parent=11 // pred_region
          _
        $region64: #{image_encoder_forward.1} parent=11 // pred_fallthru
          _
        // Predicated region
        $region65: #{image_encoder_forward.1} parent=11 // pred_check
          %p468 = pneg %p346
        $region66: #{image_encoder_forward.1} parent=11 // pred_check_branch
          %470 = sbr.rel (%p468) target = $region68
        $region67: #{image_encoder_forward.1} parent=11 // pred_region
          _
        $region68: #{image_encoder_forward.1} parent=11 // pred_fallthru
          _
        // Predicated region
        $region69: #{image_encoder_forward.1} parent=11 // pred_check
          %p471 = pneg %p367
        $region70: #{image_encoder_forward.1} parent=11 // pred_check_branch
          %473 = sbr.rel (%p471) target = $region72
        $region71: #{image_encoder_forward.1} parent=11 // pred_region
          _
        $region72: #{image_encoder_forward.1} parent=11 // pred_fallthru
          _
        // Predicated region
        $region73: #{image_encoder_forward.1} parent=11 // pred_check
          %p474 = pneg %p388
        $region74: #{image_encoder_forward.1} parent=11 // pred_check_branch
          %476 = sbr.rel (%p474) target = $region76
        $region75: #{image_encoder_forward.1} parent=11 // pred_region
          _
        $region76: #{image_encoder_forward.1} parent=11 // pred_fallthru
          _
      $region12: #{image_encoder_forward.1} parent=5 // pred_fallthru
        _
      %p477 = scmp.lt.s32.totalorder %s26, 2
      // Predicated region
      $region77: #{image_encoder_forward.1} parent=5 // pred_check
        %p478 = pneg %p477
      $region78: #{image_encoder_forward.1} parent=5 // pred_check_branch
        %480 = sbr.rel (%p478) target = $region80
      $region79: #{image_encoder_forward.1} parent=5 // pred_region
        // Predicated region
        $region81: #{image_encoder_forward.1} parent=79 // pred_check
          %p481 = pneg %p46
        $region82: #{image_encoder_forward.1} parent=79 // pred_check_branch
          %483 = sbr.rel (%p481) target = $region84
        $region83: #{image_encoder_forward.1} parent=79 // pred_region
          %p484 = scmp.lt.s32.totalorder %s26, 1
          %s485 = scalar_select %p484, %s26, 1
          %s486 = smul.addr %s485, 24
          %s487 = smul.addr %s486, 2
          %s488 = scalar_lea.vmem %s0, %s487
        $region84: #{image_encoder_forward.1} parent=79 // pred_fallthru
          _
      $region80: #{image_encoder_forward.1} parent=5 // pred_fallthru
        _
      %p489 = scmp.le.s32.totalorder 1, %s26
      %p490 = scmp.lt.s32.totalorder %s26, 3
      %p491 = pnand %p489, %p490
      %p492 = pneg %p491
      // Predicated region
      $region85: #{image_encoder_forward.1} parent=5 // pred_check
        _
      $region86: #{image_encoder_forward.1} parent=5 // pred_check_branch
        %494 = sbr.rel (%p491) target = $region88
      $region87: #{image_encoder_forward.1} parent=5 // pred_region
        %s495 = ssub.s32 %s26, 1
        %p496 = scmp.lt.s32.totalorder %s31, 1
        %s497 = scalar_select %p496, %s31, 1
        %s498 = smul.addr %s497, 24
        %s499 = smul.addr %s498, 2
        %s500 = scalar_lea.vmem %s0, %s499
        %p501 = pneg %p52
        %p502 = pneg %p49
        %p503 = pneg %p73
        %p504 = pneg %p70
        %p505 = pneg %p94
        %p506 = pneg %p91
        %p507 = pneg %p115
        %p508 = pneg %p112
        %p509 = pneg %p136
        %p510 = pneg %p133
        %p511 = pneg %p157
        %p512 = pneg %p154
        %p513 = pneg %p178
        %p514 = pneg %p175
        %p515 = pneg %p199
        %p516 = pneg %p196
        %p517 = pneg %p220
        %p518 = pneg %p217
        %p519 = pneg %p241
        %p520 = pneg %p238
        %p521 = pneg %p262
        %p522 = pneg %p259
        %p523 = pneg %p283
        %p524 = pneg %p280
        %p525 = pneg %p304
        %p526 = pneg %p301
        %p527 = pneg %p325
        %p528 = pneg %p322
        %p529 = pneg %p346
        %p530 = pneg %p343
        %p531 = pneg %p367
        %p532 = pneg %p364
        %p533 = pneg %p388
        %p534 = pneg %p385
        %p535 = pneg %p414
        %p536 = pneg %p411
        %s537 = sand.u32 %s401, 1
        %s538 = scalar_lea.sflag [#allocation4], %s537
        %s539 = sand.u32 %s401, 1
        %s540 = scalar_lea.vmem [#allocation3], %s539
        %p541 = scmp.lt.s32.totalorder %s31, 1
        %s542 = scalar_select %p541, %s31, 1
        %s543 = smul.addr %s542, 24
        %s544 = smul.addr %s543, 2
        %s545 = scalar_lea.vmem %s0, %s544
        %v547 = vld [vmem:[%s545] sm:$0xff]
        %v548 = vld [vmem:[%s545 + $0x8] sm:$0xff]
        %v549 = vld [vmem:[%s545 + $0x10] sm:$0xff]
        %v550 = vld [vmem:[%s545 + $0x18] sm:$0xff]
        %v551 = vld [vmem:[%s545 + $0x20] sm:$0xff]
        %v552 = vld [vmem:[%s545 + $0x28] sm:$0xff]
        %v553 = vld [vmem:[%s2] sm:$0xf]
        %v554 = vld [vmem:[%s2 + $0x4] sm:$0xf]
        %v555 = vld [vmem:[%s2 + $0x8] sm:$0xf]
        %v556 = vld [vmem:[%s2 + $0xc] sm:$0xf]
        %v557 = vld [vmem:[%s2 + $0x10] sm:$0xf]
        %v558 = vld [vmem:[%s2 + $0x14] sm:$0xf]
        %v559 = vld [vmem:[%s2 + $0x18] sm:$0xf]
        %v560 = vld [vmem:[%s2 + $0x1c] sm:$0xf]
        %v561 = vld [vmem:[%s2 + $0x20] sm:$0xf]
        %v562 = vld [vmem:[%s2 + $0x24] sm:$0xf]
        %v563 = vld [vmem:[%s2 + $0x28] sm:$0xf]
        %v564 = vld [vmem:[%s2 + $0x2c] sm:$0xf]
        %v565 = vld [vmem:[%s2 + $0x30] sm:$0xf]
        %v566 = vld [vmem:[%s2 + $0x34] sm:$0xf]
        %v567 = vld [vmem:[%s2 + $0x38] sm:$0xf]
        %v568 = vld [vmem:[%s2 + $0x3c] sm:$0xf]
        %v569 = vld [vmem:[%s2 + $0x40] sm:$0xf]
        %v570 = vld [vmem:[%s2 + $0x44] sm:$0xf]
        %v571 = vld [vmem:[%s2 + $0x48] sm:$0xf]
        %v572 = vld [vmem:[%s2 + $0x4c] sm:$0xf]
        %v573 = vld [vmem:[%s2 + $0x50] sm:$0xf]
        %v574 = vld [vmem:[%s2 + $0x54] sm:$0xf]
        %v575 = vld [vmem:[%s2 + $0x58] sm:$0xf]
        %v576 = vld [vmem:[%s2 + $0x5c] sm:$0xf]
        %v577 = vld [vmem:[%s2 + $0x60] sm:$0xf]
        %v578 = vld [vmem:[%s2 + $0x64] sm:$0xf]
        %v579 = vld [vmem:[%s2 + $0x68] sm:$0xf]
        %v580 = vld [vmem:[%s2 + $0x6c] sm:$0xf]
        %v581 = vld [vmem:[%s2 + $0x70] sm:$0xf]
        %v582 = vld [vmem:[%s2 + $0x74] sm:$0xf]
        %v583 = vld [vmem:[%s2 + $0x78] sm:$0xf]
        %v584 = vld [vmem:[%s2 + $0x7c] sm:$0xf]
        %v585 = vld [vmem:[%s2 + $0x80] sm:$0xf]
        %v586 = vld [vmem:[%s2 + $0x84] sm:$0xf]
        %v587 = vld [vmem:[%s2 + $0x88] sm:$0xf]
        %v588 = vld [vmem:[%s2 + $0x8c] sm:$0xf]
        %v589 = vld [vmem:[%s2 + $0x90] sm:$0xf]
        %v590 = vld [vmem:[%s2 + $0x94] sm:$0xf]
        %v591 = vld [vmem:[%s2 + $0x98] sm:$0xf]
        %v592 = vld [vmem:[%s2 + $0x9c] sm:$0xf]
        %v593 = vld [vmem:[%s2 + $0xa0] sm:$0xf]
        %v594 = vld [vmem:[%s2 + $0xa4] sm:$0xf]
        %v595 = vld [vmem:[%s2 + $0xa8] sm:$0xf]
        %v596 = vld [vmem:[%s2 + $0xac] sm:$0xf]
        %v597 = vld [vmem:[%s2 + $0xb0] sm:$0xf]
        %v598 = vld [vmem:[%s2 + $0xb4] sm:$0xf]
        %v599 = vld [vmem:[%s2 + $0xb8] sm:$0xf]
        %v600 = vld [vmem:[%s2 + $0xbc] sm:$0xf]
        %v601 = vld [vmem:[%s2 + $0xc0] sm:$0xf]
        %v602 = vld [vmem:[%s2 + $0xc4] sm:$0xf]
        %v603 = vld [vmem:[%s2 + $0xc8] sm:$0xf]
        %v604 = vld [vmem:[%s2 + $0xcc] sm:$0xf]
        %v605 = vld [vmem:[%s2 + $0xd0] sm:$0xf]
        %v606 = vld [vmem:[%s2 + $0xd4] sm:$0xf]
        %v607 = vld [vmem:[%s2 + $0xd8] sm:$0xf]
        %v608 = vld [vmem:[%s2 + $0xdc] sm:$0xf]
        %v609 = vld [vmem:[%s2 + $0xe0] sm:$0xf]
        %v610 = vld [vmem:[%s2 + $0xe4] sm:$0xf]
        %v611 = vld [vmem:[%s2 + $0xe8] sm:$0xf]
        %v612 = vld [vmem:[%s2 + $0xec] sm:$0xf]
        %v613 = vld [vmem:[%s2 + $0xf0] sm:$0xf]
        %v614 = vld [vmem:[%s2 + $0xf4] sm:$0xf]
        %v615 = vld [vmem:[%s2 + $0xf8] sm:$0xf]
        %v616 = vld [vmem:[%s2 + $0xfc] sm:$0xf]
        %v617 = vld [vmem:[%s2 + $0x100] sm:$0xf]
        %v618 = vld [vmem:[%s2 + $0x104] sm:$0xf]
        %v619 = vld [vmem:[%s2 + $0x108] sm:$0xf]
        %v620 = vld [vmem:[%s2 + $0x10c] sm:$0xf]
        %v621 = vld [vmem:[%s2 + $0x110] sm:$0xf]
        %v622 = vld [vmem:[%s2 + $0x114] sm:$0xf]
        %v623 = vld [vmem:[%s2 + $0x118] sm:$0xf]
        %v624 = vld [vmem:[%s2 + $0x11c] sm:$0xf]
        %v625 = vld [vmem:[%s2 + $0x120] sm:$0xf]
        %v626 = vld [vmem:[%s2 + $0x124] sm:$0xf]
        %v627 = vld [vmem:[%s2 + $0x128] sm:$0xf]
        %v628 = vld [vmem:[%s2 + $0x12c] sm:$0xf]
        %v629 = vld [vmem:[%s2 + $0x130] sm:$0xf]
        %v630 = vld [vmem:[%s2 + $0x134] sm:$0xf]
        %v631 = vld [vmem:[%s2 + $0x138] sm:$0xf]
        %v632 = vld [vmem:[%s2 + $0x13c] sm:$0xf]
        %v633 = vld [vmem:[%s2 + $0x140] sm:$0xf]
        %v634 = vld [vmem:[%s2 + $0x144] sm:$0xf]
        %v635 = vld [vmem:[%s2 + $0x148] sm:$0xf]
        %v636 = vld [vmem:[%s2 + $0x14c] sm:$0xf]
        %v637 = vld [vmem:[%s2 + $0x150] sm:$0xf]
        %v638 = vld [vmem:[%s2 + $0x154] sm:$0xf]
        %v639 = vld [vmem:[%s2 + $0x158] sm:$0xf]
        %v640 = vld [vmem:[%s2 + $0x15c] sm:$0xf]
        %v641 = vld [vmem:[%s2 + $0x160] sm:$0xf]
        %v642 = vld [vmem:[%s2 + $0x164] sm:$0xf]
        %v643 = vld [vmem:[%s2 + $0x168] sm:$0xf]
        %v644 = vld [vmem:[%s2 + $0x16c] sm:$0xf]
        %v645 = vld [vmem:[%s2 + $0x170] sm:$0xf]
        %v646 = vld [vmem:[%s2 + $0x174] sm:$0xf]
        %v647 = vld [vmem:[%s2 + $0x178] sm:$0xf]
        %v648 = vld [vmem:[%s2 + $0x17c] sm:$0xf]
        %v649 = vld [vmem:[%s2 + $0x180] sm:$0xf]
        %v650 = vld [vmem:[%s2 + $0x184] sm:$0xf]
        %v651 = vld [vmem:[%s2 + $0x188] sm:$0xf]
        %v652 = vld [vmem:[%s2 + $0x18c] sm:$0xf]
        %v653 = vld [vmem:[%s2 + $0x190] sm:$0xf]
        %v654 = vld [vmem:[%s2 + $0x194] sm:$0xf]
        %v655 = vld [vmem:[%s2 + $0x198] sm:$0xf]
        %v656 = vld [vmem:[%s2 + $0x19c] sm:$0xf]
        %v657 = vld [vmem:[%s2 + $0x1a0] sm:$0xf]
        %v658 = vld [vmem:[%s2 + $0x1a4] sm:$0xf]
        %v659 = vld [vmem:[%s2 + $0x1a8] sm:$0xf]
        %v660 = vld [vmem:[%s2 + $0x1ac] sm:$0xf]
        %v661 = vld [vmem:[%s2 + $0x1b0] sm:$0xf]
        %v662 = vld [vmem:[%s2 + $0x1b4] sm:$0xf]
        %v663 = vld [vmem:[%s2 + $0x1b8] sm:$0xf]
        %v664 = vld [vmem:[%s2 + $0x1bc] sm:$0xf]
        %v665 = vld [vmem:[%s2 + $0x1c0] sm:$0xf]
        %v666 = vld [vmem:[%s2 + $0x1c4] sm:$0xf]
        %v667 = vld [vmem:[%s2 + $0x1c8] sm:$0xf]
        %v668 = vld [vmem:[%s2 + $0x1cc] sm:$0xf]
        %v669 = vld [vmem:[%s2 + $0x1d0] sm:$0xf]
        %v670 = vld [vmem:[%s2 + $0x1d4] sm:$0xf]
        %v671 = vld [vmem:[%s2 + $0x1d8] sm:$0xf]
        %v672 = vld [vmem:[%s2 + $0x1dc] sm:$0xf]
        %v673 = vld [vmem:[%s2 + $0x1e0] sm:$0xf]
        %v674 = vld [vmem:[%s2 + $0x1e4] sm:$0xf]
        %v675 = vld [vmem:[%s2 + $0x1e8] sm:$0xf]
        %v676 = vld [vmem:[%s2 + $0x1ec] sm:$0xf]
        %v677 = vld [vmem:[%s2 + $0x1f0] sm:$0xf]
        %v678 = vld [vmem:[%s2 + $0x1f4] sm:$0xf]
        %v679 = vld [vmem:[%s2 + $0x1f8] sm:$0xf]
        %v680 = vld [vmem:[%s2 + $0x1fc] sm:$0xf]
        %v681 = vld [vmem:[%s2 + $0x200] sm:$0xf]
        %v682 = vld [vmem:[%s2 + $0x204] sm:$0xf]
        %v683 = vld [vmem:[%s2 + $0x208] sm:$0xf]
        %v684 = vld [vmem:[%s2 + $0x20c] sm:$0xf]
        %v685 = vld [vmem:[%s2 + $0x210] sm:$0xf]
        %v686 = vld [vmem:[%s2 + $0x214] sm:$0xf]
        %v687 = vld [vmem:[%s2 + $0x218] sm:$0xf]
        %v688 = vld [vmem:[%s2 + $0x21c] sm:$0xf]
        %v689 = vld [vmem:[%s2 + $0x220] sm:$0xf]
        %v690 = vld [vmem:[%s2 + $0x224] sm:$0xf]
        %v691 = vld [vmem:[%s2 + $0x228] sm:$0xf]
        %v692 = vld [vmem:[%s2 + $0x22c] sm:$0xf]
        %v693 = vld [vmem:[%s2 + $0x230] sm:$0xf]
        %v694 = vld [vmem:[%s2 + $0x234] sm:$0xf]
        %v695 = vld [vmem:[%s2 + $0x238] sm:$0xf]
        %v696 = vld [vmem:[%s2 + $0x23c] sm:$0xf]
        %v697 = vld [vmem:[%s2 + $0x240] sm:$0xf]
        %v698 = vld [vmem:[%s2 + $0x244] sm:$0xf]
        %v699 = vld [vmem:[%s2 + $0x248] sm:$0xf]
        %v700 = vld [vmem:[%s2 + $0x24c] sm:$0xf]
        %v701 = vld [vmem:[%s2 + $0x250] sm:$0xf]
        %v702 = vld [vmem:[%s2 + $0x254] sm:$0xf]
        %v703 = vld [vmem:[%s2 + $0x258] sm:$0xf]
        %v704 = vld [vmem:[%s2 + $0x25c] sm:$0xf]
        %v705 = vld [vmem:[%s2 + $0x260] sm:$0xf]
        %v706 = vld [vmem:[%s2 + $0x264] sm:$0xf]
        %v707 = vld [vmem:[%s2 + $0x268] sm:$0xf]
        %v708 = vld [vmem:[%s2 + $0x26c] sm:$0xf]
        %v709 = vld [vmem:[%s2 + $0x270] sm:$0xf]
        %v710 = vld [vmem:[%s2 + $0x274] sm:$0xf]
        %v711 = vld [vmem:[%s2 + $0x278] sm:$0xf]
        %v712 = vld [vmem:[%s2 + $0x27c] sm:$0xf]
        %v713 = vld [vmem:[%s2 + $0x280] sm:$0xf]
        %v714 = vld [vmem:[%s2 + $0x284] sm:$0xf]
        %v715 = vld [vmem:[%s2 + $0x288] sm:$0xf]
        %v716 = vld [vmem:[%s2 + $0x28c] sm:$0xf]
        %v717 = vld [vmem:[%s2 + $0x290] sm:$0xf]
        %v718 = vld [vmem:[%s2 + $0x294] sm:$0xf]
        %v719 = vld [vmem:[%s2 + $0x298] sm:$0xf]
        %v720 = vld [vmem:[%s2 + $0x29c] sm:$0xf]
        %v721 = vld [vmem:[%s2 + $0x2a0] sm:$0xf]
        %v722 = vld [vmem:[%s2 + $0x2a4] sm:$0xf]
        %v723 = vld [vmem:[%s2 + $0x2a8] sm:$0xf]
        %v724 = vld [vmem:[%s2 + $0x2ac] sm:$0xf]
        %v725 = vld [vmem:[%s2 + $0x2b0] sm:$0xf]
        %v726 = vld [vmem:[%s2 + $0x2b4] sm:$0xf]
        %v727 = vld [vmem:[%s2 + $0x2b8] sm:$0xf]
        %v728 = vld [vmem:[%s2 + $0x2bc] sm:$0xf]
        %v729 = vld [vmem:[%s2 + $0x2c0] sm:$0xf]
        %v730 = vld [vmem:[%s2 + $0x2c4] sm:$0xf]
        %v731 = vld [vmem:[%s2 + $0x2c8] sm:$0xf]
        %v732 = vld [vmem:[%s2 + $0x2cc] sm:$0xf]
        %v733 = vld [vmem:[%s2 + $0x2d0] sm:$0xf]
        %v734 = vld [vmem:[%s2 + $0x2d4] sm:$0xf]
        %v735 = vld [vmem:[%s2 + $0x2d8] sm:$0xf]
        %v736 = vld [vmem:[%s2 + $0x2dc] sm:$0xf]
        %v737 = vld [vmem:[%s2 + $0x2e0] sm:$0xf]
        %v738 = vld [vmem:[%s2 + $0x2e4] sm:$0xf]
        %v739 = vld [vmem:[%s2 + $0x2e8] sm:$0xf]
        %v740 = vld [vmem:[%s2 + $0x2ec] sm:$0xf]
        %v741 = vld [vmem:[%s2 + $0x2f0] sm:$0xf]
        %v742 = vld [vmem:[%s2 + $0x2f4] sm:$0xf]
        %v743 = vld [vmem:[%s2 + $0x2f8] sm:$0xf]
        %v744 = vld [vmem:[%s2 + $0x2fc] sm:$0xf]
        %v745 = vld [vmem:[%s2 + $0x300] sm:$0xf]
        %v746 = vld [vmem:[%s2 + $0x304] sm:$0xf]
        %v747 = vld [vmem:[%s2 + $0x308] sm:$0xf]
        %v748 = vld [vmem:[%s2 + $0x30c] sm:$0xf]
        %v749 = vld [vmem:[%s2 + $0x310] sm:$0xf]
        %v750 = vld [vmem:[%s2 + $0x314] sm:$0xf]
        %v751 = vld [vmem:[%s2 + $0x318] sm:$0xf]
        %v752 = vld [vmem:[%s2 + $0x31c] sm:$0xf]
        %v753 = vld [vmem:[%s2 + $0x320] sm:$0xf]
        %v754 = vld [vmem:[%s2 + $0x324] sm:$0xf]
        %v755 = vld [vmem:[%s2 + $0x328] sm:$0xf]
        %v756 = vld [vmem:[%s2 + $0x32c] sm:$0xf]
        %v757 = vld [vmem:[%s2 + $0x330] sm:$0xf]
        %v758 = vld [vmem:[%s2 + $0x334] sm:$0xf]
        %v759 = vld [vmem:[%s2 + $0x338] sm:$0xf]
        %v760 = vld [vmem:[%s2 + $0x33c] sm:$0xf]
        %v761 = vld [vmem:[%s2 + $0x340] sm:$0xf]
        %v762 = vld [vmem:[%s2 + $0x344] sm:$0xf]
        %v763 = vld [vmem:[%s2 + $0x348] sm:$0xf]
        %v764 = vld [vmem:[%s2 + $0x34c] sm:$0xf]
        %v765 = vld [vmem:[%s2 + $0x350] sm:$0xf]
        %v766 = vld [vmem:[%s2 + $0x354] sm:$0xf]
        %v767 = vld [vmem:[%s2 + $0x358] sm:$0xf]
        %v768 = vld [vmem:[%s2 + $0x35c] sm:$0xf]
        %v769 = vld [vmem:[%s2 + $0x360] sm:$0xf]
        %v770 = vld [vmem:[%s2 + $0x364] sm:$0xf]
        %v771 = vld [vmem:[%s2 + $0x368] sm:$0xf]
        %v772 = vld [vmem:[%s2 + $0x36c] sm:$0xf]
        %v773 = vld [vmem:[%s2 + $0x370] sm:$0xf]
        %v774 = vld [vmem:[%s2 + $0x374] sm:$0xf]
        %v775 = vld [vmem:[%s2 + $0x378] sm:$0xf]
        %v776 = vld [vmem:[%s2 + $0x37c] sm:$0xf]
        %v777 = vld [vmem:[%s2 + $0x380] sm:$0xf]
        %v778 = vld [vmem:[%s2 + $0x384] sm:$0xf]
        %v779 = vld [vmem:[%s2 + $0x388] sm:$0xf]
        %v780 = vld [vmem:[%s2 + $0x38c] sm:$0xf]
        %v781 = vld [vmem:[%s2 + $0x390] sm:$0xf]
        %v782 = vld [vmem:[%s2 + $0x394] sm:$0xf]
        %v783 = vld [vmem:[%s2 + $0x398] sm:$0xf]
        %v784 = vld [vmem:[%s2 + $0x39c] sm:$0xf]
        %v785 = vld [vmem:[%s2 + $0x3a0] sm:$0xf]
        %v786 = vld [vmem:[%s2 + $0x3a4] sm:$0xf]
        %v787 = vld [vmem:[%s2 + $0x3a8] sm:$0xf]
        %v788 = vld [vmem:[%s2 + $0x3ac] sm:$0xf]
        %v789 = vld [vmem:[%s2 + $0x3b0] sm:$0xf]
        %v790 = vld [vmem:[%s2 + $0x3b4] sm:$0xf]
        %v791 = vld [vmem:[%s2 + $0x3b8] sm:$0xf]
        %v792 = vld [vmem:[%s2 + $0x3bc] sm:$0xf]
        %v793 = vld [vmem:[%s2 + $0x3c0] sm:$0xf]
        %v794 = vld [vmem:[%s2 + $0x3c4] sm:$0xf]
        %v795 = vld [vmem:[%s2 + $0x3c8] sm:$0xf]
        %v796 = vld [vmem:[%s2 + $0x3cc] sm:$0xf]
        %v797 = vld [vmem:[%s2 + $0x3d0] sm:$0xf]
        %v798 = vld [vmem:[%s2 + $0x3d4] sm:$0xf]
        %v799 = vld [vmem:[%s2 + $0x3d8] sm:$0xf]
        %v800 = vld [vmem:[%s2 + $0x3dc] sm:$0xf]
        %v801 = vld [vmem:[%s2 + $0x3e0] sm:$0xf]
        %v802 = vld [vmem:[%s2 + $0x3e4] sm:$0xf]
        %v803 = vld [vmem:[%s2 + $0x3e8] sm:$0xf]
        %v804 = vld [vmem:[%s2 + $0x3ec] sm:$0xf]
        %v805 = vld [vmem:[%s2 + $0x3f0] sm:$0xf]
        %v806 = vld [vmem:[%s2 + $0x3f4] sm:$0xf]
        %v807 = vld [vmem:[%s2 + $0x3f8] sm:$0xf]
        %v808 = vld [vmem:[%s2 + $0x3fc] sm:$0xf]
        %v809 = vld [vmem:[%s2 + $0x400] sm:$0xf]
        %v810 = vld [vmem:[%s2 + $0x404] sm:$0xf]
        %v811 = vld [vmem:[%s2 + $0x408] sm:$0xf]
        %v812 = vld [vmem:[%s2 + $0x40c] sm:$0xf]
        %v813 = vld [vmem:[%s2 + $0x410] sm:$0xf]
        %v814 = vld [vmem:[%s2 + $0x414] sm:$0xf]
        %v815 = vld [vmem:[%s2 + $0x418] sm:$0xf]
        %v816 = vld [vmem:[%s2 + $0x41c] sm:$0xf]
        %v817 = vld [vmem:[%s2 + $0x420] sm:$0xf]
        %v818 = vld [vmem:[%s2 + $0x424] sm:$0xf]
        %v819 = vld [vmem:[%s2 + $0x428] sm:$0xf]
        %v820 = vld [vmem:[%s2 + $0x42c] sm:$0xf]
        %v821 = vld [vmem:[%s2 + $0x430] sm:$0xf]
        %v822 = vld [vmem:[%s2 + $0x434] sm:$0xf]
        %v823 = vld [vmem:[%s2 + $0x438] sm:$0xf]
        %v824 = vld [vmem:[%s2 + $0x43c] sm:$0xf]
        %v825 = vld [vmem:[%s2 + $0x440] sm:$0xf]
        %v826 = vld [vmem:[%s2 + $0x444] sm:$0xf]
        %v827 = vld [vmem:[%s2 + $0x448] sm:$0xf]
        %v828 = vld [vmem:[%s2 + $0x44c] sm:$0xf]
        %v829 = vld [vmem:[%s2 + $0x450] sm:$0xf]
        %v830 = vld [vmem:[%s2 + $0x454] sm:$0xf]
        %v831 = vld [vmem:[%s2 + $0x458] sm:$0xf]
        %v832 = vld [vmem:[%s2 + $0x45c] sm:$0xf]
        %v833 = vld [vmem:[%s2 + $0x460] sm:$0xf]
        %v834 = vld [vmem:[%s2 + $0x464] sm:$0xf]
        %v835 = vld [vmem:[%s2 + $0x468] sm:$0xf]
        %v836 = vld [vmem:[%s2 + $0x46c] sm:$0xf]
        %v837 = vld [vmem:[%s2 + $0x470] sm:$0xf]
        %v838 = vld [vmem:[%s2 + $0x474] sm:$0xf]
        %v839 = vld [vmem:[%s2 + $0x478] sm:$0xf]
        %v840 = vld [vmem:[%s2 + $0x47c] sm:$0xf]
        %v841 = vld [vmem:[%s2 + $0x480] sm:$0xf]
        %v842 = vld [vmem:[%s2 + $0x484] sm:$0xf]
        %v843 = vld [vmem:[%s2 + $0x488] sm:$0xf]
        %v844 = vld [vmem:[%s2 + $0x48c] sm:$0xf]
        %v845 = vld [vmem:[%s2 + $0x490] sm:$0xf]
        %v846 = vld [vmem:[%s2 + $0x494] sm:$0xf]
        %v847 = vld [vmem:[%s2 + $0x498] sm:$0xf]
        %v848 = vld [vmem:[%s2 + $0x49c] sm:$0xf]
        %v849 = vld [vmem:[%s2 + $0x4a0] sm:$0xf]
        %v850 = vld [vmem:[%s2 + $0x4a4] sm:$0xf]
        %v851 = vld [vmem:[%s2 + $0x4a8] sm:$0xf]
        %v852 = vld [vmem:[%s2 + $0x4ac] sm:$0xf]
        %v853 = vld [vmem:[%s2 + $0x4b0] sm:$0xf]
        %v854 = vld [vmem:[%s2 + $0x4b4] sm:$0xf]
        %v855 = vld [vmem:[%s2 + $0x4b8] sm:$0xf]
        %v856 = vld [vmem:[%s2 + $0x4bc] sm:$0xf]
        %v857 = vld [vmem:[%s2 + $0x4c0] sm:$0xf]
        %v858 = vld [vmem:[%s2 + $0x4c4] sm:$0xf]
        %v859 = vld [vmem:[%s2 + $0x4c8] sm:$0xf]
        %v860 = vld [vmem:[%s2 + $0x4cc] sm:$0xf]
        %v861 = vld [vmem:[%s2 + $0x4d0] sm:$0xf]
        %v862 = vld [vmem:[%s2 + $0x4d4] sm:$0xf]
        %v863 = vld [vmem:[%s2 + $0x4d8] sm:$0xf]
        %v864 = vld [vmem:[%s2 + $0x4dc] sm:$0xf]
        %v865 = vld [vmem:[%s2 + $0x4e0] sm:$0xf]
        %v866 = vld [vmem:[%s2 + $0x4e4] sm:$0xf]
        %v867 = vld [vmem:[%s2 + $0x4e8] sm:$0xf]
        %v868 = vld [vmem:[%s2 + $0x4ec] sm:$0xf]
        %v869 = vld [vmem:[%s2 + $0x4f0] sm:$0xf]
        %v870 = vld [vmem:[%s2 + $0x4f4] sm:$0xf]
        %v871 = vld [vmem:[%s2 + $0x4f8] sm:$0xf]
        %v872 = vld [vmem:[%s2 + $0x4fc] sm:$0xf]
        %v873 = vld [vmem:[%s2 + $0x500] sm:$0xf]
        %v874 = vld [vmem:[%s2 + $0x504] sm:$0xf]
        %v875 = vld [vmem:[%s2 + $0x508] sm:$0xf]
        %v876 = vld [vmem:[%s2 + $0x50c] sm:$0xf]
        %v877 = vld [vmem:[%s2 + $0x510] sm:$0xf]
        %v878 = vld [vmem:[%s2 + $0x514] sm:$0xf]
        %v879 = vld [vmem:[%s2 + $0x518] sm:$0xf]
        %v880 = vld [vmem:[%s2 + $0x51c] sm:$0xf]
        %v881 = vld [vmem:[%s2 + $0x520] sm:$0xf]
        %v882 = vld [vmem:[%s2 + $0x524] sm:$0xf]
        %v883 = vld [vmem:[%s2 + $0x528] sm:$0xf]
        %v884 = vld [vmem:[%s2 + $0x52c] sm:$0xf]
        %v885 = vld [vmem:[%s2 + $0x530] sm:$0xf]
        %v886 = vld [vmem:[%s2 + $0x534] sm:$0xf]
        %v887 = vld [vmem:[%s2 + $0x538] sm:$0xf]
        %v888 = vld [vmem:[%s2 + $0x53c] sm:$0xf]
        %v889 = vld [vmem:[%s2 + $0x540] sm:$0xf]
        %v890 = vld [vmem:[%s2 + $0x544] sm:$0xf]
        %v891 = vld [vmem:[%s2 + $0x548] sm:$0xf]
        %v892 = vld [vmem:[%s2 + $0x54c] sm:$0xf]
        %v893 = vld [vmem:[%s2 + $0x550] sm:$0xf]
        %v894 = vld [vmem:[%s2 + $0x554] sm:$0xf]
        %v895 = vld [vmem:[%s2 + $0x558] sm:$0xf]
        %v896 = vld [vmem:[%s2 + $0x55c] sm:$0xf]
        %v897 = vld [vmem:[%s2 + $0x560] sm:$0xf]
        %v898 = vld [vmem:[%s2 + $0x564] sm:$0xf]
        %v899 = vld [vmem:[%s2 + $0x568] sm:$0xf]
        %v900 = vld [vmem:[%s2 + $0x56c] sm:$0xf]
        %v901 = vld [vmem:[%s2 + $0x570] sm:$0xf]
        %v902 = vld [vmem:[%s2 + $0x574] sm:$0xf]
        %v903 = vld [vmem:[%s2 + $0x578] sm:$0xf]
        %v904 = vld [vmem:[%s2 + $0x57c] sm:$0xf]
        %v905 = vld [vmem:[%s2 + $0x580] sm:$0xf]
        %v906 = vld [vmem:[%s2 + $0x584] sm:$0xf]
        %v907 = vld [vmem:[%s2 + $0x588] sm:$0xf]
        %v908 = vld [vmem:[%s2 + $0x58c] sm:$0xf]
        %v909 = vld [vmem:[%s2 + $0x590] sm:$0xf]
        %v910 = vld [vmem:[%s2 + $0x594] sm:$0xf]
        %v911 = vld [vmem:[%s2 + $0x598] sm:$0xf]
        %v912 = vld [vmem:[%s2 + $0x59c] sm:$0xf]
        %v913 = vld [vmem:[%s2 + $0x5a0] sm:$0xf]
        %v914 = vld [vmem:[%s2 + $0x5a4] sm:$0xf]
        %v915 = vld [vmem:[%s2 + $0x5a8] sm:$0xf]
        %v916 = vld [vmem:[%s2 + $0x5ac] sm:$0xf]
        %v917 = vld [vmem:[%s2 + $0x5b0] sm:$0xf]
        %v918 = vld [vmem:[%s2 + $0x5b4] sm:$0xf]
        %v919 = vld [vmem:[%s2 + $0x5b8] sm:$0xf]
        %v920 = vld [vmem:[%s2 + $0x5bc] sm:$0xf]
        %v921 = vld [vmem:[%s2 + $0x5c0] sm:$0xf]
        %v922 = vld [vmem:[%s2 + $0x5c4] sm:$0xf]
        %v923 = vld [vmem:[%s2 + $0x5c8] sm:$0xf]
        %v924 = vld [vmem:[%s2 + $0x5cc] sm:$0xf]
        %v925 = vld [vmem:[%s2 + $0x5d0] sm:$0xf]
        %v926 = vld [vmem:[%s2 + $0x5d4] sm:$0xf]
        %v927 = vld [vmem:[%s2 + $0x5d8] sm:$0xf]
        %v928 = vld [vmem:[%s2 + $0x5dc] sm:$0xf]
        %v929 = vld [vmem:[%s2 + $0x5e0] sm:$0xf]
        %v930 = vld [vmem:[%s2 + $0x5e4] sm:$0xf]
        %v931 = vld [vmem:[%s2 + $0x5e8] sm:$0xf]
        %v932 = vld [vmem:[%s2 + $0x5ec] sm:$0xf]
        %v933 = vld [vmem:[%s2 + $0x5f0] sm:$0xf]
        %v934 = vld [vmem:[%s2 + $0x5f4] sm:$0xf]
        %v935 = vld [vmem:[%s2 + $0x5f8] sm:$0xf]
        %v936 = vld [vmem:[%s2 + $0x5fc] sm:$0xf]
        %v943 = vcombine.high %v547, %v547
        %v945 = vunpack.c.l.s4 1983009808
        %v946 = vunpack.c.0.s8 %v945
        %v947 = vlaneseq
        %v948 = vshrl.u32 %v947, 7
        %v949 = vsub.s32 %v946, %v948
        %v950 = vrot.slane %v547, %v949
        %v952 = vunpack.c.l.s4 1983009808
        %v953 = vunpack.c.0.s8 %v952
        %v954 = vlaneseq
        %v955 = vshrl.u32 %v954, 7
        %v956 = vsub.s32 %v953, %v955
        %v957 = vrot.slane %v943, %v956
        %v958 = vcombine.high %v950, %v950
        %v959 = vcombine.high %v957, %v957
        %v960 = vcombine.high %v548, %v548
        %v962 = vunpack.c.l.s4 1983009808
        %v963 = vunpack.c.0.s8 %v962
        %v964 = vlaneseq
        %v965 = vshrl.u32 %v964, 7
        %v966 = vsub.s32 %v963, %v965
        %v967 = vrot.slane %v548, %v966
        %v969 = vunpack.c.l.s4 1983009808
        %v970 = vunpack.c.0.s8 %v969
        %v971 = vlaneseq
        %v972 = vshrl.u32 %v971, 7
        %v973 = vsub.s32 %v970, %v972
        %v974 = vrot.slane %v960, %v973
        %v975 = vcombine.high %v967, %v967
        %v976 = vcombine.high %v974, %v974
        %v977 = vcombine.high %v549, %v549
        %v979 = vunpack.c.l.s4 1983009808
        %v980 = vunpack.c.0.s8 %v979
        %v981 = vlaneseq
        %v982 = vshrl.u32 %v981, 7
        %v983 = vsub.s32 %v980, %v982
        %v984 = vrot.slane %v549, %v983
        %v986 = vunpack.c.l.s4 1983009808
        %v987 = vunpack.c.0.s8 %v986
        %v988 = vlaneseq
        %v989 = vshrl.u32 %v988, 7
        %v990 = vsub.s32 %v987, %v989
        %v991 = vrot.slane %v977, %v990
        %v992 = vcombine.high %v984, %v984
        %v993 = vcombine.high %v991, %v991
        %v994 = vcombine.high %v550, %v550
        %v996 = vunpack.c.l.s4 1983009808
        %v997 = vunpack.c.0.s8 %v996
        %v998 = vlaneseq
        %v999 = vshrl.u32 %v998, 7
        %v1000 = vsub.s32 %v997, %v999
        %v1001 = vrot.slane %v550, %v1000
        %v1003 = vunpack.c.l.s4 1983009808
        %v1004 = vunpack.c.0.s8 %v1003
        %v1005 = vlaneseq
        %v1006 = vshrl.u32 %v1005, 7
        %v1007 = vsub.s32 %v1004, %v1006
        %v1008 = vrot.slane %v994, %v1007
        %v1009 = vcombine.high %v1001, %v1001
        %v1010 = vcombine.high %v1008, %v1008
        %v1011 = vcombine.high %v551, %v551
        %v1013 = vunpack.c.l.s4 1983009808
        %v1014 = vunpack.c.0.s8 %v1013
        %v1015 = vlaneseq
        %v1016 = vshrl.u32 %v1015, 7
        %v1017 = vsub.s32 %v1014, %v1016
        %v1018 = vrot.slane %v551, %v1017
        %v1020 = vunpack.c.l.s4 1983009808
        %v1021 = vunpack.c.0.s8 %v1020
        %v1022 = vlaneseq
        %v1023 = vshrl.u32 %v1022, 7
        %v1024 = vsub.s32 %v1021, %v1023
        %v1025 = vrot.slane %v1011, %v1024
        %v1026 = vcombine.high %v1018, %v1018
        %v1027 = vcombine.high %v1025, %v1025
        %v1028 = vcombine.high %v552, %v552
        %v1030 = vunpack.c.l.s4 1983009808
        %v1031 = vunpack.c.0.s8 %v1030
        %v1032 = vlaneseq
        %v1033 = vshrl.u32 %v1032, 7
        %v1034 = vsub.s32 %v1031, %v1033
        %v1035 = vrot.slane %v552, %v1034
        %v1037 = vunpack.c.l.s4 1983009808
        %v1038 = vunpack.c.0.s8 %v1037
        %v1039 = vlaneseq
        %v1040 = vshrl.u32 %v1039, 7
        %v1041 = vsub.s32 %v1038, %v1040
        %v1042 = vrot.slane %v1028, %v1041
        %v1043 = vcombine.high %v1035, %v1035
        %v1044 = vcombine.high %v1042, %v1042
        %v1453 = vunpack.c.l.b16 %v553
        %v1454 = vunpack.c.l.b16 %v554
        %v1455 = vunpack.c.l.b16 %v555
        %v1456 = vunpack.c.l.b16 %v556
        %v1457 = vunpack.c.l.b16 %v557
        %v1458 = vunpack.c.l.b16 %v558
        %v1459 = vunpack.c.l.b16 %v559
        %v1460 = vunpack.c.l.b16 %v560
        %v1461 = vunpack.c.l.b16 %v561
        %v1462 = vunpack.c.l.b16 %v562
        %v1463 = vunpack.c.l.b16 %v563
        %v1464 = vunpack.c.l.b16 %v564
        %v1465 = vunpack.c.l.b16 %v565
        %v1466 = vunpack.c.l.b16 %v566
        %v1467 = vunpack.c.l.b16 %v567
        %v1468 = vunpack.c.l.b16 %v568
        %v1469 = vunpack.c.l.b16 %v569
        %v1470 = vunpack.c.l.b16 %v570
        %v1471 = vunpack.c.l.b16 %v571
        %v1472 = vunpack.c.l.b16 %v572
        %v1473 = vunpack.c.l.b16 %v573
        %v1474 = vunpack.c.l.b16 %v574
        %v1475 = vunpack.c.l.b16 %v575
        %v1476 = vunpack.c.l.b16 %v576
        %v1477 = vunpack.c.l.b16 %v577
        %v1478 = vunpack.c.l.b16 %v578
        %v1479 = vunpack.c.l.b16 %v579
        %v1480 = vunpack.c.l.b16 %v580
        %v1481 = vunpack.c.l.b16 %v581
        %v1482 = vunpack.c.l.b16 %v582
        %v1483 = vunpack.c.l.b16 %v583
        %v1484 = vunpack.c.l.b16 %v584
        %v1485 = vunpack.c.l.b16 %v585
        %v1486 = vunpack.c.l.b16 %v586
        %v1487 = vunpack.c.l.b16 %v587
        %v1488 = vunpack.c.l.b16 %v588
        %v1489 = vunpack.c.l.b16 %v589
        %v1490 = vunpack.c.l.b16 %v590
        %v1491 = vunpack.c.l.b16 %v591
        %v1492 = vunpack.c.l.b16 %v592
        %v1493 = vunpack.c.l.b16 %v593
        %v1494 = vunpack.c.l.b16 %v594
        %v1495 = vunpack.c.l.b16 %v595
        %v1496 = vunpack.c.l.b16 %v596
        %v1497 = vunpack.c.l.b16 %v597
        %v1498 = vunpack.c.l.b16 %v598
        %v1499 = vunpack.c.l.b16 %v599
        %v1500 = vunpack.c.l.b16 %v600
        %v1501 = vunpack.c.l.b16 %v601
        %v1502 = vunpack.c.l.b16 %v602
        %v1503 = vunpack.c.l.b16 %v603
        %v1504 = vunpack.c.l.b16 %v604
        %v1505 = vunpack.c.l.b16 %v605
        %v1506 = vunpack.c.l.b16 %v606
        %v1507 = vunpack.c.l.b16 %v607
        %v1508 = vunpack.c.l.b16 %v608
        %v1509 = vunpack.c.l.b16 %v609
        %v1510 = vunpack.c.l.b16 %v610
        %v1511 = vunpack.c.l.b16 %v611
        %v1512 = vunpack.c.l.b16 %v612
        %v1513 = vunpack.c.l.b16 %v613
        %v1514 = vunpack.c.l.b16 %v614
        %v1515 = vunpack.c.l.b16 %v615
        %v1516 = vunpack.c.l.b16 %v616
        %v1517 = vunpack.c.l.b16 %v617
        %v1518 = vunpack.c.l.b16 %v618
        %v1519 = vunpack.c.l.b16 %v619
        %v1520 = vunpack.c.l.b16 %v620
        %v1521 = vunpack.c.l.b16 %v621
        %v1522 = vunpack.c.l.b16 %v622
        %v1523 = vunpack.c.l.b16 %v623
        %v1524 = vunpack.c.l.b16 %v624
        %v1525 = vunpack.c.l.b16 %v625
        %v1526 = vunpack.c.l.b16 %v626
        %v1527 = vunpack.c.l.b16 %v627
        %v1528 = vunpack.c.l.b16 %v628
        %v1529 = vunpack.c.l.b16 %v629
        %v1530 = vunpack.c.l.b16 %v630
        %v1531 = vunpack.c.l.b16 %v631
        %v1532 = vunpack.c.l.b16 %v632
        %v1533 = vunpack.c.l.b16 %v633
        %v1534 = vunpack.c.l.b16 %v634
        %v1535 = vunpack.c.l.b16 %v635
        %v1536 = vunpack.c.l.b16 %v636
        %v1537 = vunpack.c.l.b16 %v637
        %v1538 = vunpack.c.l.b16 %v638
        %v1539 = vunpack.c.l.b16 %v639
        %v1540 = vunpack.c.l.b16 %v640
        %v1541 = vunpack.c.l.b16 %v641
        %v1542 = vunpack.c.l.b16 %v642
        %v1543 = vunpack.c.l.b16 %v643
        %v1544 = vunpack.c.l.b16 %v644
        %v1545 = vunpack.c.l.b16 %v645
        %v1546 = vunpack.c.l.b16 %v646
        %v1547 = vunpack.c.l.b16 %v647
        %v1548 = vunpack.c.l.b16 %v648
        %v1549 = vunpack.c.l.b16 %v649
        %v1550 = vunpack.c.l.b16 %v650
        %v1551 = vunpack.c.l.b16 %v651
        %v1552 = vunpack.c.l.b16 %v652
        %v1553 = vunpack.c.l.b16 %v653
        %v1554 = vunpack.c.l.b16 %v654
        %v1555 = vunpack.c.l.b16 %v655
        %v1556 = vunpack.c.l.b16 %v656
        %v1557 = vunpack.c.l.b16 %v657
        %v1558 = vunpack.c.l.b16 %v658
        %v1559 = vunpack.c.l.b16 %v659
        %v1560 = vunpack.c.l.b16 %v660
        %v1561 = vunpack.c.l.b16 %v661
        %v1562 = vunpack.c.l.b16 %v662
        %v1563 = vunpack.c.l.b16 %v663
        %v1564 = vunpack.c.l.b16 %v664
        %v1565 = vunpack.c.l.b16 %v665
        %v1566 = vunpack.c.l.b16 %v666
        %v1567 = vunpack.c.l.b16 %v667
        %v1568 = vunpack.c.l.b16 %v668
        %v1569 = vunpack.c.l.b16 %v669
        %v1570 = vunpack.c.l.b16 %v670
        %v1571 = vunpack.c.l.b16 %v671
        %v1572 = vunpack.c.l.b16 %v672
        %v1573 = vunpack.c.l.b16 %v673
        %v1574 = vunpack.c.l.b16 %v674
        %v1575 = vunpack.c.l.b16 %v675
        %v1576 = vunpack.c.l.b16 %v676
        %v1577 = vunpack.c.l.b16 %v677
        %v1578 = vunpack.c.l.b16 %v678
        %v1579 = vunpack.c.l.b16 %v679
        %v1580 = vunpack.c.l.b16 %v680
        %v1581 = vunpack.c.l.b16 %v681
        %v1582 = vunpack.c.l.b16 %v682
        %v1583 = vunpack.c.l.b16 %v683
        %v1584 = vunpack.c.l.b16 %v684
        %v1585 = vunpack.c.l.b16 %v685
        %v1586 = vunpack.c.l.b16 %v686
        %v1587 = vunpack.c.l.b16 %v687
        %v1588 = vunpack.c.l.b16 %v688
        %v1589 = vunpack.c.l.b16 %v689
        %v1590 = vunpack.c.l.b16 %v690
        %v1591 = vunpack.c.l.b16 %v691
        %v1592 = vunpack.c.l.b16 %v692
        %v1593 = vunpack.c.l.b16 %v693
        %v1594 = vunpack.c.l.b16 %v694
        %v1595 = vunpack.c.l.b16 %v695
        %v1596 = vunpack.c.l.b16 %v696
        %v1597 = vunpack.c.l.b16 %v697
        %v1598 = vunpack.c.l.b16 %v698
        %v1599 = vunpack.c.l.b16 %v699
        %v1600 = vunpack.c.l.b16 %v700
        %v1601 = vunpack.c.l.b16 %v701
        %v1602 = vunpack.c.l.b16 %v702
        %v1603 = vunpack.c.l.b16 %v703
        %v1604 = vunpack.c.l.b16 %v704
        %v1605 = vunpack.c.l.b16 %v705
        %v1606 = vunpack.c.l.b16 %v706
        %v1607 = vunpack.c.l.b16 %v707
        %v1608 = vunpack.c.l.b16 %v708
        %v1609 = vunpack.c.l.b16 %v709
        %v1610 = vunpack.c.l.b16 %v710
        %v1611 = vunpack.c.l.b16 %v711
        %v1612 = vunpack.c.l.b16 %v712
        %v1613 = vunpack.c.l.b16 %v713
        %v1614 = vunpack.c.l.b16 %v714
        %v1615 = vunpack.c.l.b16 %v715
        %v1616 = vunpack.c.l.b16 %v716
        %v1617 = vunpack.c.l.b16 %v717
        %v1618 = vunpack.c.l.b16 %v718
        %v1619 = vunpack.c.l.b16 %v719
        %v1620 = vunpack.c.l.b16 %v720
        %v1621 = vunpack.c.l.b16 %v721
        %v1622 = vunpack.c.l.b16 %v722
        %v1623 = vunpack.c.l.b16 %v723
        %v1624 = vunpack.c.l.b16 %v724
        %v1625 = vunpack.c.l.b16 %v725
        %v1626 = vunpack.c.l.b16 %v726
        %v1627 = vunpack.c.l.b16 %v727
        %v1628 = vunpack.c.l.b16 %v728
        %v1629 = vunpack.c.l.b16 %v729
        %v1630 = vunpack.c.l.b16 %v730
        %v1631 = vunpack.c.l.b16 %v731
        %v1632 = vunpack.c.l.b16 %v732
        %v1633 = vunpack.c.l.b16 %v733
        %v1634 = vunpack.c.l.b16 %v734
        %v1635 = vunpack.c.l.b16 %v735
        %v1636 = vunpack.c.l.b16 %v736
        %v1637 = vunpack.c.l.b16 %v737
        %v1638 = vunpack.c.l.b16 %v738
        %v1639 = vunpack.c.l.b16 %v739
        %v1640 = vunpack.c.l.b16 %v740
        %v1641 = vunpack.c.l.b16 %v741
        %v1642 = vunpack.c.l.b16 %v742
        %v1643 = vunpack.c.l.b16 %v743
        %v1644 = vunpack.c.l.b16 %v744
        %v1645 = vunpack.c.l.b16 %v745
        %v1646 = vunpack.c.l.b16 %v746
        %v1647 = vunpack.c.l.b16 %v747
        %v1648 = vunpack.c.l.b16 %v748
        %v1649 = vunpack.c.l.b16 %v749
        %v1650 = vunpack.c.l.b16 %v750
        %v1651 = vunpack.c.l.b16 %v751
        %v1652 = vunpack.c.l.b16 %v752
        %v1653 = vunpack.c.l.b16 %v753
        %v1654 = vunpack.c.l.b16 %v754
        %v1655 = vunpack.c.l.b16 %v755
        %v1656 = vunpack.c.l.b16 %v756
        %v1657 = vunpack.c.l.b16 %v757
        %v1658 = vunpack.c.l.b16 %v758
        %v1659 = vunpack.c.l.b16 %v759
        %v1660 = vunpack.c.l.b16 %v760
        %v1661 = vunpack.c.l.b16 %v761
        %v1662 = vunpack.c.l.b16 %v762
        %v1663 = vunpack.c.l.b16 %v763
        %v1664 = vunpack.c.l.b16 %v764
        %v1665 = vunpack.c.l.b16 %v765
        %v1666 = vunpack.c.l.b16 %v766
        %v1667 = vunpack.c.l.b16 %v767
        %v1668 = vunpack.c.l.b16 %v768
        %v1669 = vunpack.c.l.b16 %v769
        %v1670 = vunpack.c.l.b16 %v770
        %v1671 = vunpack.c.l.b16 %v771
        %v1672 = vunpack.c.l.b16 %v772
        %v1673 = vunpack.c.l.b16 %v773
        %v1674 = vunpack.c.l.b16 %v774
        %v1675 = vunpack.c.l.b16 %v775
        %v1676 = vunpack.c.l.b16 %v776
        %v1677 = vunpack.c.l.b16 %v777
        %v1678 = vunpack.c.l.b16 %v778
        %v1679 = vunpack.c.l.b16 %v779
        %v1680 = vunpack.c.l.b16 %v780
        %v1681 = vunpack.c.l.b16 %v781
        %v1682 = vunpack.c.l.b16 %v782
        %v1683 = vunpack.c.l.b16 %v783
        %v1684 = vunpack.c.l.b16 %v784
        %v1685 = vunpack.c.l.b16 %v785
        %v1686 = vunpack.c.l.b16 %v786
        %v1687 = vunpack.c.l.b16 %v787
        %v1688 = vunpack.c.l.b16 %v788
        %v1689 = vunpack.c.l.b16 %v789
        %v1690 = vunpack.c.l.b16 %v790
        %v1691 = vunpack.c.l.b16 %v791
        %v1692 = vunpack.c.l.b16 %v792
        %v1693 = vunpack.c.l.b16 %v793
        %v1694 = vunpack.c.l.b16 %v794
        %v1695 = vunpack.c.l.b16 %v795
        %v1696 = vunpack.c.l.b16 %v796
        %v1697 = vunpack.c.l.b16 %v797
        %v1698 = vunpack.c.l.b16 %v798
        %v1699 = vunpack.c.l.b16 %v799
        %v1700 = vunpack.c.l.b16 %v800
        %v1701 = vunpack.c.l.b16 %v801
        %v1702 = vunpack.c.l.b16 %v802
        %v1703 = vunpack.c.l.b16 %v803
        %v1704 = vunpack.c.l.b16 %v804
        %v1705 = vunpack.c.l.b16 %v805
        %v1706 = vunpack.c.l.b16 %v806
        %v1707 = vunpack.c.l.b16 %v807
        %v1708 = vunpack.c.l.b16 %v808
        %v1709 = vunpack.c.l.b16 %v809
        %v1710 = vunpack.c.l.b16 %v810
        %v1711 = vunpack.c.l.b16 %v811
        %v1712 = vunpack.c.l.b16 %v812
        %v1713 = vunpack.c.l.b16 %v813
        %v1714 = vunpack.c.l.b16 %v814
        %v1715 = vunpack.c.l.b16 %v815
        %v1716 = vunpack.c.l.b16 %v816
        %v1717 = vunpack.c.l.b16 %v817
        %v1718 = vunpack.c.l.b16 %v818
        %v1719 = vunpack.c.l.b16 %v819
        %v1720 = vunpack.c.l.b16 %v820
        %v1721 = vunpack.c.l.b16 %v821
        %v1722 = vunpack.c.l.b16 %v822
        %v1723 = vunpack.c.l.b16 %v823
        %v1724 = vunpack.c.l.b16 %v824
        %v1725 = vunpack.c.l.b16 %v825
        %v1726 = vunpack.c.l.b16 %v826
        %v1727 = vunpack.c.l.b16 %v827
        %v1728 = vunpack.c.l.b16 %v828
        %v1729 = vunpack.c.l.b16 %v829
        %v1730 = vunpack.c.l.b16 %v830
        %v1731 = vunpack.c.l.b16 %v831
        %v1732 = vunpack.c.l.b16 %v832
        %v1733 = vunpack.c.l.b16 %v833
        %v1734 = vunpack.c.l.b16 %v834
        %v1735 = vunpack.c.l.b16 %v835
        %v1736 = vunpack.c.l.b16 %v836
        %v1737 = vunpack.c.l.b16 %v837
        %v1738 = vunpack.c.l.b16 %v838
        %v1739 = vunpack.c.l.b16 %v839
        %v1740 = vunpack.c.l.b16 %v840
        %v1741 = vunpack.c.l.b16 %v841
        %v1742 = vunpack.c.l.b16 %v842
        %v1743 = vunpack.c.l.b16 %v843
        %v1744 = vunpack.c.l.b16 %v844
        %v1745 = vunpack.c.l.b16 %v845
        %v1746 = vunpack.c.l.b16 %v846
        %v1747 = vunpack.c.l.b16 %v847
        %v1748 = vunpack.c.l.b16 %v848
        %v1749 = vunpack.c.l.b16 %v849
        %v1750 = vunpack.c.l.b16 %v850
        %v1751 = vunpack.c.l.b16 %v851
        %v1752 = vunpack.c.l.b16 %v852
        %v1753 = vunpack.c.l.b16 %v853
        %v1754 = vunpack.c.l.b16 %v854
        %v1755 = vunpack.c.l.b16 %v855
        %v1756 = vunpack.c.l.b16 %v856
        %v1757 = vunpack.c.l.b16 %v857
        %v1758 = vunpack.c.l.b16 %v858
        %v1759 = vunpack.c.l.b16 %v859
        %v1760 = vunpack.c.l.b16 %v860
        %v1761 = vunpack.c.l.b16 %v861
        %v1762 = vunpack.c.l.b16 %v862
        %v1763 = vunpack.c.l.b16 %v863
        %v1764 = vunpack.c.l.b16 %v864
        %v1765 = vunpack.c.l.b16 %v865
        %v1766 = vunpack.c.l.b16 %v866
        %v1767 = vunpack.c.l.b16 %v867
        %v1768 = vunpack.c.l.b16 %v868
        %v1769 = vunpack.c.l.b16 %v869
        %v1770 = vunpack.c.l.b16 %v870
        %v1771 = vunpack.c.l.b16 %v871
        %v1772 = vunpack.c.l.b16 %v872
        %v1773 = vunpack.c.l.b16 %v873
        %v1774 = vunpack.c.l.b16 %v874
        %v1775 = vunpack.c.l.b16 %v875
        %v1776 = vunpack.c.l.b16 %v876
        %v1777 = vunpack.c.l.b16 %v877
        %v1778 = vunpack.c.l.b16 %v878
        %v1779 = vunpack.c.l.b16 %v879
        %v1780 = vunpack.c.l.b16 %v880
        %v1781 = vunpack.c.l.b16 %v881
        %v1782 = vunpack.c.l.b16 %v882
        %v1783 = vunpack.c.l.b16 %v883
        %v1784 = vunpack.c.l.b16 %v884
        %v1785 = vunpack.c.l.b16 %v885
        %v1786 = vunpack.c.l.b16 %v886
        %v1787 = vunpack.c.l.b16 %v887
        %v1788 = vunpack.c.l.b16 %v888
        %v1789 = vunpack.c.l.b16 %v889
        %v1790 = vunpack.c.l.b16 %v890
        %v1791 = vunpack.c.l.b16 %v891
        %v1792 = vunpack.c.l.b16 %v892
        %v1793 = vunpack.c.l.b16 %v893
        %v1794 = vunpack.c.l.b16 %v894
        %v1795 = vunpack.c.l.b16 %v895
        %v1796 = vunpack.c.l.b16 %v896
        %v1797 = vunpack.c.l.b16 %v897
        %v1798 = vunpack.c.l.b16 %v898
        %v1799 = vunpack.c.l.b16 %v899
        %v1800 = vunpack.c.l.b16 %v900
        %v1801 = vunpack.c.l.b16 %v901
        %v1802 = vunpack.c.l.b16 %v902
        %v1803 = vunpack.c.l.b16 %v903
        %v1804 = vunpack.c.l.b16 %v904
        %v1805 = vunpack.c.l.b16 %v905
        %v1806 = vunpack.c.l.b16 %v906
        %v1807 = vunpack.c.l.b16 %v907
        %v1808 = vunpack.c.l.b16 %v908
        %v1809 = vunpack.c.l.b16 %v909
        %v1810 = vunpack.c.l.b16 %v910
        %v1811 = vunpack.c.l.b16 %v911
        %v1812 = vunpack.c.l.b16 %v912
        %v1813 = vunpack.c.l.b16 %v913
        %v1814 = vunpack.c.l.b16 %v914
        %v1815 = vunpack.c.l.b16 %v915
        %v1816 = vunpack.c.l.b16 %v916
        %v1817 = vunpack.c.l.b16 %v917
        %v1818 = vunpack.c.l.b16 %v918
        %v1819 = vunpack.c.l.b16 %v919
        %v1820 = vunpack.c.l.b16 %v920
        %v1821 = vunpack.c.l.b16 %v921
        %v1822 = vunpack.c.l.b16 %v922
        %v1823 = vunpack.c.l.b16 %v923
        %v1824 = vunpack.c.l.b16 %v924
        %v1825 = vunpack.c.l.b16 %v925
        %v1826 = vunpack.c.l.b16 %v926
        %v1827 = vunpack.c.l.b16 %v927
        %v1828 = vunpack.c.l.b16 %v928
        %v1829 = vunpack.c.l.b16 %v929
        %v1830 = vunpack.c.l.b16 %v930
        %v1831 = vunpack.c.l.b16 %v931
        %v1832 = vunpack.c.l.b16 %v932
        %v1833 = vunpack.c.l.b16 %v933
        %v1834 = vunpack.c.l.b16 %v934
        %v1835 = vunpack.c.l.b16 %v935
        %v1836 = vunpack.c.l.b16 %v936
        %v1837 = vpack.c.b16 %v1454, %v1453
        %v1838 = vpack.c.b16 %v1456, %v1455
        %v1839 = vpack.c.b16 %v1458, %v1457
        %v1840 = vpack.c.b16 %v1460, %v1459
        %v1841 = vpack.c.b16 %v1462, %v1461
        %v1842 = vpack.c.b16 %v1464, %v1463
        %v1843 = vpack.c.b16 %v1466, %v1465
        %v1844 = vpack.c.b16 %v1468, %v1467
        %v1845 = vpack.c.b16 %v1470, %v1469
        %v1846 = vpack.c.b16 %v1472, %v1471
        %v1847 = vpack.c.b16 %v1474, %v1473
        %v1848 = vpack.c.b16 %v1476, %v1475
        %v1849 = vpack.c.b16 %v1478, %v1477
        %v1850 = vpack.c.b16 %v1480, %v1479
        %v1851 = vpack.c.b16 %v1482, %v1481
        %v1852 = vpack.c.b16 %v1484, %v1483
        %v1853 = vpack.c.b16 %v1486, %v1485
        %v1854 = vpack.c.b16 %v1488, %v1487
        %v1855 = vpack.c.b16 %v1490, %v1489
        %v1856 = vpack.c.b16 %v1492, %v1491
        %v1857 = vpack.c.b16 %v1494, %v1493
        %v1858 = vpack.c.b16 %v1496, %v1495
        %v1859 = vpack.c.b16 %v1498, %v1497
        %v1860 = vpack.c.b16 %v1500, %v1499
        %v1861 = vpack.c.b16 %v1502, %v1501
        %v1862 = vpack.c.b16 %v1504, %v1503
        %v1863 = vpack.c.b16 %v1506, %v1505
        %v1864 = vpack.c.b16 %v1508, %v1507
        %v1865 = vpack.c.b16 %v1510, %v1509
        %v1866 = vpack.c.b16 %v1512, %v1511
        %v1867 = vpack.c.b16 %v1514, %v1513
        %v1868 = vpack.c.b16 %v1516, %v1515
        %v1869 = vpack.c.b16 %v1518, %v1517
        %v1870 = vpack.c.b16 %v1520, %v1519
        %v1871 = vpack.c.b16 %v1522, %v1521
        %v1872 = vpack.c.b16 %v1524, %v1523
        %v1873 = vpack.c.b16 %v1526, %v1525
        %v1874 = vpack.c.b16 %v1528, %v1527
        %v1875 = vpack.c.b16 %v1530, %v1529
        %v1876 = vpack.c.b16 %v1532, %v1531
        %v1877 = vpack.c.b16 %v1534, %v1533
        %v1878 = vpack.c.b16 %v1536, %v1535
        %v1879 = vpack.c.b16 %v1538, %v1537
        %v1880 = vpack.c.b16 %v1540, %v1539
        %v1881 = vpack.c.b16 %v1542, %v1541
        %v1882 = vpack.c.b16 %v1544, %v1543
        %v1883 = vpack.c.b16 %v1546, %v1545
        %v1884 = vpack.c.b16 %v1548, %v1547
        %v1885 = vpack.c.b16 %v1550, %v1549
        %v1886 = vpack.c.b16 %v1552, %v1551
        %v1887 = vpack.c.b16 %v1554, %v1553
        %v1888 = vpack.c.b16 %v1556, %v1555
        %v1889 = vpack.c.b16 %v1558, %v1557
        %v1890 = vpack.c.b16 %v1560, %v1559
        %v1891 = vpack.c.b16 %v1562, %v1561
        %v1892 = vpack.c.b16 %v1564, %v1563
        %v1893 = vpack.c.b16 %v1566, %v1565
        %v1894 = vpack.c.b16 %v1568, %v1567
        %v1895 = vpack.c.b16 %v1570, %v1569
        %v1896 = vpack.c.b16 %v1572, %v1571
        %v1897 = vpack.c.b16 %v1574, %v1573
        %v1898 = vpack.c.b16 %v1576, %v1575
        %v1899 = vpack.c.b16 %v1578, %v1577
        %v1900 = vpack.c.b16 %v1580, %v1579
        %v1901 = vpack.c.b16 %v1582, %v1581
        %v1902 = vpack.c.b16 %v1584, %v1583
        %v1903 = vpack.c.b16 %v1586, %v1585
        %v1904 = vpack.c.b16 %v1588, %v1587
        %v1905 = vpack.c.b16 %v1590, %v1589
        %v1906 = vpack.c.b16 %v1592, %v1591
        %v1907 = vpack.c.b16 %v1594, %v1593
        %v1908 = vpack.c.b16 %v1596, %v1595
        %v1909 = vpack.c.b16 %v1598, %v1597
        %v1910 = vpack.c.b16 %v1600, %v1599
        %v1911 = vpack.c.b16 %v1602, %v1601
        %v1912 = vpack.c.b16 %v1604, %v1603
        %v1913 = vpack.c.b16 %v1606, %v1605
        %v1914 = vpack.c.b16 %v1608, %v1607
        %v1915 = vpack.c.b16 %v1610, %v1609
        %v1916 = vpack.c.b16 %v1612, %v1611
        %v1917 = vpack.c.b16 %v1614, %v1613
        %v1918 = vpack.c.b16 %v1616, %v1615
        %v1919 = vpack.c.b16 %v1618, %v1617
        %v1920 = vpack.c.b16 %v1620, %v1619
        %v1921 = vpack.c.b16 %v1622, %v1621
        %v1922 = vpack.c.b16 %v1624, %v1623
        %v1923 = vpack.c.b16 %v1626, %v1625
        %v1924 = vpack.c.b16 %v1628, %v1627
        %v1925 = vpack.c.b16 %v1630, %v1629
        %v1926 = vpack.c.b16 %v1632, %v1631
        %v1927 = vpack.c.b16 %v1634, %v1633
        %v1928 = vpack.c.b16 %v1636, %v1635
        %v1929 = vpack.c.b16 %v1638, %v1637
        %v1930 = vpack.c.b16 %v1640, %v1639
        %v1931 = vpack.c.b16 %v1642, %v1641
        %v1932 = vpack.c.b16 %v1644, %v1643
        %v1933 = vpack.c.b16 %v1646, %v1645
        %v1934 = vpack.c.b16 %v1648, %v1647
        %v1935 = vpack.c.b16 %v1650, %v1649
        %v1936 = vpack.c.b16 %v1652, %v1651
        %v1937 = vpack.c.b16 %v1654, %v1653
        %v1938 = vpack.c.b16 %v1656, %v1655
        %v1939 = vpack.c.b16 %v1658, %v1657
        %v1940 = vpack.c.b16 %v1660, %v1659
        %v1941 = vpack.c.b16 %v1662, %v1661
        %v1942 = vpack.c.b16 %v1664, %v1663
        %v1943 = vpack.c.b16 %v1666, %v1665
        %v1944 = vpack.c.b16 %v1668, %v1667
        %v1945 = vpack.c.b16 %v1670, %v1669
        %v1946 = vpack.c.b16 %v1672, %v1671
        %v1947 = vpack.c.b16 %v1674, %v1673
        %v1948 = vpack.c.b16 %v1676, %v1675
        %v1949 = vpack.c.b16 %v1678, %v1677
        %v1950 = vpack.c.b16 %v1680, %v1679
        %v1951 = vpack.c.b16 %v1682, %v1681
        %v1952 = vpack.c.b16 %v1684, %v1683
        %v1953 = vpack.c.b16 %v1686, %v1685
        %v1954 = vpack.c.b16 %v1688, %v1687
        %v1955 = vpack.c.b16 %v1690, %v1689
        %v1956 = vpack.c.b16 %v1692, %v1691
        %v1957 = vpack.c.b16 %v1694, %v1693
        %v1958 = vpack.c.b16 %v1696, %v1695
        %v1959 = vpack.c.b16 %v1698, %v1697
        %v1960 = vpack.c.b16 %v1700, %v1699
        %v1961 = vpack.c.b16 %v1702, %v1701
        %v1962 = vpack.c.b16 %v1704, %v1703
        %v1963 = vpack.c.b16 %v1706, %v1705
        %v1964 = vpack.c.b16 %v1708, %v1707
        %v1965 = vpack.c.b16 %v1710, %v1709
        %v1966 = vpack.c.b16 %v1712, %v1711
        %v1967 = vpack.c.b16 %v1714, %v1713
        %v1968 = vpack.c.b16 %v1716, %v1715
        %v1969 = vpack.c.b16 %v1718, %v1717
        %v1970 = vpack.c.b16 %v1720, %v1719
        %v1971 = vpack.c.b16 %v1722, %v1721
        %v1972 = vpack.c.b16 %v1724, %v1723
        %v1973 = vpack.c.b16 %v1726, %v1725
        %v1974 = vpack.c.b16 %v1728, %v1727
        %v1975 = vpack.c.b16 %v1730, %v1729
        %v1976 = vpack.c.b16 %v1732, %v1731
        %v1977 = vpack.c.b16 %v1734, %v1733
        %v1978 = vpack.c.b16 %v1736, %v1735
        %v1979 = vpack.c.b16 %v1738, %v1737
        %v1980 = vpack.c.b16 %v1740, %v1739
        %v1981 = vpack.c.b16 %v1742, %v1741
        %v1982 = vpack.c.b16 %v1744, %v1743
        %v1983 = vpack.c.b16 %v1746, %v1745
        %v1984 = vpack.c.b16 %v1748, %v1747
        %v1985 = vpack.c.b16 %v1750, %v1749
        %v1986 = vpack.c.b16 %v1752, %v1751
        %v1987 = vpack.c.b16 %v1754, %v1753
        %v1988 = vpack.c.b16 %v1756, %v1755
        %v1989 = vpack.c.b16 %v1758, %v1757
        %v1990 = vpack.c.b16 %v1760, %v1759
        %v1991 = vpack.c.b16 %v1762, %v1761
        %v1992 = vpack.c.b16 %v1764, %v1763
        %v1993 = vpack.c.b16 %v1766, %v1765
        %v1994 = vpack.c.b16 %v1768, %v1767
        %v1995 = vpack.c.b16 %v1770, %v1769
        %v1996 = vpack.c.b16 %v1772, %v1771
        %v1997 = vpack.c.b16 %v1774, %v1773
        %v1998 = vpack.c.b16 %v1776, %v1775
        %v1999 = vpack.c.b16 %v1778, %v1777
        %v2000 = vpack.c.b16 %v1780, %v1779
        %v2001 = vpack.c.b16 %v1782, %v1781
        %v2002 = vpack.c.b16 %v1784, %v1783
        %v2003 = vpack.c.b16 %v1786, %v1785
        %v2004 = vpack.c.b16 %v1788, %v1787
        %v2005 = vpack.c.b16 %v1790, %v1789
        %v2006 = vpack.c.b16 %v1792, %v1791
        %v2007 = vpack.c.b16 %v1794, %v1793
        %v2008 = vpack.c.b16 %v1796, %v1795
        %v2009 = vpack.c.b16 %v1798, %v1797
        %v2010 = vpack.c.b16 %v1800, %v1799
        %v2011 = vpack.c.b16 %v1802, %v1801
        %v2012 = vpack.c.b16 %v1804, %v1803
        %v2013 = vpack.c.b16 %v1806, %v1805
        %v2014 = vpack.c.b16 %v1808, %v1807
        %v2015 = vpack.c.b16 %v1810, %v1809
        %v2016 = vpack.c.b16 %v1812, %v1811
        %v2017 = vpack.c.b16 %v1814, %v1813
        %v2018 = vpack.c.b16 %v1816, %v1815
        %v2019 = vpack.c.b16 %v1818, %v1817
        %v2020 = vpack.c.b16 %v1820, %v1819
        %v2021 = vpack.c.b16 %v1822, %v1821
        %v2022 = vpack.c.b16 %v1824, %v1823
        %v2023 = vpack.c.b16 %v1826, %v1825
        %v2024 = vpack.c.b16 %v1828, %v1827
        %v2025 = vpack.c.b16 %v1830, %v1829
        %v2026 = vpack.c.b16 %v1832, %v1831
        %v2027 = vpack.c.b16 %v1834, %v1833
        %v2028 = vpack.c.b16 %v1836, %v1835
        %2221 = vmatprep.subr.bf16.mxu0 0
        %2222 = vmatpush1.bf16.msra.mxu0 %v1844
        %2223 = vmatprep.subr.bf16.mxu0 0
        %2224 = vmatpush1.bf16.msra.mxu0 %v1843
        %2225 = vmatprep.subr.bf16.mxu0 0
        %2226 = vmatpush1.bf16.msra.mxu0 %v1842
        %2227 = vmatprep.subr.bf16.mxu0 0
        %2228 = vmatpush1.bf16.msra.mxu0 %v1841
        %2229 = vmatprep.subr.bf16.mxu0 0
        %2230 = vmatpush1.bf16.msra.mxu0 %v1840
        %2231 = vmatprep.subr.bf16.mxu0 0
        %2232 = vmatpush1.bf16.msra.mxu0 %v1839
        %2233 = vmatprep.subr.bf16.mxu0 0
        %2234 = vmatpush1.bf16.msra.mxu0 %v1838
        %2235 = vmatprep.subr.bf16.mxu0 0
        %2236 = vmatpush1.bf16.msra.mxu0 %v1837
        %2237 = vmatprep.subr.bf16.mxu0 0
        %2238 = vmatpush2.bf16.msra.mxu0 %v1852
        %2239 = vmatprep.subr.bf16.mxu0 0
        %2240 = vmatpush2.bf16.msra.mxu0 %v1851
        %2241 = vmatprep.subr.bf16.mxu0 0
        %2242 = vmatpush2.bf16.msra.mxu0 %v1850
        %2243 = vmatprep.subr.bf16.mxu0 0
        %2244 = vmatpush2.bf16.msra.mxu0 %v1849
        %2245 = vmatprep.subr.bf16.mxu0 0
        %2246 = vmatpush2.bf16.msra.mxu0 %v1848
        %2247 = vmatprep.subr.bf16.mxu0 0
        %2248 = vmatpush2.bf16.msra.mxu0 %v1847
        %2249 = vmatprep.subr.bf16.mxu0 0
        %2250 = vmatpush2.bf16.msra.mxu0 %v1846
        %2251 = vmatprep.subr.bf16.mxu0 0
        %2252 = vmatpush2.bf16.msra.mxu0 %v1845
        %2253 = vmatprep.mubr.bf16.mxu0 %v958
        %2254 = vmatmul.mubr.bf16.gmra.mxu0 %v950
        %v2255 = vpop.f32.mrf.mxu0
        %v2256 = vadd.f32 0.0, %v2255
        %v2257 = vpop.f32.mrf.mxu0
        %v2258 = vpop.f32.mrf.mxu0
        %v2259 = vpop.f32.mrf.mxu0
        %2260 = vdwg.mxu0
        %2261 = vmatprep.subr.bf16.mxu0 0
        %2262 = vmatpush1.bf16.msra.mxu0 %v1860
        %2263 = vmatprep.subr.bf16.mxu0 0
        %2264 = vmatpush1.bf16.msra.mxu0 %v1859
        %2265 = vmatprep.subr.bf16.mxu0 0
        %2266 = vmatpush1.bf16.msra.mxu0 %v1858
        %2267 = vmatprep.subr.bf16.mxu0 0
        %2268 = vmatpush1.bf16.msra.mxu0 %v1857
        %2269 = vmatprep.subr.bf16.mxu0 0
        %2270 = vmatpush1.bf16.msra.mxu0 %v1856
        %2271 = vmatprep.subr.bf16.mxu0 0
        %2272 = vmatpush1.bf16.msra.mxu0 %v1855
        %2273 = vmatprep.subr.bf16.mxu0 0
        %2274 = vmatpush1.bf16.msra.mxu0 %v1854
        %2275 = vmatprep.subr.bf16.mxu0 0
        %2276 = vmatpush1.bf16.msra.mxu0 %v1853
        %2277 = vmatprep.subr.bf16.mxu0 0
        %2278 = vmatpush2.bf16.msra.mxu0 %v1868
        %2279 = vmatprep.subr.bf16.mxu0 0
        %2280 = vmatpush2.bf16.msra.mxu0 %v1867
        %2281 = vmatprep.subr.bf16.mxu0 0
        %2282 = vmatpush2.bf16.msra.mxu0 %v1866
        %2283 = vmatprep.subr.bf16.mxu0 0
        %2284 = vmatpush2.bf16.msra.mxu0 %v1865
        %2285 = vmatprep.subr.bf16.mxu0 0
        %2286 = vmatpush2.bf16.msra.mxu0 %v1864
        %2287 = vmatprep.subr.bf16.mxu0 0
        %2288 = vmatpush2.bf16.msra.mxu0 %v1863
        %2289 = vmatprep.subr.bf16.mxu0 0
        %2290 = vmatpush2.bf16.msra.mxu0 %v1862
        %2291 = vmatprep.subr.bf16.mxu0 0
        %2292 = vmatpush2.bf16.msra.mxu0 %v1861
        %2293 = vmatprep.mubr.bf16.mxu0 %v959
        %2294 = vmatmul.mubr.bf16.gmra.mxu0 %v957
        %v2295 = vpop.f32.mrf.mxu0
        %v2296 = vadd.f32 %v2256, %v2295
        %v2297 = vpop.f32.mrf.mxu0
        %v2298 = vpop.f32.mrf.mxu0
        %v2299 = vpop.f32.mrf.mxu0
        %2300 = vdwg.mxu0
        %2301 = vmatprep.subr.bf16.mxu0 0
        %2302 = vmatpush1.bf16.msra.mxu0 %v1876
        %2303 = vmatprep.subr.bf16.mxu0 0
        %2304 = vmatpush1.bf16.msra.mxu0 %v1875
        %2305 = vmatprep.subr.bf16.mxu0 0
        %2306 = vmatpush1.bf16.msra.mxu0 %v1874
        %2307 = vmatprep.subr.bf16.mxu0 0
        %2308 = vmatpush1.bf16.msra.mxu0 %v1873
        %2309 = vmatprep.subr.bf16.mxu0 0
        %2310 = vmatpush1.bf16.msra.mxu0 %v1872
        %2311 = vmatprep.subr.bf16.mxu0 0
        %2312 = vmatpush1.bf16.msra.mxu0 %v1871
        %2313 = vmatprep.subr.bf16.mxu0 0
        %2314 = vmatpush1.bf16.msra.mxu0 %v1870
        %2315 = vmatprep.subr.bf16.mxu0 0
        %2316 = vmatpush1.bf16.msra.mxu0 %v1869
        %2317 = vmatprep.subr.bf16.mxu0 0
        %2318 = vmatpush2.bf16.msra.mxu0 %v1884
        %2319 = vmatprep.subr.bf16.mxu0 0
        %2320 = vmatpush2.bf16.msra.mxu0 %v1883
        %2321 = vmatprep.subr.bf16.mxu0 0
        %2322 = vmatpush2.bf16.msra.mxu0 %v1882
        %2323 = vmatprep.subr.bf16.mxu0 0
        %2324 = vmatpush2.bf16.msra.mxu0 %v1881
        %2325 = vmatprep.subr.bf16.mxu0 0
        %2326 = vmatpush2.bf16.msra.mxu0 %v1880
        %2327 = vmatprep.subr.bf16.mxu0 0
        %2328 = vmatpush2.bf16.msra.mxu0 %v1879
        %2329 = vmatprep.subr.bf16.mxu0 0
        %2330 = vmatpush2.bf16.msra.mxu0 %v1878
        %2331 = vmatprep.subr.bf16.mxu0 0
        %2332 = vmatpush2.bf16.msra.mxu0 %v1877
        %2333 = vmatprep.mubr.bf16.mxu0 %v975
        %2334 = vmatmul.mubr.bf16.gmra.mxu0 %v967
        %v2335 = vpop.f32.mrf.mxu0
        %v2336 = vadd.f32 %v2296, %v2335
        %v2337 = vpop.f32.mrf.mxu0
        %v2338 = vpop.f32.mrf.mxu0
        %v2339 = vpop.f32.mrf.mxu0
        %2340 = vdwg.mxu0
        %2341 = vmatprep.subr.bf16.mxu0 0
        %2342 = vmatpush1.bf16.msra.mxu0 %v1892
        %2343 = vmatprep.subr.bf16.mxu0 0
        %2344 = vmatpush1.bf16.msra.mxu0 %v1891
        %2345 = vmatprep.subr.bf16.mxu0 0
        %2346 = vmatpush1.bf16.msra.mxu0 %v1890
        %2347 = vmatprep.subr.bf16.mxu0 0
        %2348 = vmatpush1.bf16.msra.mxu0 %v1889
        %2349 = vmatprep.subr.bf16.mxu0 0
        %2350 = vmatpush1.bf16.msra.mxu0 %v1888
        %2351 = vmatprep.subr.bf16.mxu0 0
        %2352 = vmatpush1.bf16.msra.mxu0 %v1887
        %2353 = vmatprep.subr.bf16.mxu0 0
        %2354 = vmatpush1.bf16.msra.mxu0 %v1886
        %2355 = vmatprep.subr.bf16.mxu0 0
        %2356 = vmatpush1.bf16.msra.mxu0 %v1885
        %2357 = vmatprep.subr.bf16.mxu0 0
        %2358 = vmatpush2.bf16.msra.mxu0 %v1900
        %2359 = vmatprep.subr.bf16.mxu0 0
        %2360 = vmatpush2.bf16.msra.mxu0 %v1899
        %2361 = vmatprep.subr.bf16.mxu0 0
        %2362 = vmatpush2.bf16.msra.mxu0 %v1898
        %2363 = vmatprep.subr.bf16.mxu0 0
        %2364 = vmatpush2.bf16.msra.mxu0 %v1897
        %2365 = vmatprep.subr.bf16.mxu0 0
        %2366 = vmatpush2.bf16.msra.mxu0 %v1896
        %2367 = vmatprep.subr.bf16.mxu0 0
        %2368 = vmatpush2.bf16.msra.mxu0 %v1895
        %2369 = vmatprep.subr.bf16.mxu0 0
        %2370 = vmatpush2.bf16.msra.mxu0 %v1894
        %2371 = vmatprep.subr.bf16.mxu0 0
        %2372 = vmatpush2.bf16.msra.mxu0 %v1893
        %2373 = vmatprep.mubr.bf16.mxu0 %v976
        %2374 = vmatmul.mubr.bf16.gmra.mxu0 %v974
        %v2375 = vpop.f32.mrf.mxu0
        %v2376 = vadd.f32 %v2336, %v2375
        %v2377 = vpop.f32.mrf.mxu0
        %v2378 = vpop.f32.mrf.mxu0
        %v2379 = vpop.f32.mrf.mxu0
        %2380 = vdwg.mxu0
        %2381 = vmatprep.subr.bf16.mxu0 0
        %2382 = vmatpush1.bf16.msra.mxu0 %v1908
        %2383 = vmatprep.subr.bf16.mxu0 0
        %2384 = vmatpush1.bf16.msra.mxu0 %v1907
        %2385 = vmatprep.subr.bf16.mxu0 0
        %2386 = vmatpush1.bf16.msra.mxu0 %v1906
        %2387 = vmatprep.subr.bf16.mxu0 0
        %2388 = vmatpush1.bf16.msra.mxu0 %v1905
        %2389 = vmatprep.subr.bf16.mxu0 0
        %2390 = vmatpush1.bf16.msra.mxu0 %v1904
        %2391 = vmatprep.subr.bf16.mxu0 0
        %2392 = vmatpush1.bf16.msra.mxu0 %v1903
        %2393 = vmatprep.subr.bf16.mxu0 0
        %2394 = vmatpush1.bf16.msra.mxu0 %v1902
        %2395 = vmatprep.subr.bf16.mxu0 0
        %2396 = vmatpush1.bf16.msra.mxu0 %v1901
        %2397 = vmatprep.subr.bf16.mxu0 0
        %2398 = vmatpush2.bf16.msra.mxu0 %v1916
        %2399 = vmatprep.subr.bf16.mxu0 0
        %2400 = vmatpush2.bf16.msra.mxu0 %v1915
        %2401 = vmatprep.subr.bf16.mxu0 0
        %2402 = vmatpush2.bf16.msra.mxu0 %v1914
        %2403 = vmatprep.subr.bf16.mxu0 0
        %2404 = vmatpush2.bf16.msra.mxu0 %v1913
        %2405 = vmatprep.subr.bf16.mxu0 0
        %2406 = vmatpush2.bf16.msra.mxu0 %v1912
        %2407 = vmatprep.subr.bf16.mxu0 0
        %2408 = vmatpush2.bf16.msra.mxu0 %v1911
        %2409 = vmatprep.subr.bf16.mxu0 0
        %2410 = vmatpush2.bf16.msra.mxu0 %v1910
        %2411 = vmatprep.subr.bf16.mxu0 0
        %2412 = vmatpush2.bf16.msra.mxu0 %v1909
        %2413 = vmatprep.mubr.bf16.mxu0 %v992
        %2414 = vmatmul.mubr.bf16.gmra.mxu0 %v984
        %v2415 = vpop.f32.mrf.mxu0
        %v2416 = vadd.f32 %v2376, %v2415
        %v2417 = vpop.f32.mrf.mxu0
        %v2418 = vpop.f32.mrf.mxu0
        %v2419 = vpop.f32.mrf.mxu0
        %2420 = vdwg.mxu0
        %2421 = vmatprep.subr.bf16.mxu0 0
        %2422 = vmatpush1.bf16.msra.mxu0 %v1924
        %2423 = vmatprep.subr.bf16.mxu0 0
        %2424 = vmatpush1.bf16.msra.mxu0 %v1923
        %2425 = vmatprep.subr.bf16.mxu0 0
        %2426 = vmatpush1.bf16.msra.mxu0 %v1922
        %2427 = vmatprep.subr.bf16.mxu0 0
        %2428 = vmatpush1.bf16.msra.mxu0 %v1921
        %2429 = vmatprep.subr.bf16.mxu0 0
        %2430 = vmatpush1.bf16.msra.mxu0 %v1920
        %2431 = vmatprep.subr.bf16.mxu0 0
        %2432 = vmatpush1.bf16.msra.mxu0 %v1919
        %2433 = vmatprep.subr.bf16.mxu0 0
        %2434 = vmatpush1.bf16.msra.mxu0 %v1918
        %2435 = vmatprep.subr.bf16.mxu0 0
        %2436 = vmatpush1.bf16.msra.mxu0 %v1917
        %2437 = vmatprep.subr.bf16.mxu0 0
        %2438 = vmatpush2.bf16.msra.mxu0 %v1932
        %2439 = vmatprep.subr.bf16.mxu0 0
        %2440 = vmatpush2.bf16.msra.mxu0 %v1931
        %2441 = vmatprep.subr.bf16.mxu0 0
        %2442 = vmatpush2.bf16.msra.mxu0 %v1930
        %2443 = vmatprep.subr.bf16.mxu0 0
        %2444 = vmatpush2.bf16.msra.mxu0 %v1929
        %2445 = vmatprep.subr.bf16.mxu0 0
        %2446 = vmatpush2.bf16.msra.mxu0 %v1928
        %2447 = vmatprep.subr.bf16.mxu0 0
        %2448 = vmatpush2.bf16.msra.mxu0 %v1927
        %2449 = vmatprep.subr.bf16.mxu0 0
        %2450 = vmatpush2.bf16.msra.mxu0 %v1926
        %2451 = vmatprep.subr.bf16.mxu0 0
        %2452 = vmatpush2.bf16.msra.mxu0 %v1925
        %2453 = vmatprep.mubr.bf16.mxu0 %v993
        %2454 = vmatmul.mubr.bf16.gmra.mxu0 %v991
        %v2455 = vpop.f32.mrf.mxu0
        %v2456 = vadd.f32 %v2416, %v2455
        %v2457 = vpop.f32.mrf.mxu0
        %v2458 = vpop.f32.mrf.mxu0
        %v2459 = vpop.f32.mrf.mxu0
        %2460 = vdwg.mxu0
        %2461 = vmatprep.subr.bf16.mxu0 0
        %2462 = vmatpush1.bf16.msra.mxu0 %v1940
        %2463 = vmatprep.subr.bf16.mxu0 0
        %2464 = vmatpush1.bf16.msra.mxu0 %v1939
        %2465 = vmatprep.subr.bf16.mxu0 0
        %2466 = vmatpush1.bf16.msra.mxu0 %v1938
        %2467 = vmatprep.subr.bf16.mxu0 0
        %2468 = vmatpush1.bf16.msra.mxu0 %v1937
        %2469 = vmatprep.subr.bf16.mxu0 0
        %2470 = vmatpush1.bf16.msra.mxu0 %v1936
        %2471 = vmatprep.subr.bf16.mxu0 0
        %2472 = vmatpush1.bf16.msra.mxu0 %v1935
        %2473 = vmatprep.subr.bf16.mxu0 0
        %2474 = vmatpush1.bf16.msra.mxu0 %v1934
        %2475 = vmatprep.subr.bf16.mxu0 0
        %2476 = vmatpush1.bf16.msra.mxu0 %v1933
        %2477 = vmatprep.subr.bf16.mxu0 0
        %2478 = vmatpush2.bf16.msra.mxu0 %v1948
        %2479 = vmatprep.subr.bf16.mxu0 0
        %2480 = vmatpush2.bf16.msra.mxu0 %v1947
        %2481 = vmatprep.subr.bf16.mxu0 0
        %2482 = vmatpush2.bf16.msra.mxu0 %v1946
        %2483 = vmatprep.subr.bf16.mxu0 0
        %2484 = vmatpush2.bf16.msra.mxu0 %v1945
        %2485 = vmatprep.subr.bf16.mxu0 0
        %2486 = vmatpush2.bf16.msra.mxu0 %v1944
        %2487 = vmatprep.subr.bf16.mxu0 0
        %2488 = vmatpush2.bf16.msra.mxu0 %v1943
        %2489 = vmatprep.subr.bf16.mxu0 0
        %2490 = vmatpush2.bf16.msra.mxu0 %v1942
        %2491 = vmatprep.subr.bf16.mxu0 0
        %2492 = vmatpush2.bf16.msra.mxu0 %v1941
        %2493 = vmatprep.mubr.bf16.mxu0 %v1009
        %2494 = vmatmul.mubr.bf16.gmra.mxu0 %v1001
        %v2495 = vpop.f32.mrf.mxu0
        %v2496 = vadd.f32 %v2456, %v2495
        %v2497 = vpop.f32.mrf.mxu0
        %v2498 = vpop.f32.mrf.mxu0
        %v2499 = vpop.f32.mrf.mxu0
        %2500 = vdwg.mxu0
        %2501 = vmatprep.subr.bf16.mxu0 0
        %2502 = vmatpush1.bf16.msra.mxu0 %v1956
        %2503 = vmatprep.subr.bf16.mxu0 0
        %2504 = vmatpush1.bf16.msra.mxu0 %v1955
        %2505 = vmatprep.subr.bf16.mxu0 0
        %2506 = vmatpush1.bf16.msra.mxu0 %v1954
        %2507 = vmatprep.subr.bf16.mxu0 0
        %2508 = vmatpush1.bf16.msra.mxu0 %v1953
        %2509 = vmatprep.subr.bf16.mxu0 0
        %2510 = vmatpush1.bf16.msra.mxu0 %v1952
        %2511 = vmatprep.subr.bf16.mxu0 0
        %2512 = vmatpush1.bf16.msra.mxu0 %v1951
        %2513 = vmatprep.subr.bf16.mxu0 0
        %2514 = vmatpush1.bf16.msra.mxu0 %v1950
        %2515 = vmatprep.subr.bf16.mxu0 0
        %2516 = vmatpush1.bf16.msra.mxu0 %v1949
        %2517 = vmatprep.subr.bf16.mxu0 0
        %2518 = vmatpush2.bf16.msra.mxu0 %v1964
        %2519 = vmatprep.subr.bf16.mxu0 0
        %2520 = vmatpush2.bf16.msra.mxu0 %v1963
        %2521 = vmatprep.subr.bf16.mxu0 0
        %2522 = vmatpush2.bf16.msra.mxu0 %v1962
        %2523 = vmatprep.subr.bf16.mxu0 0
        %2524 = vmatpush2.bf16.msra.mxu0 %v1961
        %2525 = vmatprep.subr.bf16.mxu0 0
        %2526 = vmatpush2.bf16.msra.mxu0 %v1960
        %2527 = vmatprep.subr.bf16.mxu0 0
        %2528 = vmatpush2.bf16.msra.mxu0 %v1959
        %2529 = vmatprep.subr.bf16.mxu0 0
        %2530 = vmatpush2.bf16.msra.mxu0 %v1958
        %2531 = vmatprep.subr.bf16.mxu0 0
        %2532 = vmatpush2.bf16.msra.mxu0 %v1957
        %2533 = vmatprep.mubr.bf16.mxu0 %v1010
        %2534 = vmatmul.mubr.bf16.gmra.mxu0 %v1008
        %v2535 = vpop.f32.mrf.mxu0
        %v2536 = vadd.f32 %v2496, %v2535
        %v2537 = vpop.f32.mrf.mxu0
        %v2538 = vpop.f32.mrf.mxu0
        %v2539 = vpop.f32.mrf.mxu0
        %2540 = vdwg.mxu0
        %2541 = vmatprep.subr.bf16.mxu0 0
        %2542 = vmatpush1.bf16.msra.mxu0 %v1972
        %2543 = vmatprep.subr.bf16.mxu0 0
        %2544 = vmatpush1.bf16.msra.mxu0 %v1971
        %2545 = vmatprep.subr.bf16.mxu0 0
        %2546 = vmatpush1.bf16.msra.mxu0 %v1970
        %2547 = vmatprep.subr.bf16.mxu0 0
        %2548 = vmatpush1.bf16.msra.mxu0 %v1969
        %2549 = vmatprep.subr.bf16.mxu0 0
        %2550 = vmatpush1.bf16.msra.mxu0 %v1968
        %2551 = vmatprep.subr.bf16.mxu0 0
        %2552 = vmatpush1.bf16.msra.mxu0 %v1967
        %2553 = vmatprep.subr.bf16.mxu0 0
        %2554 = vmatpush1.bf16.msra.mxu0 %v1966
        %2555 = vmatprep.subr.bf16.mxu0 0
        %2556 = vmatpush1.bf16.msra.mxu0 %v1965
        %2557 = vmatprep.subr.bf16.mxu0 0
        %2558 = vmatpush2.bf16.msra.mxu0 %v1980
        %2559 = vmatprep.subr.bf16.mxu0 0
        %2560 = vmatpush2.bf16.msra.mxu0 %v1979
        %2561 = vmatprep.subr.bf16.mxu0 0
        %2562 = vmatpush2.bf16.msra.mxu0 %v1978
        %2563 = vmatprep.subr.bf16.mxu0 0
        %2564 = vmatpush2.bf16.msra.mxu0 %v1977
        %2565 = vmatprep.subr.bf16.mxu0 0
        %2566 = vmatpush2.bf16.msra.mxu0 %v1976
        %2567 = vmatprep.subr.bf16.mxu0 0
        %2568 = vmatpush2.bf16.msra.mxu0 %v1975
        %2569 = vmatprep.subr.bf16.mxu0 0
        %2570 = vmatpush2.bf16.msra.mxu0 %v1974
        %2571 = vmatprep.subr.bf16.mxu0 0
        %2572 = vmatpush2.bf16.msra.mxu0 %v1973
        %2573 = vmatprep.mubr.bf16.mxu0 %v1026
        %2574 = vmatmul.mubr.bf16.gmra.mxu0 %v1018
        %v2575 = vpop.f32.mrf.mxu0
        %v2576 = vadd.f32 %v2536, %v2575
        %v2577 = vpop.f32.mrf.mxu0
        %v2578 = vpop.f32.mrf.mxu0
        %v2579 = vpop.f32.mrf.mxu0
        %2580 = vdwg.mxu0
        %2581 = vmatprep.subr.bf16.mxu0 0
        %2582 = vmatpush1.bf16.msra.mxu0 %v1988
        %2583 = vmatprep.subr.bf16.mxu0 0
        %2584 = vmatpush1.bf16.msra.mxu0 %v1987
        %2585 = vmatprep.subr.bf16.mxu0 0
        %2586 = vmatpush1.bf16.msra.mxu0 %v1986
        %2587 = vmatprep.subr.bf16.mxu0 0
        %2588 = vmatpush1.bf16.msra.mxu0 %v1985
        %2589 = vmatprep.subr.bf16.mxu0 0
        %2590 = vmatpush1.bf16.msra.mxu0 %v1984
        %2591 = vmatprep.subr.bf16.mxu0 0
        %2592 = vmatpush1.bf16.msra.mxu0 %v1983
        %2593 = vmatprep.subr.bf16.mxu0 0
        %2594 = vmatpush1.bf16.msra.mxu0 %v1982
        %2595 = vmatprep.subr.bf16.mxu0 0
        %2596 = vmatpush1.bf16.msra.mxu0 %v1981
        %2597 = vmatprep.subr.bf16.mxu0 0
        %2598 = vmatpush2.bf16.msra.mxu0 %v1996
        %2599 = vmatprep.subr.bf16.mxu0 0
        %2600 = vmatpush2.bf16.msra.mxu0 %v1995
        %2601 = vmatprep.subr.bf16.mxu0 0
        %2602 = vmatpush2.bf16.msra.mxu0 %v1994
        %2603 = vmatprep.subr.bf16.mxu0 0
        %2604 = vmatpush2.bf16.msra.mxu0 %v1993
        %2605 = vmatprep.subr.bf16.mxu0 0
        %2606 = vmatpush2.bf16.msra.mxu0 %v1992
        %2607 = vmatprep.subr.bf16.mxu0 0
        %2608 = vmatpush2.bf16.msra.mxu0 %v1991
        %2609 = vmatprep.subr.bf16.mxu0 0
        %2610 = vmatpush2.bf16.msra.mxu0 %v1990
        %2611 = vmatprep.subr.bf16.mxu0 0
        %2612 = vmatpush2.bf16.msra.mxu0 %v1989
        %2613 = vmatprep.mubr.bf16.mxu0 %v1027
        %2614 = vmatmul.mubr.bf16.gmra.mxu0 %v1025
        %v2615 = vpop.f32.mrf.mxu0
        %v2616 = vadd.f32 %v2576, %v2615
        %v2617 = vpop.f32.mrf.mxu0
        %v2618 = vpop.f32.mrf.mxu0
        %v2619 = vpop.f32.mrf.mxu0
        %2620 = vdwg.mxu0
        %2621 = vmatprep.subr.bf16.mxu0 0
        %2622 = vmatpush1.bf16.msra.mxu0 %v2004
        %2623 = vmatprep.subr.bf16.mxu0 0
        %2624 = vmatpush1.bf16.msra.mxu0 %v2003
        %2625 = vmatprep.subr.bf16.mxu0 0
        %2626 = vmatpush1.bf16.msra.mxu0 %v2002
        %2627 = vmatprep.subr.bf16.mxu0 0
        %2628 = vmatpush1.bf16.msra.mxu0 %v2001
        %2629 = vmatprep.subr.bf16.mxu0 0
        %2630 = vmatpush1.bf16.msra.mxu0 %v2000
        %2631 = vmatprep.subr.bf16.mxu0 0
        %2632 = vmatpush1.bf16.msra.mxu0 %v1999
        %2633 = vmatprep.subr.bf16.mxu0 0
        %2634 = vmatpush1.bf16.msra.mxu0 %v1998
        %2635 = vmatprep.subr.bf16.mxu0 0
        %2636 = vmatpush1.bf16.msra.mxu0 %v1997
        %2637 = vmatprep.subr.bf16.mxu0 0
        %2638 = vmatpush2.bf16.msra.mxu0 %v2012
        %2639 = vmatprep.subr.bf16.mxu0 0
        %2640 = vmatpush2.bf16.msra.mxu0 %v2011
        %2641 = vmatprep.subr.bf16.mxu0 0
        %2642 = vmatpush2.bf16.msra.mxu0 %v2010
        %2643 = vmatprep.subr.bf16.mxu0 0
        %2644 = vmatpush2.bf16.msra.mxu0 %v2009
        %2645 = vmatprep.subr.bf16.mxu0 0
        %2646 = vmatpush2.bf16.msra.mxu0 %v2008
        %2647 = vmatprep.subr.bf16.mxu0 0
        %2648 = vmatpush2.bf16.msra.mxu0 %v2007
        %2649 = vmatprep.subr.bf16.mxu0 0
        %2650 = vmatpush2.bf16.msra.mxu0 %v2006
        %2651 = vmatprep.subr.bf16.mxu0 0
        %2652 = vmatpush2.bf16.msra.mxu0 %v2005
        %2653 = vmatprep.mubr.bf16.mxu0 %v1043
        %2654 = vmatmul.mubr.bf16.gmra.mxu0 %v1035
        %v2655 = vpop.f32.mrf.mxu0
        %v2656 = vadd.f32 %v2616, %v2655
        %v2657 = vpop.f32.mrf.mxu0
        %v2658 = vpop.f32.mrf.mxu0
        %v2659 = vpop.f32.mrf.mxu0
        %2660 = vdwg.mxu0
        %2661 = vmatprep.subr.bf16.mxu0 0
        %2662 = vmatpush1.bf16.msra.mxu0 %v2020
        %2663 = vmatprep.subr.bf16.mxu0 0
        %2664 = vmatpush1.bf16.msra.mxu0 %v2019
        %2665 = vmatprep.subr.bf16.mxu0 0
        %2666 = vmatpush1.bf16.msra.mxu0 %v2018
        %2667 = vmatprep.subr.bf16.mxu0 0
        %2668 = vmatpush1.bf16.msra.mxu0 %v2017
        %2669 = vmatprep.subr.bf16.mxu0 0
        %2670 = vmatpush1.bf16.msra.mxu0 %v2016
        %2671 = vmatprep.subr.bf16.mxu0 0
        %2672 = vmatpush1.bf16.msra.mxu0 %v2015
        %2673 = vmatprep.subr.bf16.mxu0 0
        %2674 = vmatpush1.bf16.msra.mxu0 %v2014
        %2675 = vmatprep.subr.bf16.mxu0 0
        %2676 = vmatpush1.bf16.msra.mxu0 %v2013
        %2677 = vmatprep.subr.bf16.mxu0 0
        %2678 = vmatpush2.bf16.msra.mxu0 %v2028
        %2679 = vmatprep.subr.bf16.mxu0 0
        %2680 = vmatpush2.bf16.msra.mxu0 %v2027
        %2681 = vmatprep.subr.bf16.mxu0 0
        %2682 = vmatpush2.bf16.msra.mxu0 %v2026
        %2683 = vmatprep.subr.bf16.mxu0 0
        %2684 = vmatpush2.bf16.msra.mxu0 %v2025
        %2685 = vmatprep.subr.bf16.mxu0 0
        %2686 = vmatpush2.bf16.msra.mxu0 %v2024
        %2687 = vmatprep.subr.bf16.mxu0 0
        %2688 = vmatpush2.bf16.msra.mxu0 %v2023
        %2689 = vmatprep.subr.bf16.mxu0 0
        %2690 = vmatpush2.bf16.msra.mxu0 %v2022
        %2691 = vmatprep.subr.bf16.mxu0 0
        %2692 = vmatpush2.bf16.msra.mxu0 %v2021
        %2693 = vmatprep.mubr.bf16.mxu0 %v1044
        %2694 = vmatmul.mubr.bf16.gmra.mxu0 %v1042
        %v2695 = vpop.f32.mrf.mxu0
        %v2696 = vadd.f32 %v2656, %v2695
        %v2697 = vpop.f32.mrf.mxu0
        %v2698 = vpop.f32.mrf.mxu0
        %v2699 = vpop.f32.mrf.mxu0
        %2700 = vdwg.mxu0
        %v2701 = vld [vmem:[%s1] sm:$0xff]
        %2702 = vst [vmem:[#allocation2] sm:$0xff] %v2701
        %v2703 = vld [vmem:[#allocation2 + $0x1] sm:$0xf]
        %v2704 = vadd.f32 %v2703, %v2696
        %2705 = vst [vmem:[#allocation2 + $0x1] sm:$0xf] %v2704
        %v2706 = vld [vmem:[#allocation2] sm:$0xff]
        %v2707 = vlaneseq
        %v2708 = vand.u32 %v2707, 127
        %vm2709 = vcmp.lt.s32.totalorder %v2708, 5
        %v2710 = vsel %vm2709, 0.0, -1e+30
        %v2711 = vld [vmem:[%s7] sm:$0x1]
        %v2712 = vld [vmem:[%s8] sm:$0x1]
        %2713 = vadd.xlane.f32.xlu0 %v2706
        %v2714 = vpop.xlane.xlu0 %2713
        %v2715 = vrcp.pop 128.0
        %v2716 = vmul.f32 %v2714, %v2715
        %v2717 = vsub.f32 %v2706, %v2716
        %v2718 = vmul.f32 %v2717, %v2717
        %2719 = vadd.xlane.f32.xlu0 %v2718
        %v2720 = vpop.xlane.xlu0 %2719
        %v2721 = vmul.f32 %v2720, %v2715
        %v2722 = vadd.f32 %v2721, 1e-06
        %v2723 = vrsqrt.pop %v2722
        %v2724 = vmul.f32 %v2717, %v2723
        %v2726 = vlaneseq
        %v2727 = vshrl.u32 %v2726, 7
        %v2728 = vsub.s32 0, %v2727
        %v2729 = vrot.slane %v2711, %v2728
        %v2731 = vmul.f32 %v2724, %v2729
        %v2733 = vlaneseq
        %v2734 = vshrl.u32 %v2733, 7
        %v2735 = vsub.s32 0, %v2734
        %v2736 = vrot.slane %v2712, %v2735
        %v2738 = vadd.f32 %v2731, %v2736
        %v2739 = vpack.c.bf16 %v2738, %v2738
        %v2740 = vld [vmem:[%s3] sm:$0xff]
        %v2741 = vld [vmem:[%s3 + $0x8] sm:$0xf]
        %v2742 = vld [vmem:[%s3 + $0xc] sm:$0xff]
        %v2743 = vld [vmem:[%s3 + $0x14] sm:$0xf]
        %v2744 = vld [vmem:[%s3 + $0x18] sm:$0xff]
        %v2745 = vld [vmem:[%s3 + $0x20] sm:$0xf]
        %v2746 = vld [vmem:[%s3 + $0x24] sm:$0xff]
        %v2747 = vld [vmem:[%s3 + $0x2c] sm:$0xf]
        %v2748 = vld [vmem:[%s3 + $0x30] sm:$0xff]
        %v2749 = vld [vmem:[%s3 + $0x38] sm:$0xf]
        %v2750 = vld [vmem:[%s3 + $0x3c] sm:$0xff]
        %v2751 = vld [vmem:[%s3 + $0x44] sm:$0xf]
        %v2752 = vld [vmem:[%s3 + $0x48] sm:$0xff]
        %v2753 = vld [vmem:[%s3 + $0x50] sm:$0xf]
        %v2754 = vld [vmem:[%s3 + $0x54] sm:$0xff]
        %v2755 = vld [vmem:[%s3 + $0x5c] sm:$0xf]
        %v2756 = vld [vmem:[%s3 + $0x60] sm:$0xff]
        %v2757 = vld [vmem:[%s3 + $0x68] sm:$0xf]
        %v2758 = vld [vmem:[%s3 + $0x6c] sm:$0xff]
        %v2759 = vld [vmem:[%s3 + $0x74] sm:$0xf]
        %v2760 = vld [vmem:[%s3 + $0x78] sm:$0xff]
        %v2761 = vld [vmem:[%s3 + $0x80] sm:$0xf]
        %v2762 = vld [vmem:[%s3 + $0x84] sm:$0xff]
        %v2763 = vld [vmem:[%s3 + $0x8c] sm:$0xf]
        %v2764 = vld [vmem:[%s3 + $0x90] sm:$0xff]
        %v2765 = vld [vmem:[%s3 + $0x98] sm:$0xf]
        %v2766 = vld [vmem:[%s3 + $0x9c] sm:$0xff]
        %v2767 = vld [vmem:[%s3 + $0xa4] sm:$0xf]
        %v2768 = vld [vmem:[%s3 + $0xa8] sm:$0xff]
        %v2769 = vld [vmem:[%s3 + $0xb0] sm:$0xf]
        %v2770 = vld [vmem:[%s3 + $0xb4] sm:$0xff]
        %v2771 = vld [vmem:[%s3 + $0xbc] sm:$0xf]
        %v2772 = vld [vmem:[%s4] sm:$0x7]
        %v2774 = vlaneseq
        %v2775 = vshrl.u32 %v2774, 7
        %v2776 = vsub.s32 0, %v2775
        %v2777 = vrot.slane %v2772, %v2776
        %v2778 = vlaneseq
        %v2779 = vshrl.u32 %v2778, 7
        %v2780 = vsub.s32 1, %v2779
        %v2781 = vrot.slane %v2772, %v2780
        %v2782 = vlaneseq
        %v2783 = vshrl.u32 %v2782, 7
        %v2784 = vsub.s32 2, %v2783
        %v2785 = vrot.slane %v2772, %v2784
        %v2821 = vunpack.c.l.b16 %v2740
        %v2822 = vunpack.c.h.b16 %v2740
        %v2823 = vunpack.c.l.b16 %v2741
        %v2824 = vunpack.c.l.b16 %v2742
        %v2825 = vunpack.c.h.b16 %v2742
        %v2826 = vunpack.c.l.b16 %v2743
        %v2827 = vunpack.c.l.b16 %v2744
        %v2828 = vunpack.c.h.b16 %v2744
        %v2829 = vunpack.c.l.b16 %v2745
        %v2830 = vunpack.c.l.b16 %v2746
        %v2831 = vunpack.c.h.b16 %v2746
        %v2832 = vunpack.c.l.b16 %v2747
        %v2833 = vunpack.c.l.b16 %v2748
        %v2834 = vunpack.c.h.b16 %v2748
        %v2835 = vunpack.c.l.b16 %v2749
        %v2836 = vunpack.c.l.b16 %v2750
        %v2837 = vunpack.c.h.b16 %v2750
        %v2838 = vunpack.c.l.b16 %v2751
        %v2839 = vunpack.c.l.b16 %v2752
        %v2840 = vunpack.c.h.b16 %v2752
        %v2841 = vunpack.c.l.b16 %v2753
        %v2842 = vunpack.c.l.b16 %v2754
        %v2843 = vunpack.c.h.b16 %v2754
        %v2844 = vunpack.c.l.b16 %v2755
        %v2845 = vunpack.c.l.b16 %v2756
        %v2846 = vunpack.c.h.b16 %v2756
        %v2847 = vunpack.c.l.b16 %v2757
        %v2848 = vunpack.c.l.b16 %v2758
        %v2849 = vunpack.c.h.b16 %v2758
        %v2850 = vunpack.c.l.b16 %v2759
        %v2851 = vunpack.c.l.b16 %v2760
        %v2852 = vunpack.c.h.b16 %v2760
        %v2853 = vunpack.c.l.b16 %v2761
        %v2854 = vunpack.c.l.b16 %v2762
        %v2855 = vunpack.c.h.b16 %v2762
        %v2856 = vunpack.c.l.b16 %v2763
        %v2857 = vunpack.c.l.b16 %v2764
        %v2858 = vunpack.c.h.b16 %v2764
        %v2859 = vunpack.c.l.b16 %v2765
        %v2860 = vunpack.c.l.b16 %v2766
        %v2861 = vunpack.c.h.b16 %v2766
        %v2862 = vunpack.c.l.b16 %v2767
        %v2863 = vunpack.c.l.b16 %v2768
        %v2864 = vunpack.c.h.b16 %v2768
        %v2865 = vunpack.c.l.b16 %v2769
        %v2866 = vunpack.c.l.b16 %v2770
        %v2867 = vunpack.c.h.b16 %v2770
        %v2868 = vunpack.c.l.b16 %v2771
        %v2869 = vpack.c.b16 %v2824, %v2821
        %v2870 = vpack.c.b16 %v2825, %v2822
        %v2871 = vpack.c.b16 %v2826, %v2823
        %v2872 = vpack.c.b16 %v2830, %v2827
        %v2873 = vpack.c.b16 %v2831, %v2828
        %v2874 = vpack.c.b16 %v2832, %v2829
        %v2875 = vpack.c.b16 %v2836, %v2833
        %v2876 = vpack.c.b16 %v2837, %v2834
        %v2877 = vpack.c.b16 %v2838, %v2835
        %v2878 = vpack.c.b16 %v2842, %v2839
        %v2879 = vpack.c.b16 %v2843, %v2840
        %v2880 = vpack.c.b16 %v2844, %v2841
        %v2881 = vpack.c.b16 %v2848, %v2845
        %v2882 = vpack.c.b16 %v2849, %v2846
        %v2883 = vpack.c.b16 %v2850, %v2847
        %v2884 = vpack.c.b16 %v2854, %v2851
        %v2885 = vpack.c.b16 %v2855, %v2852
        %v2886 = vpack.c.b16 %v2856, %v2853
        %v2887 = vpack.c.b16 %v2860, %v2857
        %v2888 = vpack.c.b16 %v2861, %v2858
        %v2889 = vpack.c.b16 %v2862, %v2859
        %v2890 = vpack.c.b16 %v2866, %v2863
        %v2891 = vpack.c.b16 %v2867, %v2864
        %v2892 = vpack.c.b16 %v2868, %v2865
        %2917 = vmatprep.subr.bf16.mxu0 %v2891
        %2918 = vmatpush1.bf16.msra.mxu0 %v2890
        %2919 = vmatprep.subr.bf16.mxu0 %v2888
        %2920 = vmatpush1.bf16.msra.mxu0 %v2887
        %2921 = vmatprep.subr.bf16.mxu0 %v2885
        %2922 = vmatpush1.bf16.msra.mxu0 %v2884
        %2923 = vmatprep.subr.bf16.mxu0 %v2882
        %2924 = vmatpush1.bf16.msra.mxu0 %v2881
        %2925 = vmatprep.subr.bf16.mxu0 %v2879
        %2926 = vmatpush1.bf16.msra.mxu0 %v2878
        %2927 = vmatprep.subr.bf16.mxu0 %v2876
        %2928 = vmatpush1.bf16.msra.mxu0 %v2875
        %2929 = vmatprep.subr.bf16.mxu0 %v2873
        %2930 = vmatpush1.bf16.msra.mxu0 %v2872
        %2931 = vmatprep.subr.bf16.mxu0 %v2870
        %2932 = vmatpush1.bf16.msra.mxu0 %v2869
        %2933 = vmatprep.subr.bf16.mxu0 0
        %2934 = vmatpush2.bf16.msra.mxu0 0
        %2935 = vmatprep.subr.bf16.mxu0 0
        %2936 = vmatpush2.bf16.msra.mxu0 0
        %2937 = vmatprep.subr.bf16.mxu0 0
        %2938 = vmatpush2.bf16.msra.mxu0 0
        %2939 = vmatprep.subr.bf16.mxu0 0
        %2940 = vmatpush2.bf16.msra.mxu0 0
        %2941 = vmatprep.subr.bf16.mxu0 0
        %2942 = vmatpush2.bf16.msra.mxu0 0
        %2943 = vmatprep.subr.bf16.mxu0 0
        %2944 = vmatpush2.bf16.msra.mxu0 0
        %2945 = vmatprep.subr.bf16.mxu0 0
        %2946 = vmatpush2.bf16.msra.mxu0 0
        %2947 = vmatprep.subr.bf16.mxu0 0
        %2948 = vmatpush2.bf16.msra.mxu0 0
        %2949 = vmatprep.mubr.bf16.mxu0 0
        %2950 = vmatmul.mubr.bf16.gmra.mxu0 %v2739
        %v2951 = vpop.f32.mrf.mxu0
        %v2952 = vadd.f32 %v2777, %v2951
        %v2953 = vpop.f32.mrf.mxu0
        %v2954 = vadd.f32 %v2781, %v2953
        %v2955 = vpop.f32.mrf.mxu0
        %v2956 = vpop.f32.mrf.mxu0
        %2957 = vdwg.mxu0
        %2958 = vmatprep.subr.bf16.mxu0 0
        %2959 = vmatpush1.bf16.msra.mxu0 %v2892
        %2960 = vmatprep.subr.bf16.mxu0 0
        %2961 = vmatpush1.bf16.msra.mxu0 %v2889
        %2962 = vmatprep.subr.bf16.mxu0 0
        %2963 = vmatpush1.bf16.msra.mxu0 %v2886
        %2964 = vmatprep.subr.bf16.mxu0 0
        %2965 = vmatpush1.bf16.msra.mxu0 %v2883
        %2966 = vmatprep.subr.bf16.mxu0 0
        %2967 = vmatpush1.bf16.msra.mxu0 %v2880
        %2968 = vmatprep.subr.bf16.mxu0 0
        %2969 = vmatpush1.bf16.msra.mxu0 %v2877
        %2970 = vmatprep.subr.bf16.mxu0 0
        %2971 = vmatpush1.bf16.msra.mxu0 %v2874
        %2972 = vmatprep.subr.bf16.mxu0 0
        %2973 = vmatpush1.bf16.msra.mxu0 %v2871
        %2974 = vmatprep.subr.bf16.mxu0 0
        %2975 = vmatpush2.bf16.msra.mxu0 0
        %2976 = vmatprep.subr.bf16.mxu0 0
        %2977 = vmatpush2.bf16.msra.mxu0 0
        %2978 = vmatprep.subr.bf16.mxu0 0
        %2979 = vmatpush2.bf16.msra.mxu0 0
        %2980 = vmatprep.subr.bf16.mxu0 0
        %2981 = vmatpush2.bf16.msra.mxu0 0
        %2982 = vmatprep.subr.bf16.mxu0 0
        %2983 = vmatpush2.bf16.msra.mxu0 0
        %2984 = vmatprep.subr.bf16.mxu0 0
        %2985 = vmatpush2.bf16.msra.mxu0 0
        %2986 = vmatprep.subr.bf16.mxu0 0
        %2987 = vmatpush2.bf16.msra.mxu0 0
        %2988 = vmatprep.subr.bf16.mxu0 0
        %2989 = vmatpush2.bf16.msra.mxu0 0
        %2990 = vmatprep.mubr.bf16.mxu0 0
        %2991 = vmatmul.mubr.bf16.gmra.mxu0 %v2739
        %v2992 = vpop.f32.mrf.mxu0
        %v2993 = vadd.f32 %v2785, %v2992
        %v2994 = vpop.f32.mrf.mxu0
        %v2995 = vpop.f32.mrf.mxu0
        %v2996 = vpop.f32.mrf.mxu0
        %2997 = vdwg.mxu0
        %v2998 = vpack.c.bf16 %v2952, %v2952
        %v2999 = vpack.c.bf16 %v2954, %v2954
        %v3000 = vpack.c.bf16 %v2993, %v2993
        %vm3001 = vcmask 261120
        %v3003 = vsel %vm3001, %v2998, 0
        %v3006 = vsel %vm3001, %v2999, 0
        %3008 = vmatprep.subr.bf16.mxu0 0
        %3009 = vmatpush1.bf16.xpose.msra.mxu0 0
        %3010 = vmatprep.subr.bf16.mxu0 0
        %3011 = vmatpush1.bf16.xpose.msra.mxu0 0
        %3012 = vmatprep.subr.bf16.mxu0 0
        %3013 = vmatpush1.bf16.xpose.msra.mxu0 0
        %3014 = vmatprep.subr.bf16.mxu0 0
        %3015 = vmatpush1.bf16.xpose.msra.mxu0 0
        %3016 = vmatprep.subr.bf16.mxu0 0
        %3017 = vmatpush1.bf16.xpose.msra.mxu0 0
        %3018 = vmatprep.subr.bf16.mxu0 0
        %3019 = vmatpush1.bf16.xpose.msra.mxu0 0
        %3020 = vmatprep.subr.bf16.mxu0 0
        %3021 = vmatpush1.bf16.xpose.msra.mxu0 0
        %3022 = vmatprep.subr.bf16.mxu0 0
        %3023 = vmatpush1.bf16.xpose.msra.mxu0 %v3006
        %3024 = vmatprep.subr.bf16.mxu0 0
        %3025 = vmatpush2.bf16.xpose.msra.mxu0 0
        %3026 = vmatprep.subr.bf16.mxu0 0
        %3027 = vmatpush2.bf16.xpose.msra.mxu0 0
        %3028 = vmatprep.subr.bf16.mxu0 0
        %3029 = vmatpush2.bf16.xpose.msra.mxu0 0
        %3030 = vmatprep.subr.bf16.mxu0 0
        %3031 = vmatpush2.bf16.xpose.msra.mxu0 0
        %3032 = vmatprep.subr.bf16.mxu0 0
        %3033 = vmatpush2.bf16.xpose.msra.mxu0 0
        %3034 = vmatprep.subr.bf16.mxu0 0
        %3035 = vmatpush2.bf16.xpose.msra.mxu0 0
        %3036 = vmatprep.subr.bf16.mxu0 0
        %3037 = vmatpush2.bf16.xpose.msra.mxu0 0
        %3038 = vmatprep.subr.bf16.mxu0 0
        %3039 = vmatpush2.bf16.xpose.msra.mxu0 0
        %3040 = vmatprep.mubr.bf16.mxu0 0
        %3041 = vmatmul.mubr.bf16.gmra.mxu0 %v3003
        %v3042 = vpop.f32.mrf.mxu0
        %v3043 = vadd.f32 0.0, %v3042
        %v3044 = vpop.f32.mrf.mxu0
        %v3045 = vpop.f32.mrf.mxu0
        %v3046 = vpop.f32.mrf.mxu0
        %3047 = vdwg.mxu0
        %v3048 = vmul.f32 %v3043, 0.17677669
        %v3049 = vadd.f32 %v3048, %v2710
        %vm3050 = vcmask 64512
        %v3051 = vsel %vm3050, %v3049, -inf
        %3052 = vmax.xlane.f32.xlu0 %v3051
        %v3053 = vpop.xlane.xlu0 %3052
        %v3054 = vsub.f32 %v3049, %v3053
        %v3055 = vmul.f32 %v3054, 1.442695
        %v3056 = vpow.pop %v3055
        %v3057 = vsel %vm3050, %v3056, 0.0
        %3058 = vadd.xlane.f32.xlu0 %v3057
        %v3059 = vpop.xlane.xlu0 %3058
        %v3060 = vrcp.pop %v3059
        %v3061 = vmul.f32 %v3056, %v3060
        %v3062 = vpack.c.bf16 %v3061, %v3061
        %v3064 = vsel %vm3050, %v3062, 0
        %vm3066 = vcmask 1043456
        %v3068 = vsel %vm3066, %v3000, 0
        %3070 = vmatprep.subr.bf16.mxu0 0
        %3071 = vmatpush1.bf16.msra.mxu0 0
        %3072 = vmatprep.subr.bf16.mxu0 0
        %3073 = vmatpush1.bf16.msra.mxu0 0
        %3074 = vmatprep.subr.bf16.mxu0 0
        %3075 = vmatpush1.bf16.msra.mxu0 0
        %3076 = vmatprep.subr.bf16.mxu0 0
        %3077 = vmatpush1.bf16.msra.mxu0 0
        %3078 = vmatprep.subr.bf16.mxu0 0
        %3079 = vmatpush1.bf16.msra.mxu0 0
        %3080 = vmatprep.subr.bf16.mxu0 0
        %3081 = vmatpush1.bf16.msra.mxu0 0
        %3082 = vmatprep.subr.bf16.mxu0 0
        %3083 = vmatpush1.bf16.msra.mxu0 0
        %3084 = vmatprep.subr.bf16.mxu0 0
        %3085 = vmatpush1.bf16.msra.mxu0 %v3068
        %3086 = vmatprep.subr.bf16.mxu0 0
        %3087 = vmatpush2.bf16.msra.mxu0 0
        %3088 = vmatprep.subr.bf16.mxu0 0
        %3089 = vmatpush2.bf16.msra.mxu0 0
        %3090 = vmatprep.subr.bf16.mxu0 0
        %3091 = vmatpush2.bf16.msra.mxu0 0
        %3092 = vmatprep.subr.bf16.mxu0 0
        %3093 = vmatpush2.bf16.msra.mxu0 0
        %3094 = vmatprep.subr.bf16.mxu0 0
        %3095 = vmatpush2.bf16.msra.mxu0 0
        %3096 = vmatprep.subr.bf16.mxu0 0
        %3097 = vmatpush2.bf16.msra.mxu0 0
        %3098 = vmatprep.subr.bf16.mxu0 0
        %3099 = vmatpush2.bf16.msra.mxu0 0
        %3100 = vmatprep.subr.bf16.mxu0 0
        %3101 = vmatpush2.bf16.msra.mxu0 0
        %3102 = vmatprep.mubr.bf16.mxu0 0
        %3103 = vmatmul.mubr.bf16.gmra.mxu0 %v3064
        %v3104 = vpop.f32.mrf.mxu0
        %v3105 = vadd.f32 0.0, %v3104
        %v3106 = vpop.f32.mrf.mxu0
        %v3107 = vpop.f32.mrf.mxu0
        %v3108 = vpop.f32.mrf.mxu0
        %3109 = vdwg.mxu0
        %3111 = vrot.lane.b32.xlu0 %v2998, 96
        %v3112 = vpop.permute.xlu0 %3111
        %3114 = vrot.lane.b32.xlu0 %v2999, 96
        %v3115 = vpop.permute.xlu0 %3114
        %v3117 = vsel %vm3001, %v3112, 0
        %v3120 = vsel %vm3001, %v3115, 0
        %3122 = vmatprep.subr.bf16.mxu0 0
        %3123 = vmatpush1.bf16.xpose.msra.mxu0 0
        %3124 = vmatprep.subr.bf16.mxu0 0
        %3125 = vmatpush1.bf16.xpose.msra.mxu0 0
        %3126 = vmatprep.subr.bf16.mxu0 0
        %3127 = vmatpush1.bf16.xpose.msra.mxu0 0
        %3128 = vmatprep.subr.bf16.mxu0 0
        %3129 = vmatpush1.bf16.xpose.msra.mxu0 0
        %3130 = vmatprep.subr.bf16.mxu0 0
        %3131 = vmatpush1.bf16.xpose.msra.mxu0 0
        %3132 = vmatprep.subr.bf16.mxu0 0
        %3133 = vmatpush1.bf16.xpose.msra.mxu0 0
        %3134 = vmatprep.subr.bf16.mxu0 0
        %3135 = vmatpush1.bf16.xpose.msra.mxu0 0
        %3136 = vmatprep.subr.bf16.mxu0 0
        %3137 = vmatpush1.bf16.xpose.msra.mxu0 %v3120
        %3138 = vmatprep.subr.bf16.mxu0 0
        %3139 = vmatpush2.bf16.xpose.msra.mxu0 0
        %3140 = vmatprep.subr.bf16.mxu0 0
        %3141 = vmatpush2.bf16.xpose.msra.mxu0 0
        %3142 = vmatprep.subr.bf16.mxu0 0
        %3143 = vmatpush2.bf16.xpose.msra.mxu0 0
        %3144 = vmatprep.subr.bf16.mxu0 0
        %3145 = vmatpush2.bf16.xpose.msra.mxu0 0
        %3146 = vmatprep.subr.bf16.mxu0 0
        %3147 = vmatpush2.bf16.xpose.msra.mxu0 0
        %3148 = vmatprep.subr.bf16.mxu0 0
        %3149 = vmatpush2.bf16.xpose.msra.mxu0 0
        %3150 = vmatprep.subr.bf16.mxu0 0
        %3151 = vmatpush2.bf16.xpose.msra.mxu0 0
        %3152 = vmatprep.subr.bf16.mxu0 0
        %3153 = vmatpush2.bf16.xpose.msra.mxu0 0
        %3154 = vmatprep.mubr.bf16.mxu0 0
        %3155 = vmatmul.mubr.bf16.gmra.mxu0 %v3117
        %v3156 = vpop.f32.mrf.mxu0
        %v3157 = vadd.f32 0.0, %v3156
        %v3158 = vpop.f32.mrf.mxu0
        %v3159 = vpop.f32.mrf.mxu0
        %v3160 = vpop.f32.mrf.mxu0
        %3161 = vdwg.mxu0
        %v3162 = vmul.f32 %v3157, 0.17677669
        %v3163 = vadd.f32 %v3162, %v2710
        %v3164 = vsel %vm3050, %v3163, -inf
        %3165 = vmax.xlane.f32.xlu0 %v3164
        %v3166 = vpop.xlane.xlu0 %3165
        %v3167 = vsub.f32 %v3163, %v3166
        %v3168 = vmul.f32 %v3167, 1.442695
        %v3169 = vpow.pop %v3168
        %v3170 = vsel %vm3050, %v3169, 0.0
        %3171 = vadd.xlane.f32.xlu0 %v3170
        %v3172 = vpop.xlane.xlu0 %3171
        %v3173 = vrcp.pop %v3172
        %v3174 = vmul.f32 %v3169, %v3173
        %v3175 = vpack.c.bf16 %v3174, %v3174
        %3177 = vrot.lane.b32.xlu0 %v3000, 96
        %v3178 = vpop.permute.xlu0 %3177
        %v3180 = vsel %vm3050, %v3175, 0
        %v3183 = vsel %vm3066, %v3178, 0
        %3185 = vmatprep.subr.bf16.mxu0 0
        %3186 = vmatpush1.bf16.msra.mxu0 0
        %3187 = vmatprep.subr.bf16.mxu0 0
        %3188 = vmatpush1.bf16.msra.mxu0 0
        %3189 = vmatprep.subr.bf16.mxu0 0
        %3190 = vmatpush1.bf16.msra.mxu0 0
        %3191 = vmatprep.subr.bf16.mxu0 0
        %3192 = vmatpush1.bf16.msra.mxu0 0
        %3193 = vmatprep.subr.bf16.mxu0 0
        %3194 = vmatpush1.bf16.msra.mxu0 0
        %3195 = vmatprep.subr.bf16.mxu0 0
        %3196 = vmatpush1.bf16.msra.mxu0 0
        %3197 = vmatprep.subr.bf16.mxu0 0
        %3198 = vmatpush1.bf16.msra.mxu0 0
        %3199 = vmatprep.subr.bf16.mxu0 0
        %3200 = vmatpush1.bf16.msra.mxu0 %v3183
        %3201 = vmatprep.subr.bf16.mxu0 0
        %3202 = vmatpush2.bf16.msra.mxu0 0
        %3203 = vmatprep.subr.bf16.mxu0 0
        %3204 = vmatpush2.bf16.msra.mxu0 0
        %3205 = vmatprep.subr.bf16.mxu0 0
        %3206 = vmatpush2.bf16.msra.mxu0 0
        %3207 = vmatprep.subr.bf16.mxu0 0
        %3208 = vmatpush2.bf16.msra.mxu0 0
        %3209 = vmatprep.subr.bf16.mxu0 0
        %3210 = vmatpush2.bf16.msra.mxu0 0
        %3211 = vmatprep.subr.bf16.mxu0 0
        %3212 = vmatpush2.bf16.msra.mxu0 0
        %3213 = vmatprep.subr.bf16.mxu0 0
        %3214 = vmatpush2.bf16.msra.mxu0 0
        %3215 = vmatprep.subr.bf16.mxu0 0
        %3216 = vmatpush2.bf16.msra.mxu0 0
        %3217 = vmatprep.mubr.bf16.mxu0 0
        %3218 = vmatmul.mubr.bf16.gmra.mxu0 %v3180
        %v3219 = vpop.f32.mrf.mxu0
        %v3220 = vadd.f32 0.0, %v3219
        %v3221 = vpop.f32.mrf.mxu0
        %v3222 = vpop.f32.mrf.mxu0
        %v3223 = vpop.f32.mrf.mxu0
        %3224 = vdwg.mxu0
        %3225 = vrot.lane.b32.xlu0 %v2998, 64
        %v3226 = vpop.permute.xlu0 %3225
        %3227 = vrot.lane.b32.xlu0 %v2999, 64
        %v3228 = vpop.permute.xlu0 %3227
        %v3230 = vsel %vm3001, %v3226, 0
        %v3233 = vsel %vm3001, %v3228, 0
        %3235 = vmatprep.subr.bf16.mxu0 0
        %3236 = vmatpush1.bf16.xpose.msra.mxu0 0
        %3237 = vmatprep.subr.bf16.mxu0 0
        %3238 = vmatpush1.bf16.xpose.msra.mxu0 0
        %3239 = vmatprep.subr.bf16.mxu0 0
        %3240 = vmatpush1.bf16.xpose.msra.mxu0 0
        %3241 = vmatprep.subr.bf16.mxu0 0
        %3242 = vmatpush1.bf16.xpose.msra.mxu0 0
        %3243 = vmatprep.subr.bf16.mxu0 0
        %3244 = vmatpush1.bf16.xpose.msra.mxu0 0
        %3245 = vmatprep.subr.bf16.mxu0 0
        %3246 = vmatpush1.bf16.xpose.msra.mxu0 0
        %3247 = vmatprep.subr.bf16.mxu0 0
        %3248 = vmatpush1.bf16.xpose.msra.mxu0 0
        %3249 = vmatprep.subr.bf16.mxu0 0
        %3250 = vmatpush1.bf16.xpose.msra.mxu0 %v3233
        %3251 = vmatprep.subr.bf16.mxu0 0
        %3252 = vmatpush2.bf16.xpose.msra.mxu0 0
        %3253 = vmatprep.subr.bf16.mxu0 0
        %3254 = vmatpush2.bf16.xpose.msra.mxu0 0
        %3255 = vmatprep.subr.bf16.mxu0 0
        %3256 = vmatpush2.bf16.xpose.msra.mxu0 0
        %3257 = vmatprep.subr.bf16.mxu0 0
        %3258 = vmatpush2.bf16.xpose.msra.mxu0 0
        %3259 = vmatprep.subr.bf16.mxu0 0
        %3260 = vmatpush2.bf16.xpose.msra.mxu0 0
        %3261 = vmatprep.subr.bf16.mxu0 0
        %3262 = vmatpush2.bf16.xpose.msra.mxu0 0
        %3263 = vmatprep.subr.bf16.mxu0 0
        %3264 = vmatpush2.bf16.xpose.msra.mxu0 0
        %3265 = vmatprep.subr.bf16.mxu0 0
        %3266 = vmatpush2.bf16.xpose.msra.mxu0 0
        %3267 = vmatprep.mubr.bf16.mxu0 0
        %3268 = vmatmul.mubr.bf16.gmra.mxu0 %v3230
        %v3269 = vpop.f32.mrf.mxu0
        %v3270 = vadd.f32 0.0, %v3269
        %v3271 = vpop.f32.mrf.mxu0
        %v3272 = vpop.f32.mrf.mxu0
        %v3273 = vpop.f32.mrf.mxu0
        %3274 = vdwg.mxu0
        %v3275 = vmul.f32 %v3270, 0.17677669
        %v3276 = vadd.f32 %v3275, %v2710
        %v3277 = vsel %vm3050, %v3276, -inf
        %3278 = vmax.xlane.f32.xlu0 %v3277
        %v3279 = vpop.xlane.xlu0 %3278
        %v3280 = vsub.f32 %v3276, %v3279
        %v3281 = vmul.f32 %v3280, 1.442695
        %v3282 = vpow.pop %v3281
        %v3283 = vsel %vm3050, %v3282, 0.0
        %3284 = vadd.xlane.f32.xlu0 %v3283
        %v3285 = vpop.xlane.xlu0 %3284
        %v3286 = vrcp.pop %v3285
        %v3287 = vmul.f32 %v3282, %v3286
        %v3288 = vpack.c.bf16 %v3287, %v3287
        %3289 = vrot.lane.b32.xlu0 %v3000, 64
        %v3290 = vpop.permute.xlu0 %3289
        %v3292 = vsel %vm3050, %v3288, 0
        %v3295 = vsel %vm3066, %v3290, 0
        %3297 = vmatprep.subr.bf16.mxu0 0
        %3298 = vmatpush1.bf16.msra.mxu0 0
        %3299 = vmatprep.subr.bf16.mxu0 0
        %3300 = vmatpush1.bf16.msra.mxu0 0
        %3301 = vmatprep.subr.bf16.mxu0 0
        %3302 = vmatpush1.bf16.msra.mxu0 0
        %3303 = vmatprep.subr.bf16.mxu0 0
        %3304 = vmatpush1.bf16.msra.mxu0 0
        %3305 = vmatprep.subr.bf16.mxu0 0
        %3306 = vmatpush1.bf16.msra.mxu0 0
        %3307 = vmatprep.subr.bf16.mxu0 0
        %3308 = vmatpush1.bf16.msra.mxu0 0
        %3309 = vmatprep.subr.bf16.mxu0 0
        %3310 = vmatpush1.bf16.msra.mxu0 0
        %3311 = vmatprep.subr.bf16.mxu0 0
        %3312 = vmatpush1.bf16.msra.mxu0 %v3295
        %3313 = vmatprep.subr.bf16.mxu0 0
        %3314 = vmatpush2.bf16.msra.mxu0 0
        %3315 = vmatprep.subr.bf16.mxu0 0
        %3316 = vmatpush2.bf16.msra.mxu0 0
        %3317 = vmatprep.subr.bf16.mxu0 0
        %3318 = vmatpush2.bf16.msra.mxu0 0
        %3319 = vmatprep.subr.bf16.mxu0 0
        %3320 = vmatpush2.bf16.msra.mxu0 0
        %3321 = vmatprep.subr.bf16.mxu0 0
        %3322 = vmatpush2.bf16.msra.mxu0 0
        %3323 = vmatprep.subr.bf16.mxu0 0
        %3324 = vmatpush2.bf16.msra.mxu0 0
        %3325 = vmatprep.subr.bf16.mxu0 0
        %3326 = vmatpush2.bf16.msra.mxu0 0
        %3327 = vmatprep.subr.bf16.mxu0 0
        %3328 = vmatpush2.bf16.msra.mxu0 0
        %3329 = vmatprep.mubr.bf16.mxu0 0
        %3330 = vmatmul.mubr.bf16.gmra.mxu0 %v3292
        %v3331 = vpop.f32.mrf.mxu0
        %v3332 = vadd.f32 0.0, %v3331
        %v3333 = vpop.f32.mrf.mxu0
        %v3334 = vpop.f32.mrf.mxu0
        %v3335 = vpop.f32.mrf.mxu0
        %3336 = vdwg.mxu0
        %3337 = vrot.lane.b32.xlu0 %v2998, 32
        %v3338 = vpop.permute.xlu0 %3337
        %3339 = vrot.lane.b32.xlu0 %v2999, 32
        %v3340 = vpop.permute.xlu0 %3339
        %v3342 = vsel %vm3001, %v3338, 0
        %v3345 = vsel %vm3001, %v3340, 0
        %3347 = vmatprep.subr.bf16.mxu0 0
        %3348 = vmatpush1.bf16.xpose.msra.mxu0 0
        %3349 = vmatprep.subr.bf16.mxu0 0
        %3350 = vmatpush1.bf16.xpose.msra.mxu0 0
        %3351 = vmatprep.subr.bf16.mxu0 0
        %3352 = vmatpush1.bf16.xpose.msra.mxu0 0
        %3353 = vmatprep.subr.bf16.mxu0 0
        %3354 = vmatpush1.bf16.xpose.msra.mxu0 0
        %3355 = vmatprep.subr.bf16.mxu0 0
        %3356 = vmatpush1.bf16.xpose.msra.mxu0 0
        %3357 = vmatprep.subr.bf16.mxu0 0
        %3358 = vmatpush1.bf16.xpose.msra.mxu0 0
        %3359 = vmatprep.subr.bf16.mxu0 0
        %3360 = vmatpush1.bf16.xpose.msra.mxu0 0
        %3361 = vmatprep.subr.bf16.mxu0 0
        %3362 = vmatpush1.bf16.xpose.msra.mxu0 %v3345
        %3363 = vmatprep.subr.bf16.mxu0 0
        %3364 = vmatpush2.bf16.xpose.msra.mxu0 0
        %3365 = vmatprep.subr.bf16.mxu0 0
        %3366 = vmatpush2.bf16.xpose.msra.mxu0 0
        %3367 = vmatprep.subr.bf16.mxu0 0
        %3368 = vmatpush2.bf16.xpose.msra.mxu0 0
        %3369 = vmatprep.subr.bf16.mxu0 0
        %3370 = vmatpush2.bf16.xpose.msra.mxu0 0
        %3371 = vmatprep.subr.bf16.mxu0 0
        %3372 = vmatpush2.bf16.xpose.msra.mxu0 0
        %3373 = vmatprep.subr.bf16.mxu0 0
        %3374 = vmatpush2.bf16.xpose.msra.mxu0 0
        %3375 = vmatprep.subr.bf16.mxu0 0
        %3376 = vmatpush2.bf16.xpose.msra.mxu0 0
        %3377 = vmatprep.subr.bf16.mxu0 0
        %3378 = vmatpush2.bf16.xpose.msra.mxu0 0
        %3379 = vmatprep.mubr.bf16.mxu0 0
        %3380 = vmatmul.mubr.bf16.gmra.mxu0 %v3342
        %v3381 = vpop.f32.mrf.mxu0
        %v3382 = vadd.f32 0.0, %v3381
        %v3383 = vpop.f32.mrf.mxu0
        %v3384 = vpop.f32.mrf.mxu0
        %v3385 = vpop.f32.mrf.mxu0
        %3386 = vdwg.mxu0
        %v3387 = vmul.f32 %v3382, 0.17677669
        %v3388 = vadd.f32 %v3387, %v2710
        %v3389 = vsel %vm3050, %v3388, -inf
        %3390 = vmax.xlane.f32.xlu0 %v3389
        %v3391 = vpop.xlane.xlu0 %3390
        %v3392 = vsub.f32 %v3388, %v3391
        %v3393 = vmul.f32 %v3392, 1.442695
        %v3394 = vpow.pop %v3393
        %v3395 = vsel %vm3050, %v3394, 0.0
        %3396 = vadd.xlane.f32.xlu0 %v3395
        %v3397 = vpop.xlane.xlu0 %3396
        %v3398 = vrcp.pop %v3397
        %v3399 = vmul.f32 %v3394, %v3398
        %v3400 = vpack.c.bf16 %v3399, %v3399
        %3401 = vrot.lane.b32.xlu0 %v3000, 32
        %v3402 = vpop.permute.xlu0 %3401
        %v3404 = vsel %vm3050, %v3400, 0
        %v3407 = vsel %vm3066, %v3402, 0
        %3409 = vmatprep.subr.bf16.mxu0 0
        %3410 = vmatpush1.bf16.msra.mxu0 0
        %3411 = vmatprep.subr.bf16.mxu0 0
        %3412 = vmatpush1.bf16.msra.mxu0 0
        %3413 = vmatprep.subr.bf16.mxu0 0
        %3414 = vmatpush1.bf16.msra.mxu0 0
        %3415 = vmatprep.subr.bf16.mxu0 0
        %3416 = vmatpush1.bf16.msra.mxu0 0
        %3417 = vmatprep.subr.bf16.mxu0 0
        %3418 = vmatpush1.bf16.msra.mxu0 0
        %3419 = vmatprep.subr.bf16.mxu0 0
        %3420 = vmatpush1.bf16.msra.mxu0 0
        %3421 = vmatprep.subr.bf16.mxu0 0
        %3422 = vmatpush1.bf16.msra.mxu0 0
        %3423 = vmatprep.subr.bf16.mxu0 0
        %3424 = vmatpush1.bf16.msra.mxu0 %v3407
        %3425 = vmatprep.subr.bf16.mxu0 0
        %3426 = vmatpush2.bf16.msra.mxu0 0
        %3427 = vmatprep.subr.bf16.mxu0 0
        %3428 = vmatpush2.bf16.msra.mxu0 0
        %3429 = vmatprep.subr.bf16.mxu0 0
        %3430 = vmatpush2.bf16.msra.mxu0 0
        %3431 = vmatprep.subr.bf16.mxu0 0
        %3432 = vmatpush2.bf16.msra.mxu0 0
        %3433 = vmatprep.subr.bf16.mxu0 0
        %3434 = vmatpush2.bf16.msra.mxu0 0
        %3435 = vmatprep.subr.bf16.mxu0 0
        %3436 = vmatpush2.bf16.msra.mxu0 0
        %3437 = vmatprep.subr.bf16.mxu0 0
        %3438 = vmatpush2.bf16.msra.mxu0 0
        %3439 = vmatprep.subr.bf16.mxu0 0
        %3440 = vmatpush2.bf16.msra.mxu0 0
        %3441 = vmatprep.mubr.bf16.mxu0 0
        %3442 = vmatmul.mubr.bf16.gmra.mxu0 %v3404
        %v3443 = vpop.f32.mrf.mxu0
        %v3444 = vadd.f32 0.0, %v3443
        %v3445 = vpop.f32.mrf.mxu0
        %v3446 = vpop.f32.mrf.mxu0
        %v3447 = vpop.f32.mrf.mxu0
        %3448 = vdwg.mxu0
        %3450 = vrot.lane.b32.xlu0 %v3220, 32
        %v3451 = vpop.permute.xlu0 %3450
        %3454 = vrot.lane.b32.xlu0 %v3332, 64
        %v3455 = vpop.permute.xlu0 %3454
        %3458 = vrot.lane.b32.xlu0 %v3444, 96
        %v3459 = vpop.permute.xlu0 %3458
        %v3461 = vsel %vm3001, %v3105, %v3451
        %vm3462 = vcmask 523264
        %v3463 = vsel %vm3462, %v3461, %v3455
        %vm3464 = vcmask 785408
        %v3465 = vsel %vm3464, %v3463, %v3459
        %v3466 = vpack.c.bf16 %v3465, %v3465
        %v3467 = vld [vmem:[%s5] sm:$0xf]
        %v3468 = vld [vmem:[%s5 + $0x4] sm:$0xf]
        %v3469 = vld [vmem:[%s5 + $0x8] sm:$0xf]
        %v3470 = vld [vmem:[%s5 + $0xc] sm:$0xf]
        %v3471 = vld [vmem:[%s5 + $0x10] sm:$0xf]
        %v3472 = vld [vmem:[%s5 + $0x14] sm:$0xf]
        %v3473 = vld [vmem:[%s5 + $0x18] sm:$0xf]
        %v3474 = vld [vmem:[%s5 + $0x1c] sm:$0xf]
        %v3475 = vld [vmem:[%s5 + $0x20] sm:$0xf]
        %v3476 = vld [vmem:[%s5 + $0x24] sm:$0xf]
        %v3477 = vld [vmem:[%s5 + $0x28] sm:$0xf]
        %v3478 = vld [vmem:[%s5 + $0x2c] sm:$0xf]
        %v3479 = vld [vmem:[%s5 + $0x30] sm:$0xf]
        %v3480 = vld [vmem:[%s5 + $0x34] sm:$0xf]
        %v3481 = vld [vmem:[%s5 + $0x38] sm:$0xf]
        %v3482 = vld [vmem:[%s5 + $0x3c] sm:$0xf]
        %v3483 = vld [vmem:[%s6] sm:$0x1]
        %v3485 = vlaneseq
        %v3486 = vshrl.u32 %v3485, 7
        %v3487 = vsub.s32 0, %v3486
        %v3488 = vrot.slane %v3483, %v3487
        %v3506 = vunpack.c.l.b16 %v3467
        %v3507 = vunpack.c.l.b16 %v3468
        %v3508 = vunpack.c.l.b16 %v3469
        %v3509 = vunpack.c.l.b16 %v3470
        %v3510 = vunpack.c.l.b16 %v3471
        %v3511 = vunpack.c.l.b16 %v3472
        %v3512 = vunpack.c.l.b16 %v3473
        %v3513 = vunpack.c.l.b16 %v3474
        %v3514 = vunpack.c.l.b16 %v3475
        %v3515 = vunpack.c.l.b16 %v3476
        %v3516 = vunpack.c.l.b16 %v3477
        %v3517 = vunpack.c.l.b16 %v3478
        %v3518 = vunpack.c.l.b16 %v3479
        %v3519 = vunpack.c.l.b16 %v3480
        %v3520 = vunpack.c.l.b16 %v3481
        %v3521 = vunpack.c.l.b16 %v3482
        %v3522 = vpack.c.b16 %v3507, %v3506
        %v3523 = vpack.c.b16 %v3509, %v3508
        %v3524 = vpack.c.b16 %v3511, %v3510
        %v3525 = vpack.c.b16 %v3513, %v3512
        %v3526 = vpack.c.b16 %v3515, %v3514
        %v3527 = vpack.c.b16 %v3517, %v3516
        %v3528 = vpack.c.b16 %v3519, %v3518
        %v3529 = vpack.c.b16 %v3521, %v3520
        %3538 = vmatprep.subr.bf16.mxu0 0
        %3539 = vmatpush1.bf16.msra.mxu0 %v3529
        %3540 = vmatprep.subr.bf16.mxu0 0
        %3541 = vmatpush1.bf16.msra.mxu0 %v3528
        %3542 = vmatprep.subr.bf16.mxu0 0
        %3543 = vmatpush1.bf16.msra.mxu0 %v3527
        %3544 = vmatprep.subr.bf16.mxu0 0
        %3545 = vmatpush1.bf16.msra.mxu0 %v3526
        %3546 = vmatprep.subr.bf16.mxu0 0
        %3547 = vmatpush1.bf16.msra.mxu0 %v3525
        %3548 = vmatprep.subr.bf16.mxu0 0
        %3549 = vmatpush1.bf16.msra.mxu0 %v3524
        %3550 = vmatprep.subr.bf16.mxu0 0
        %3551 = vmatpush1.bf16.msra.mxu0 %v3523
        %3552 = vmatprep.subr.bf16.mxu0 0
        %3553 = vmatpush1.bf16.msra.mxu0 %v3522
        %3554 = vmatprep.subr.bf16.mxu0 0
        %3555 = vmatpush2.bf16.msra.mxu0 0
        %3556 = vmatprep.subr.bf16.mxu0 0
        %3557 = vmatpush2.bf16.msra.mxu0 0
        %3558 = vmatprep.subr.bf16.mxu0 0
        %3559 = vmatpush2.bf16.msra.mxu0 0
        %3560 = vmatprep.subr.bf16.mxu0 0
        %3561 = vmatpush2.bf16.msra.mxu0 0
        %3562 = vmatprep.subr.bf16.mxu0 0
        %3563 = vmatpush2.bf16.msra.mxu0 0
        %3564 = vmatprep.subr.bf16.mxu0 0
        %3565 = vmatpush2.bf16.msra.mxu0 0
        %3566 = vmatprep.subr.bf16.mxu0 0
        %3567 = vmatpush2.bf16.msra.mxu0 0
        %3568 = vmatprep.subr.bf16.mxu0 0
        %3569 = vmatpush2.bf16.msra.mxu0 0
        %3570 = vmatprep.mubr.bf16.mxu0 0
        %3571 = vmatmul.mubr.bf16.gmra.mxu0 %v3466
        %v3572 = vpop.f32.mrf.mxu0
        %v3573 = vadd.f32 %v3488, %v3572
        %v3574 = vpop.f32.mrf.mxu0
        %v3575 = vpop.f32.mrf.mxu0
        %v3576 = vpop.f32.mrf.mxu0
        %3577 = vdwg.mxu0
        %v3578 = vadd.f32 %v2706, %v3573
        %v3579 = vld [vmem:[%s9] sm:$0x1]
        %v3580 = vld [vmem:[%s10] sm:$0x1]
        %3581 = vadd.xlane.f32.xlu0 %v3578
        %v3582 = vpop.xlane.xlu0 %3581
        %v3583 = vmul.f32 %v3582, %v2715
        %v3584 = vsub.f32 %v3578, %v3583
        %v3585 = vmul.f32 %v3584, %v3584
        %3586 = vadd.xlane.f32.xlu0 %v3585
        %v3587 = vpop.xlane.xlu0 %3586
        %v3588 = vmul.f32 %v3587, %v2715
        %v3589 = vadd.f32 %v3588, 1e-06
        %v3590 = vrsqrt.pop %v3589
        %v3591 = vmul.f32 %v3584, %v3590
        %v3593 = vlaneseq
        %v3594 = vshrl.u32 %v3593, 7
        %v3595 = vsub.s32 0, %v3594
        %v3596 = vrot.slane %v3579, %v3595
        %v3598 = vmul.f32 %v3591, %v3596
        %v3600 = vlaneseq
        %v3601 = vshrl.u32 %v3600, 7
        %v3602 = vsub.s32 0, %v3601
        %v3603 = vrot.slane %v3580, %v3602
        %v3605 = vadd.f32 %v3598, %v3603
        %v3606 = vpack.c.bf16 %v3605, %v3605
        %v3607 = vld [vmem:[%s11] sm:$0xff]
        %v3608 = vld [vmem:[%s11 + $0x8] sm:$0xff]
        %v3609 = vld [vmem:[%s11 + $0x10] sm:$0xff]
        %v3610 = vld [vmem:[%s11 + $0x18] sm:$0xff]
        %v3611 = vld [vmem:[%s11 + $0x20] sm:$0xff]
        %v3612 = vld [vmem:[%s11 + $0x28] sm:$0xff]
        %v3613 = vld [vmem:[%s11 + $0x30] sm:$0xff]
        %v3614 = vld [vmem:[%s11 + $0x38] sm:$0xff]
        %v3615 = vld [vmem:[%s11 + $0x40] sm:$0xff]
        %v3616 = vld [vmem:[%s11 + $0x48] sm:$0xff]
        %v3617 = vld [vmem:[%s11 + $0x50] sm:$0xff]
        %v3618 = vld [vmem:[%s11 + $0x58] sm:$0xff]
        %v3619 = vld [vmem:[%s11 + $0x60] sm:$0xff]
        %v3620 = vld [vmem:[%s11 + $0x68] sm:$0xff]
        %v3621 = vld [vmem:[%s11 + $0x70] sm:$0xff]
        %v3622 = vld [vmem:[%s11 + $0x78] sm:$0xff]
        %v3623 = vld [vmem:[%s12] sm:$0x3]
        %v3625 = vlaneseq
        %v3626 = vshrl.u32 %v3625, 7
        %v3627 = vsub.s32 0, %v3626
        %v3628 = vrot.slane %v3623, %v3627
        %v3629 = vlaneseq
        %v3630 = vshrl.u32 %v3629, 7
        %v3631 = vsub.s32 1, %v3630
        %v3632 = vrot.slane %v3623, %v3631
        %v3651 = vunpack.c.l.b16 %v3607
        %v3652 = vunpack.c.h.b16 %v3607
        %v3653 = vunpack.c.l.b16 %v3608
        %v3654 = vunpack.c.h.b16 %v3608
        %v3655 = vunpack.c.l.b16 %v3609
        %v3656 = vunpack.c.h.b16 %v3609
        %v3657 = vunpack.c.l.b16 %v3610
        %v3658 = vunpack.c.h.b16 %v3610
        %v3659 = vunpack.c.l.b16 %v3611
        %v3660 = vunpack.c.h.b16 %v3611
        %v3661 = vunpack.c.l.b16 %v3612
        %v3662 = vunpack.c.h.b16 %v3612
        %v3663 = vunpack.c.l.b16 %v3613
        %v3664 = vunpack.c.h.b16 %v3613
        %v3665 = vunpack.c.l.b16 %v3614
        %v3666 = vunpack.c.h.b16 %v3614
        %v3667 = vunpack.c.l.b16 %v3615
        %v3668 = vunpack.c.h.b16 %v3615
        %v3669 = vunpack.c.l.b16 %v3616
        %v3670 = vunpack.c.h.b16 %v3616
        %v3671 = vunpack.c.l.b16 %v3617
        %v3672 = vunpack.c.h.b16 %v3617
        %v3673 = vunpack.c.l.b16 %v3618
        %v3674 = vunpack.c.h.b16 %v3618
        %v3675 = vunpack.c.l.b16 %v3619
        %v3676 = vunpack.c.h.b16 %v3619
        %v3677 = vunpack.c.l.b16 %v3620
        %v3678 = vunpack.c.h.b16 %v3620
        %v3679 = vunpack.c.l.b16 %v3621
        %v3680 = vunpack.c.h.b16 %v3621
        %v3681 = vunpack.c.l.b16 %v3622
        %v3682 = vunpack.c.h.b16 %v3622
        %v3683 = vpack.c.b16 %v3653, %v3651
        %v3684 = vpack.c.b16 %v3654, %v3652
        %v3685 = vpack.c.b16 %v3657, %v3655
        %v3686 = vpack.c.b16 %v3658, %v3656
        %v3687 = vpack.c.b16 %v3661, %v3659
        %v3688 = vpack.c.b16 %v3662, %v3660
        %v3689 = vpack.c.b16 %v3665, %v3663
        %v3690 = vpack.c.b16 %v3666, %v3664
        %v3691 = vpack.c.b16 %v3669, %v3667
        %v3692 = vpack.c.b16 %v3670, %v3668
        %v3693 = vpack.c.b16 %v3673, %v3671
        %v3694 = vpack.c.b16 %v3674, %v3672
        %v3695 = vpack.c.b16 %v3677, %v3675
        %v3696 = vpack.c.b16 %v3678, %v3676
        %v3697 = vpack.c.b16 %v3681, %v3679
        %v3698 = vpack.c.b16 %v3682, %v3680
        %3715 = vmatprep.subr.bf16.mxu0 %v3698
        %3716 = vmatpush1.bf16.msra.mxu0 %v3697
        %3717 = vmatprep.subr.bf16.mxu0 %v3696
        %3718 = vmatpush1.bf16.msra.mxu0 %v3695
        %3719 = vmatprep.subr.bf16.mxu0 %v3694
        %3720 = vmatpush1.bf16.msra.mxu0 %v3693
        %3721 = vmatprep.subr.bf16.mxu0 %v3692
        %3722 = vmatpush1.bf16.msra.mxu0 %v3691
        %3723 = vmatprep.subr.bf16.mxu0 %v3690
        %3724 = vmatpush1.bf16.msra.mxu0 %v3689
        %3725 = vmatprep.subr.bf16.mxu0 %v3688
        %3726 = vmatpush1.bf16.msra.mxu0 %v3687
        %3727 = vmatprep.subr.bf16.mxu0 %v3686
        %3728 = vmatpush1.bf16.msra.mxu0 %v3685
        %3729 = vmatprep.subr.bf16.mxu0 %v3684
        %3730 = vmatpush1.bf16.msra.mxu0 %v3683
        %3731 = vmatprep.subr.bf16.mxu0 0
        %3732 = vmatpush2.bf16.msra.mxu0 0
        %3733 = vmatprep.subr.bf16.mxu0 0
        %3734 = vmatpush2.bf16.msra.mxu0 0
        %3735 = vmatprep.subr.bf16.mxu0 0
        %3736 = vmatpush2.bf16.msra.mxu0 0
        %3737 = vmatprep.subr.bf16.mxu0 0
        %3738 = vmatpush2.bf16.msra.mxu0 0
        %3739 = vmatprep.subr.bf16.mxu0 0
        %3740 = vmatpush2.bf16.msra.mxu0 0
        %3741 = vmatprep.subr.bf16.mxu0 0
        %3742 = vmatpush2.bf16.msra.mxu0 0
        %3743 = vmatprep.subr.bf16.mxu0 0
        %3744 = vmatpush2.bf16.msra.mxu0 0
        %3745 = vmatprep.subr.bf16.mxu0 0
        %3746 = vmatpush2.bf16.msra.mxu0 0
        %3747 = vmatprep.mubr.bf16.mxu0 0
        %3748 = vmatmul.mubr.bf16.gmra.mxu0 %v3606
        %v3749 = vpop.f32.mrf.mxu0
        %v3750 = vadd.f32 %v3628, %v3749
        %v3751 = vpop.f32.mrf.mxu0
        %v3752 = vadd.f32 %v3632, %v3751
        %v3753 = vpop.f32.mrf.mxu0
        %v3754 = vpop.f32.mrf.mxu0
        %3755 = vdwg.mxu0
        %v3756 = vmul.f32 %v3750, 0.5
        %v3757 = vmul.f32 %v3752, 0.5
        %v3758 = vmul.f32 %v3750, 0.044715
        %v3759 = vmul.f32 %v3752, 0.044715
        %v3760 = vmul.f32 %v3758, %v3750
        %v3761 = vmul.f32 %v3759, %v3752
        %v3762 = vmul.f32 %v3760, %v3750
        %v3763 = vmul.f32 %v3761, %v3752
        %v3764 = vadd.f32 %v3750, %v3762
        %v3765 = vadd.f32 %v3752, %v3763
        %v3766 = vmul.f32 %v3764, 0.7978846
        %v3767 = vmul.f32 %v3765, 0.7978846
        %v3768 = vtanh.pop %v3766
        %v3769 = vtanh.pop %v3767
        %v3770 = vadd.f32 %v3768, 1.0
        %v3771 = vadd.f32 %v3769, 1.0
        %v3772 = vmul.f32 %v3756, %v3770
        %v3773 = vmul.f32 %v3757, %v3771
        %v3774 = vpack.c.bf16 %v3772, %v3772
        %v3775 = vpack.c.bf16 %v3773, %v3773
        %v3776 = vld [vmem:[%s13] sm:$0xf]
        %v3777 = vld [vmem:[%s13 + $0x4] sm:$0xf]
        %v3778 = vld [vmem:[%s13 + $0x8] sm:$0xf]
        %v3779 = vld [vmem:[%s13 + $0xc] sm:$0xf]
        %v3780 = vld [vmem:[%s13 + $0x10] sm:$0xf]
        %v3781 = vld [vmem:[%s13 + $0x14] sm:$0xf]
        %v3782 = vld [vmem:[%s13 + $0x18] sm:$0xf]
        %v3783 = vld [vmem:[%s13 + $0x1c] sm:$0xf]
        %v3784 = vld [vmem:[%s13 + $0x20] sm:$0xf]
        %v3785 = vld [vmem:[%s13 + $0x24] sm:$0xf]
        %v3786 = vld [vmem:[%s13 + $0x28] sm:$0xf]
        %v3787 = vld [vmem:[%s13 + $0x2c] sm:$0xf]
        %v3788 = vld [vmem:[%s13 + $0x30] sm:$0xf]
        %v3789 = vld [vmem:[%s13 + $0x34] sm:$0xf]
        %v3790 = vld [vmem:[%s13 + $0x38] sm:$0xf]
        %v3791 = vld [vmem:[%s13 + $0x3c] sm:$0xf]
        %v3792 = vld [vmem:[%s13 + $0x40] sm:$0xf]
        %v3793 = vld [vmem:[%s13 + $0x44] sm:$0xf]
        %v3794 = vld [vmem:[%s13 + $0x48] sm:$0xf]
        %v3795 = vld [vmem:[%s13 + $0x4c] sm:$0xf]
        %v3796 = vld [vmem:[%s13 + $0x50] sm:$0xf]
        %v3797 = vld [vmem:[%s13 + $0x54] sm:$0xf]
        %v3798 = vld [vmem:[%s13 + $0x58] sm:$0xf]
        %v3799 = vld [vmem:[%s13 + $0x5c] sm:$0xf]
        %v3800 = vld [vmem:[%s13 + $0x60] sm:$0xf]
        %v3801 = vld [vmem:[%s13 + $0x64] sm:$0xf]
        %v3802 = vld [vmem:[%s13 + $0x68] sm:$0xf]
        %v3803 = vld [vmem:[%s13 + $0x6c] sm:$0xf]
        %v3804 = vld [vmem:[%s13 + $0x70] sm:$0xf]
        %v3805 = vld [vmem:[%s13 + $0x74] sm:$0xf]
        %v3806 = vld [vmem:[%s13 + $0x78] sm:$0xf]
        %v3807 = vld [vmem:[%s13 + $0x7c] sm:$0xf]
        %v3808 = vld [vmem:[%s14] sm:$0x1]
        %v3810 = vlaneseq
        %v3811 = vshrl.u32 %v3810, 7
        %v3812 = vsub.s32 0, %v3811
        %v3813 = vrot.slane %v3808, %v3812
        %v3847 = vunpack.c.l.b16 %v3776
        %v3848 = vunpack.c.l.b16 %v3777
        %v3849 = vunpack.c.l.b16 %v3778
        %v3850 = vunpack.c.l.b16 %v3779
        %v3851 = vunpack.c.l.b16 %v3780
        %v3852 = vunpack.c.l.b16 %v3781
        %v3853 = vunpack.c.l.b16 %v3782
        %v3854 = vunpack.c.l.b16 %v3783
        %v3855 = vunpack.c.l.b16 %v3784
        %v3856 = vunpack.c.l.b16 %v3785
        %v3857 = vunpack.c.l.b16 %v3786
        %v3858 = vunpack.c.l.b16 %v3787
        %v3859 = vunpack.c.l.b16 %v3788
        %v3860 = vunpack.c.l.b16 %v3789
        %v3861 = vunpack.c.l.b16 %v3790
        %v3862 = vunpack.c.l.b16 %v3791
        %v3863 = vunpack.c.l.b16 %v3792
        %v3864 = vunpack.c.l.b16 %v3793
        %v3865 = vunpack.c.l.b16 %v3794
        %v3866 = vunpack.c.l.b16 %v3795
        %v3867 = vunpack.c.l.b16 %v3796
        %v3868 = vunpack.c.l.b16 %v3797
        %v3869 = vunpack.c.l.b16 %v3798
        %v3870 = vunpack.c.l.b16 %v3799
        %v3871 = vunpack.c.l.b16 %v3800
        %v3872 = vunpack.c.l.b16 %v3801
        %v3873 = vunpack.c.l.b16 %v3802
        %v3874 = vunpack.c.l.b16 %v3803
        %v3875 = vunpack.c.l.b16 %v3804
        %v3876 = vunpack.c.l.b16 %v3805
        %v3877 = vunpack.c.l.b16 %v3806
        %v3878 = vunpack.c.l.b16 %v3807
        %v3879 = vpack.c.b16 %v3848, %v3847
        %v3880 = vpack.c.b16 %v3850, %v3849
        %v3881 = vpack.c.b16 %v3852, %v3851
        %v3882 = vpack.c.b16 %v3854, %v3853
        %v3883 = vpack.c.b16 %v3856, %v3855
        %v3884 = vpack.c.b16 %v3858, %v3857
        %v3885 = vpack.c.b16 %v3860, %v3859
        %v3886 = vpack.c.b16 %v3862, %v3861
        %v3887 = vpack.c.b16 %v3864, %v3863
        %v3888 = vpack.c.b16 %v3866, %v3865
        %v3889 = vpack.c.b16 %v3868, %v3867
        %v3890 = vpack.c.b16 %v3870, %v3869
        %v3891 = vpack.c.b16 %v3872, %v3871
        %v3892 = vpack.c.b16 %v3874, %v3873
        %v3893 = vpack.c.b16 %v3876, %v3875
        %v3894 = vpack.c.b16 %v3878, %v3877
        %3911 = vmatprep.subr.bf16.mxu0 0
        %3912 = vmatpush1.bf16.msra.mxu0 %v3886
        %3913 = vmatprep.subr.bf16.mxu0 0
        %3914 = vmatpush1.bf16.msra.mxu0 %v3885
        %3915 = vmatprep.subr.bf16.mxu0 0
        %3916 = vmatpush1.bf16.msra.mxu0 %v3884
        %3917 = vmatprep.subr.bf16.mxu0 0
        %3918 = vmatpush1.bf16.msra.mxu0 %v3883
        %3919 = vmatprep.subr.bf16.mxu0 0
        %3920 = vmatpush1.bf16.msra.mxu0 %v3882
        %3921 = vmatprep.subr.bf16.mxu0 0
        %3922 = vmatpush1.bf16.msra.mxu0 %v3881
        %3923 = vmatprep.subr.bf16.mxu0 0
        %3924 = vmatpush1.bf16.msra.mxu0 %v3880
        %3925 = vmatprep.subr.bf16.mxu0 0
        %3926 = vmatpush1.bf16.msra.mxu0 %v3879
        %3927 = vmatprep.subr.bf16.mxu0 0
        %3928 = vmatpush2.bf16.msra.mxu0 %v3894
        %3929 = vmatprep.subr.bf16.mxu0 0
        %3930 = vmatpush2.bf16.msra.mxu0 %v3893
        %3931 = vmatprep.subr.bf16.mxu0 0
        %3932 = vmatpush2.bf16.msra.mxu0 %v3892
        %3933 = vmatprep.subr.bf16.mxu0 0
        %3934 = vmatpush2.bf16.msra.mxu0 %v3891
        %3935 = vmatprep.subr.bf16.mxu0 0
        %3936 = vmatpush2.bf16.msra.mxu0 %v3890
        %3937 = vmatprep.subr.bf16.mxu0 0
        %3938 = vmatpush2.bf16.msra.mxu0 %v3889
        %3939 = vmatprep.subr.bf16.mxu0 0
        %3940 = vmatpush2.bf16.msra.mxu0 %v3888
        %3941 = vmatprep.subr.bf16.mxu0 0
        %3942 = vmatpush2.bf16.msra.mxu0 %v3887
        %3943 = vmatprep.mubr.bf16.mxu0 %v3775
        %3944 = vmatmul.mubr.bf16.gmra.mxu0 %v3774
        %v3945 = vpop.f32.mrf.mxu0
        %v3946 = vadd.f32 %v3813, %v3945
        %v3947 = vpop.f32.mrf.mxu0
        %v3948 = vpop.f32.mrf.mxu0
        %v3949 = vpop.f32.mrf.mxu0
        %3950 = vdwg.mxu0
        %v3951 = vadd.f32 %v3578, %v3946
        %s3952 = scalar_lea.vmem %s7, 1
        %v3953 = vld [vmem:[%s3952] sm:$0x1]
        %s3954 = scalar_lea.vmem %s8, 1
        %v3955 = vld [vmem:[%s3954] sm:$0x1]
        %3956 = vadd.xlane.f32.xlu0 %v3951
        %v3957 = vpop.xlane.xlu0 %3956
        %v3958 = vmul.f32 %v3957, %v2715
        %v3959 = vsub.f32 %v3951, %v3958
        %v3960 = vmul.f32 %v3959, %v3959
        %3961 = vadd.xlane.f32.xlu0 %v3960
        %v3962 = vpop.xlane.xlu0 %3961
        %v3963 = vmul.f32 %v3962, %v2715
        %v3964 = vadd.f32 %v3963, 1e-06
        %v3965 = vrsqrt.pop %v3964
        %v3966 = vmul.f32 %v3959, %v3965
        %v3968 = vlaneseq
        %v3969 = vshrl.u32 %v3968, 7
        %v3970 = vsub.s32 0, %v3969
        %v3971 = vrot.slane %v3953, %v3970
        %v3973 = vmul.f32 %v3966, %v3971
        %v3975 = vlaneseq
        %v3976 = vshrl.u32 %v3975, 7
        %v3977 = vsub.s32 0, %v3976
        %v3978 = vrot.slane %v3955, %v3977
        %v3980 = vadd.f32 %v3973, %v3978
        %v3981 = vpack.c.bf16 %v3980, %v3980
        %s3982 = scalar_lea.vmem %s3, 192
        %v3983 = vld [vmem:[%s3982] sm:$0xff]
        %v3984 = vld [vmem:[%s3982 + $0x8] sm:$0xf]
        %v3985 = vld [vmem:[%s3982 + $0xc] sm:$0xff]
        %v3986 = vld [vmem:[%s3982 + $0x14] sm:$0xf]
        %v3987 = vld [vmem:[%s3982 + $0x18] sm:$0xff]
        %v3988 = vld [vmem:[%s3982 + $0x20] sm:$0xf]
        %v3989 = vld [vmem:[%s3982 + $0x24] sm:$0xff]
        %v3990 = vld [vmem:[%s3982 + $0x2c] sm:$0xf]
        %v3991 = vld [vmem:[%s3982 + $0x30] sm:$0xff]
        %v3992 = vld [vmem:[%s3982 + $0x38] sm:$0xf]
        %v3993 = vld [vmem:[%s3982 + $0x3c] sm:$0xff]
        %v3994 = vld [vmem:[%s3982 + $0x44] sm:$0xf]
        %v3995 = vld [vmem:[%s3982 + $0x48] sm:$0xff]
        %v3996 = vld [vmem:[%s3982 + $0x50] sm:$0xf]
        %v3997 = vld [vmem:[%s3982 + $0x54] sm:$0xff]
        %v3998 = vld [vmem:[%s3982 + $0x5c] sm:$0xf]
        %v3999 = vld [vmem:[%s3982 + $0x60] sm:$0xff]
        %v4000 = vld [vmem:[%s3982 + $0x68] sm:$0xf]
        %v4001 = vld [vmem:[%s3982 + $0x6c] sm:$0xff]
        %v4002 = vld [vmem:[%s3982 + $0x74] sm:$0xf]
        %v4003 = vld [vmem:[%s3982 + $0x78] sm:$0xff]
        %v4004 = vld [vmem:[%s3982 + $0x80] sm:$0xf]
        %v4005 = vld [vmem:[%s3982 + $0x84] sm:$0xff]
        %v4006 = vld [vmem:[%s3982 + $0x8c] sm:$0xf]
        %v4007 = vld [vmem:[%s3982 + $0x90] sm:$0xff]
        %v4008 = vld [vmem:[%s3982 + $0x98] sm:$0xf]
        %v4009 = vld [vmem:[%s3982 + $0x9c] sm:$0xff]
        %v4010 = vld [vmem:[%s3982 + $0xa4] sm:$0xf]
        %v4011 = vld [vmem:[%s3982 + $0xa8] sm:$0xff]
        %v4012 = vld [vmem:[%s3982 + $0xb0] sm:$0xf]
        %v4013 = vld [vmem:[%s3982 + $0xb4] sm:$0xff]
        %v4014 = vld [vmem:[%s3982 + $0xbc] sm:$0xf]
        %s4015 = scalar_lea.vmem %s4, 3
        %v4016 = vld [vmem:[%s4015] sm:$0x7]
        %v4018 = vlaneseq
        %v4019 = vshrl.u32 %v4018, 7
        %v4020 = vsub.s32 0, %v4019
        %v4021 = vrot.slane %v4016, %v4020
        %v4022 = vlaneseq
        %v4023 = vshrl.u32 %v4022, 7
        %v4024 = vsub.s32 1, %v4023
        %v4025 = vrot.slane %v4016, %v4024
        %v4026 = vlaneseq
        %v4027 = vshrl.u32 %v4026, 7
        %v4028 = vsub.s32 2, %v4027
        %v4029 = vrot.slane %v4016, %v4028
        %v4065 = vunpack.c.l.b16 %v3983
        %v4066 = vunpack.c.h.b16 %v3983
        %v4067 = vunpack.c.l.b16 %v3984
        %v4068 = vunpack.c.l.b16 %v3985
        %v4069 = vunpack.c.h.b16 %v3985
        %v4070 = vunpack.c.l.b16 %v3986
        %v4071 = vunpack.c.l.b16 %v3987
        %v4072 = vunpack.c.h.b16 %v3987
        %v4073 = vunpack.c.l.b16 %v3988
        %v4074 = vunpack.c.l.b16 %v3989
        %v4075 = vunpack.c.h.b16 %v3989
        %v4076 = vunpack.c.l.b16 %v3990
        %v4077 = vunpack.c.l.b16 %v3991
        %v4078 = vunpack.c.h.b16 %v3991
        %v4079 = vunpack.c.l.b16 %v3992
        %v4080 = vunpack.c.l.b16 %v3993
        %v4081 = vunpack.c.h.b16 %v3993
        %v4082 = vunpack.c.l.b16 %v3994
        %v4083 = vunpack.c.l.b16 %v3995
        %v4084 = vunpack.c.h.b16 %v3995
        %v4085 = vunpack.c.l.b16 %v3996
        %v4086 = vunpack.c.l.b16 %v3997
        %v4087 = vunpack.c.h.b16 %v3997
        %v4088 = vunpack.c.l.b16 %v3998
        %v4089 = vunpack.c.l.b16 %v3999
        %v4090 = vunpack.c.h.b16 %v3999
        %v4091 = vunpack.c.l.b16 %v4000
        %v4092 = vunpack.c.l.b16 %v4001
        %v4093 = vunpack.c.h.b16 %v4001
        %v4094 = vunpack.c.l.b16 %v4002
        %v4095 = vunpack.c.l.b16 %v4003
        %v4096 = vunpack.c.h.b16 %v4003
        %v4097 = vunpack.c.l.b16 %v4004
        %v4098 = vunpack.c.l.b16 %v4005
        %v4099 = vunpack.c.h.b16 %v4005
        %v4100 = vunpack.c.l.b16 %v4006
        %v4101 = vunpack.c.l.b16 %v4007
        %v4102 = vunpack.c.h.b16 %v4007
        %v4103 = vunpack.c.l.b16 %v4008
        %v4104 = vunpack.c.l.b16 %v4009
        %v4105 = vunpack.c.h.b16 %v4009
        %v4106 = vunpack.c.l.b16 %v4010
        %v4107 = vunpack.c.l.b16 %v4011
        %v4108 = vunpack.c.h.b16 %v4011
        %v4109 = vunpack.c.l.b16 %v4012
        %v4110 = vunpack.c.l.b16 %v4013
        %v4111 = vunpack.c.h.b16 %v4013
        %v4112 = vunpack.c.l.b16 %v4014
        %v4113 = vpack.c.b16 %v4068, %v4065
        %v4114 = vpack.c.b16 %v4069, %v4066
        %v4115 = vpack.c.b16 %v4070, %v4067
        %v4116 = vpack.c.b16 %v4074, %v4071
        %v4117 = vpack.c.b16 %v4075, %v4072
        %v4118 = vpack.c.b16 %v4076, %v4073
        %v4119 = vpack.c.b16 %v4080, %v4077
        %v4120 = vpack.c.b16 %v4081, %v4078
        %v4121 = vpack.c.b16 %v4082, %v4079
        %v4122 = vpack.c.b16 %v4086, %v4083
        %v4123 = vpack.c.b16 %v4087, %v4084
        %v4124 = vpack.c.b16 %v4088, %v4085
        %v4125 = vpack.c.b16 %v4092, %v4089
        %v4126 = vpack.c.b16 %v4093, %v4090
        %v4127 = vpack.c.b16 %v4094, %v4091
        %v4128 = vpack.c.b16 %v4098, %v4095
        %v4129 = vpack.c.b16 %v4099, %v4096
        %v4130 = vpack.c.b16 %v4100, %v4097
        %v4131 = vpack.c.b16 %v4104, %v4101
        %v4132 = vpack.c.b16 %v4105, %v4102
        %v4133 = vpack.c.b16 %v4106, %v4103
        %v4134 = vpack.c.b16 %v4110, %v4107
        %v4135 = vpack.c.b16 %v4111, %v4108
        %v4136 = vpack.c.b16 %v4112, %v4109
        %4161 = vmatprep.subr.bf16.mxu0 %v4135
        %4162 = vmatpush1.bf16.msra.mxu0 %v4134
        %4163 = vmatprep.subr.bf16.mxu0 %v4132
        %4164 = vmatpush1.bf16.msra.mxu0 %v4131
        %4165 = vmatprep.subr.bf16.mxu0 %v4129
        %4166 = vmatpush1.bf16.msra.mxu0 %v4128
        %4167 = vmatprep.subr.bf16.mxu0 %v4126
        %4168 = vmatpush1.bf16.msra.mxu0 %v4125
        %4169 = vmatprep.subr.bf16.mxu0 %v4123
        %4170 = vmatpush1.bf16.msra.mxu0 %v4122
        %4171 = vmatprep.subr.bf16.mxu0 %v4120
        %4172 = vmatpush1.bf16.msra.mxu0 %v4119
        %4173 = vmatprep.subr.bf16.mxu0 %v4117
        %4174 = vmatpush1.bf16.msra.mxu0 %v4116
        %4175 = vmatprep.subr.bf16.mxu0 %v4114
        %4176 = vmatpush1.bf16.msra.mxu0 %v4113
        %4177 = vmatprep.subr.bf16.mxu0 0
        %4178 = vmatpush2.bf16.msra.mxu0 0
        %4179 = vmatprep.subr.bf16.mxu0 0
        %4180 = vmatpush2.bf16.msra.mxu0 0
        %4181 = vmatprep.subr.bf16.mxu0 0
        %4182 = vmatpush2.bf16.msra.mxu0 0
        %4183 = vmatprep.subr.bf16.mxu0 0
        %4184 = vmatpush2.bf16.msra.mxu0 0
        %4185 = vmatprep.subr.bf16.mxu0 0
        %4186 = vmatpush2.bf16.msra.mxu0 0
        %4187 = vmatprep.subr.bf16.mxu0 0
        %4188 = vmatpush2.bf16.msra.mxu0 0
        %4189 = vmatprep.subr.bf16.mxu0 0
        %4190 = vmatpush2.bf16.msra.mxu0 0
        %4191 = vmatprep.subr.bf16.mxu0 0
        %4192 = vmatpush2.bf16.msra.mxu0 0
        %4193 = vmatprep.mubr.bf16.mxu0 0
        %4194 = vmatmul.mubr.bf16.gmra.mxu0 %v3981
        %v4195 = vpop.f32.mrf.mxu0
        %v4196 = vadd.f32 %v4021, %v4195
        %v4197 = vpop.f32.mrf.mxu0
        %v4198 = vadd.f32 %v4025, %v4197
        %v4199 = vpop.f32.mrf.mxu0
        %v4200 = vpop.f32.mrf.mxu0
        %4201 = vdwg.mxu0
        %4202 = vmatprep.subr.bf16.mxu0 0
        %4203 = vmatpush1.bf16.msra.mxu0 %v4136
        %4204 = vmatprep.subr.bf16.mxu0 0
        %4205 = vmatpush1.bf16.msra.mxu0 %v4133
        %4206 = vmatprep.subr.bf16.mxu0 0
        %4207 = vmatpush1.bf16.msra.mxu0 %v4130
        %4208 = vmatprep.subr.bf16.mxu0 0
        %4209 = vmatpush1.bf16.msra.mxu0 %v4127
        %4210 = vmatprep.subr.bf16.mxu0 0
        %4211 = vmatpush1.bf16.msra.mxu0 %v4124
        %4212 = vmatprep.subr.bf16.mxu0 0
        %4213 = vmatpush1.bf16.msra.mxu0 %v4121
        %4214 = vmatprep.subr.bf16.mxu0 0
        %4215 = vmatpush1.bf16.msra.mxu0 %v4118
        %4216 = vmatprep.subr.bf16.mxu0 0
        %4217 = vmatpush1.bf16.msra.mxu0 %v4115
        %4218 = vmatprep.subr.bf16.mxu0 0
        %4219 = vmatpush2.bf16.msra.mxu0 0
        %4220 = vmatprep.subr.bf16.mxu0 0
        %4221 = vmatpush2.bf16.msra.mxu0 0
        %4222 = vmatprep.subr.bf16.mxu0 0
        %4223 = vmatpush2.bf16.msra.mxu0 0
        %4224 = vmatprep.subr.bf16.mxu0 0
        %4225 = vmatpush2.bf16.msra.mxu0 0
        %4226 = vmatprep.subr.bf16.mxu0 0
        %4227 = vmatpush2.bf16.msra.mxu0 0
        %4228 = vmatprep.subr.bf16.mxu0 0
        %4229 = vmatpush2.bf16.msra.mxu0 0
        %4230 = vmatprep.subr.bf16.mxu0 0
        %4231 = vmatpush2.bf16.msra.mxu0 0
        %4232 = vmatprep.subr.bf16.mxu0 0
        %4233 = vmatpush2.bf16.msra.mxu0 0
        %4234 = vmatprep.mubr.bf16.mxu0 0
        %4235 = vmatmul.mubr.bf16.gmra.mxu0 %v3981
        %v4236 = vpop.f32.mrf.mxu0
        %v4237 = vadd.f32 %v4029, %v4236
        %v4238 = vpop.f32.mrf.mxu0
        %v4239 = vpop.f32.mrf.mxu0
        %v4240 = vpop.f32.mrf.mxu0
        %4241 = vdwg.mxu0
        %v4242 = vpack.c.bf16 %v4196, %v4196
        %v4243 = vpack.c.bf16 %v4198, %v4198
        %v4244 = vpack.c.bf16 %v4237, %v4237
        %v4246 = vsel %vm3001, %v4242, 0
        %v4249 = vsel %vm3001, %v4243, 0
        %4251 = vmatprep.subr.bf16.mxu0 0
        %4252 = vmatpush1.bf16.xpose.msra.mxu0 0
        %4253 = vmatprep.subr.bf16.mxu0 0
        %4254 = vmatpush1.bf16.xpose.msra.mxu0 0
        %4255 = vmatprep.subr.bf16.mxu0 0
        %4256 = vmatpush1.bf16.xpose.msra.mxu0 0
        %4257 = vmatprep.subr.bf16.mxu0 0
        %4258 = vmatpush1.bf16.xpose.msra.mxu0 0
        %4259 = vmatprep.subr.bf16.mxu0 0
        %4260 = vmatpush1.bf16.xpose.msra.mxu0 0
        %4261 = vmatprep.subr.bf16.mxu0 0
        %4262 = vmatpush1.bf16.xpose.msra.mxu0 0
        %4263 = vmatprep.subr.bf16.mxu0 0
        %4264 = vmatpush1.bf16.xpose.msra.mxu0 0
        %4265 = vmatprep.subr.bf16.mxu0 0
        %4266 = vmatpush1.bf16.xpose.msra.mxu0 %v4249
        %4267 = vmatprep.subr.bf16.mxu0 0
        %4268 = vmatpush2.bf16.xpose.msra.mxu0 0
        %4269 = vmatprep.subr.bf16.mxu0 0
        %4270 = vmatpush2.bf16.xpose.msra.mxu0 0
        %4271 = vmatprep.subr.bf16.mxu0 0
        %4272 = vmatpush2.bf16.xpose.msra.mxu0 0
        %4273 = vmatprep.subr.bf16.mxu0 0
        %4274 = vmatpush2.bf16.xpose.msra.mxu0 0
        %4275 = vmatprep.subr.bf16.mxu0 0
        %4276 = vmatpush2.bf16.xpose.msra.mxu0 0
        %4277 = vmatprep.subr.bf16.mxu0 0
        %4278 = vmatpush2.bf16.xpose.msra.mxu0 0
        %4279 = vmatprep.subr.bf16.mxu0 0
        %4280 = vmatpush2.bf16.xpose.msra.mxu0 0
        %4281 = vmatprep.subr.bf16.mxu0 0
        %4282 = vmatpush2.bf16.xpose.msra.mxu0 0
        %4283 = vmatprep.mubr.bf16.mxu0 0
        %4284 = vmatmul.mubr.bf16.gmra.mxu0 %v4246
        %v4285 = vpop.f32.mrf.mxu0
        %v4286 = vadd.f32 0.0, %v4285
        %v4287 = vpop.f32.mrf.mxu0
        %v4288 = vpop.f32.mrf.mxu0
        %v4289 = vpop.f32.mrf.mxu0
        %4290 = vdwg.mxu0
        %v4291 = vmul.f32 %v4286, 0.17677669
        %v4292 = vadd.f32 %v4291, %v2710
        %v4293 = vsel %vm3050, %v4292, -inf
        %4294 = vmax.xlane.f32.xlu0 %v4293
        %v4295 = vpop.xlane.xlu0 %4294
        %v4296 = vsub.f32 %v4292, %v4295
        %v4297 = vmul.f32 %v4296, 1.442695
        %v4298 = vpow.pop %v4297
        %v4299 = vsel %vm3050, %v4298, 0.0
        %4300 = vadd.xlane.f32.xlu0 %v4299
        %v4301 = vpop.xlane.xlu0 %4300
        %v4302 = vrcp.pop %v4301
        %v4303 = vmul.f32 %v4298, %v4302
        %v4304 = vpack.c.bf16 %v4303, %v4303
        %v4306 = vsel %vm3050, %v4304, 0
        %v4309 = vsel %vm3066, %v4244, 0
        %4311 = vmatprep.subr.bf16.mxu0 0
        %4312 = vmatpush1.bf16.msra.mxu0 0
        %4313 = vmatprep.subr.bf16.mxu0 0
        %4314 = vmatpush1.bf16.msra.mxu0 0
        %4315 = vmatprep.subr.bf16.mxu0 0
        %4316 = vmatpush1.bf16.msra.mxu0 0
        %4317 = vmatprep.subr.bf16.mxu0 0
        %4318 = vmatpush1.bf16.msra.mxu0 0
        %4319 = vmatprep.subr.bf16.mxu0 0
        %4320 = vmatpush1.bf16.msra.mxu0 0
        %4321 = vmatprep.subr.bf16.mxu0 0
        %4322 = vmatpush1.bf16.msra.mxu0 0
        %4323 = vmatprep.subr.bf16.mxu0 0
        %4324 = vmatpush1.bf16.msra.mxu0 0
        %4325 = vmatprep.subr.bf16.mxu0 0
        %4326 = vmatpush1.bf16.msra.mxu0 %v4309
        %4327 = vmatprep.subr.bf16.mxu0 0
        %4328 = vmatpush2.bf16.msra.mxu0 0
        %4329 = vmatprep.subr.bf16.mxu0 0
        %4330 = vmatpush2.bf16.msra.mxu0 0
        %4331 = vmatprep.subr.bf16.mxu0 0
        %4332 = vmatpush2.bf16.msra.mxu0 0
        %4333 = vmatprep.subr.bf16.mxu0 0
        %4334 = vmatpush2.bf16.msra.mxu0 0
        %4335 = vmatprep.subr.bf16.mxu0 0
        %4336 = vmatpush2.bf16.msra.mxu0 0
        %4337 = vmatprep.subr.bf16.mxu0 0
        %4338 = vmatpush2.bf16.msra.mxu0 0
        %4339 = vmatprep.subr.bf16.mxu0 0
        %4340 = vmatpush2.bf16.msra.mxu0 0
        %4341 = vmatprep.subr.bf16.mxu0 0
        %4342 = vmatpush2.bf16.msra.mxu0 0
        %4343 = vmatprep.mubr.bf16.mxu0 0
        %4344 = vmatmul.mubr.bf16.gmra.mxu0 %v4306
        %v4345 = vpop.f32.mrf.mxu0
        %v4346 = vadd.f32 0.0, %v4345
        %v4347 = vpop.f32.mrf.mxu0
        %v4348 = vpop.f32.mrf.mxu0
        %v4349 = vpop.f32.mrf.mxu0
        %4350 = vdwg.mxu0
        %4352 = vrot.lane.b32.xlu0 %v4242, 96
        %v4353 = vpop.permute.xlu0 %4352
        %4355 = vrot.lane.b32.xlu0 %v4243, 96
        %v4356 = vpop.permute.xlu0 %4355
        %v4358 = vsel %vm3001, %v4353, 0
        %v4361 = vsel %vm3001, %v4356, 0
        %4363 = vmatprep.subr.bf16.mxu0 0
        %4364 = vmatpush1.bf16.xpose.msra.mxu0 0
        %4365 = vmatprep.subr.bf16.mxu0 0
        %4366 = vmatpush1.bf16.xpose.msra.mxu0 0
        %4367 = vmatprep.subr.bf16.mxu0 0
        %4368 = vmatpush1.bf16.xpose.msra.mxu0 0
        %4369 = vmatprep.subr.bf16.mxu0 0
        %4370 = vmatpush1.bf16.xpose.msra.mxu0 0
        %4371 = vmatprep.subr.bf16.mxu0 0
        %4372 = vmatpush1.bf16.xpose.msra.mxu0 0
        %4373 = vmatprep.subr.bf16.mxu0 0
        %4374 = vmatpush1.bf16.xpose.msra.mxu0 0
        %4375 = vmatprep.subr.bf16.mxu0 0
        %4376 = vmatpush1.bf16.xpose.msra.mxu0 0
        %4377 = vmatprep.subr.bf16.mxu0 0
        %4378 = vmatpush1.bf16.xpose.msra.mxu0 %v4361
        %4379 = vmatprep.subr.bf16.mxu0 0
        %4380 = vmatpush2.bf16.xpose.msra.mxu0 0
        %4381 = vmatprep.subr.bf16.mxu0 0
        %4382 = vmatpush2.bf16.xpose.msra.mxu0 0
        %4383 = vmatprep.subr.bf16.mxu0 0
        %4384 = vmatpush2.bf16.xpose.msra.mxu0 0
        %4385 = vmatprep.subr.bf16.mxu0 0
        %4386 = vmatpush2.bf16.xpose.msra.mxu0 0
        %4387 = vmatprep.subr.bf16.mxu0 0
        %4388 = vmatpush2.bf16.xpose.msra.mxu0 0
        %4389 = vmatprep.subr.bf16.mxu0 0
        %4390 = vmatpush2.bf16.xpose.msra.mxu0 0
        %4391 = vmatprep.subr.bf16.mxu0 0
        %4392 = vmatpush2.bf16.xpose.msra.mxu0 0
        %4393 = vmatprep.subr.bf16.mxu0 0
        %4394 = vmatpush2.bf16.xpose.msra.mxu0 0
        %4395 = vmatprep.mubr.bf16.mxu0 0
        %4396 = vmatmul.mubr.bf16.gmra.mxu0 %v4358
        %v4397 = vpop.f32.mrf.mxu0
        %v4398 = vadd.f32 0.0, %v4397
        %v4399 = vpop.f32.mrf.mxu0
        %v4400 = vpop.f32.mrf.mxu0
        %v4401 = vpop.f32.mrf.mxu0
        %4402 = vdwg.mxu0
        %v4403 = vmul.f32 %v4398, 0.17677669
        %v4404 = vadd.f32 %v4403, %v2710
        %v4405 = vsel %vm3050, %v4404, -inf
        %4406 = vmax.xlane.f32.xlu0 %v4405
        %v4407 = vpop.xlane.xlu0 %4406
        %v4408 = vsub.f32 %v4404, %v4407
        %v4409 = vmul.f32 %v4408, 1.442695
        %v4410 = vpow.pop %v4409
        %v4411 = vsel %vm3050, %v4410, 0.0
        %4412 = vadd.xlane.f32.xlu0 %v4411
        %v4413 = vpop.xlane.xlu0 %4412
        %v4414 = vrcp.pop %v4413
        %v4415 = vmul.f32 %v4410, %v4414
        %v4416 = vpack.c.bf16 %v4415, %v4415
        %4418 = vrot.lane.b32.xlu0 %v4244, 96
        %v4419 = vpop.permute.xlu0 %4418
        %v4421 = vsel %vm3050, %v4416, 0
        %v4424 = vsel %vm3066, %v4419, 0
        %4426 = vmatprep.subr.bf16.mxu0 0
        %4427 = vmatpush1.bf16.msra.mxu0 0
        %4428 = vmatprep.subr.bf16.mxu0 0
        %4429 = vmatpush1.bf16.msra.mxu0 0
        %4430 = vmatprep.subr.bf16.mxu0 0
        %4431 = vmatpush1.bf16.msra.mxu0 0
        %4432 = vmatprep.subr.bf16.mxu0 0
        %4433 = vmatpush1.bf16.msra.mxu0 0
        %4434 = vmatprep.subr.bf16.mxu0 0
        %4435 = vmatpush1.bf16.msra.mxu0 0
        %4436 = vmatprep.subr.bf16.mxu0 0
        %4437 = vmatpush1.bf16.msra.mxu0 0
        %4438 = vmatprep.subr.bf16.mxu0 0
        %4439 = vmatpush1.bf16.msra.mxu0 0
        %4440 = vmatprep.subr.bf16.mxu0 0
        %4441 = vmatpush1.bf16.msra.mxu0 %v4424
        %4442 = vmatprep.subr.bf16.mxu0 0
        %4443 = vmatpush2.bf16.msra.mxu0 0
        %4444 = vmatprep.subr.bf16.mxu0 0
        %4445 = vmatpush2.bf16.msra.mxu0 0
        %4446 = vmatprep.subr.bf16.mxu0 0
        %4447 = vmatpush2.bf16.msra.mxu0 0
        %4448 = vmatprep.subr.bf16.mxu0 0
        %4449 = vmatpush2.bf16.msra.mxu0 0
        %4450 = vmatprep.subr.bf16.mxu0 0
        %4451 = vmatpush2.bf16.msra.mxu0 0
        %4452 = vmatprep.subr.bf16.mxu0 0
        %4453 = vmatpush2.bf16.msra.mxu0 0
        %4454 = vmatprep.subr.bf16.mxu0 0
        %4455 = vmatpush2.bf16.msra.mxu0 0
        %4456 = vmatprep.subr.bf16.mxu0 0
        %4457 = vmatpush2.bf16.msra.mxu0 0
        %4458 = vmatprep.mubr.bf16.mxu0 0
        %4459 = vmatmul.mubr.bf16.gmra.mxu0 %v4421
        %v4460 = vpop.f32.mrf.mxu0
        %v4461 = vadd.f32 0.0, %v4460
        %v4462 = vpop.f32.mrf.mxu0
        %v4463 = vpop.f32.mrf.mxu0
        %v4464 = vpop.f32.mrf.mxu0
        %4465 = vdwg.mxu0
        %4466 = vrot.lane.b32.xlu0 %v4242, 64
        %v4467 = vpop.permute.xlu0 %4466
        %4468 = vrot.lane.b32.xlu0 %v4243, 64
        %v4469 = vpop.permute.xlu0 %4468
        %v4471 = vsel %vm3001, %v4467, 0
        %v4474 = vsel %vm3001, %v4469, 0
        %4476 = vmatprep.subr.bf16.mxu0 0
        %4477 = vmatpush1.bf16.xpose.msra.mxu0 0
        %4478 = vmatprep.subr.bf16.mxu0 0
        %4479 = vmatpush1.bf16.xpose.msra.mxu0 0
        %4480 = vmatprep.subr.bf16.mxu0 0
        %4481 = vmatpush1.bf16.xpose.msra.mxu0 0
        %4482 = vmatprep.subr.bf16.mxu0 0
        %4483 = vmatpush1.bf16.xpose.msra.mxu0 0
        %4484 = vmatprep.subr.bf16.mxu0 0
        %4485 = vmatpush1.bf16.xpose.msra.mxu0 0
        %4486 = vmatprep.subr.bf16.mxu0 0
        %4487 = vmatpush1.bf16.xpose.msra.mxu0 0
        %4488 = vmatprep.subr.bf16.mxu0 0
        %4489 = vmatpush1.bf16.xpose.msra.mxu0 0
        %4490 = vmatprep.subr.bf16.mxu0 0
        %4491 = vmatpush1.bf16.xpose.msra.mxu0 %v4474
        %4492 = vmatprep.subr.bf16.mxu0 0
        %4493 = vmatpush2.bf16.xpose.msra.mxu0 0
        %4494 = vmatprep.subr.bf16.mxu0 0
        %4495 = vmatpush2.bf16.xpose.msra.mxu0 0
        %4496 = vmatprep.subr.bf16.mxu0 0
        %4497 = vmatpush2.bf16.xpose.msra.mxu0 0
        %4498 = vmatprep.subr.bf16.mxu0 0
        %4499 = vmatpush2.bf16.xpose.msra.mxu0 0
        %4500 = vmatprep.subr.bf16.mxu0 0
        %4501 = vmatpush2.bf16.xpose.msra.mxu0 0
        %4502 = vmatprep.subr.bf16.mxu0 0
        %4503 = vmatpush2.bf16.xpose.msra.mxu0 0
        %4504 = vmatprep.subr.bf16.mxu0 0
        %4505 = vmatpush2.bf16.xpose.msra.mxu0 0
        %4506 = vmatprep.subr.bf16.mxu0 0
        %4507 = vmatpush2.bf16.xpose.msra.mxu0 0
        %4508 = vmatprep.mubr.bf16.mxu0 0
        %4509 = vmatmul.mubr.bf16.gmra.mxu0 %v4471
        %v4510 = vpop.f32.mrf.mxu0
        %v4511 = vadd.f32 0.0, %v4510
        %v4512 = vpop.f32.mrf.mxu0
        %v4513 = vpop.f32.mrf.mxu0
        %v4514 = vpop.f32.mrf.mxu0
        %4515 = vdwg.mxu0
        %v4516 = vmul.f32 %v4511, 0.17677669
        %v4517 = vadd.f32 %v4516, %v2710
        %v4518 = vsel %vm3050, %v4517, -inf
        %4519 = vmax.xlane.f32.xlu0 %v4518
        %v4520 = vpop.xlane.xlu0 %4519
        %v4521 = vsub.f32 %v4517, %v4520
        %v4522 = vmul.f32 %v4521, 1.442695
        %v4523 = vpow.pop %v4522
        %v4524 = vsel %vm3050, %v4523, 0.0
        %4525 = vadd.xlane.f32.xlu0 %v4524
        %v4526 = vpop.xlane.xlu0 %4525
        %v4527 = vrcp.pop %v4526
        %v4528 = vmul.f32 %v4523, %v4527
        %v4529 = vpack.c.bf16 %v4528, %v4528
        %4530 = vrot.lane.b32.xlu0 %v4244, 64
        %v4531 = vpop.permute.xlu0 %4530
        %v4533 = vsel %vm3050, %v4529, 0
        %v4536 = vsel %vm3066, %v4531, 0
        %4538 = vmatprep.subr.bf16.mxu0 0
        %4539 = vmatpush1.bf16.msra.mxu0 0
        %4540 = vmatprep.subr.bf16.mxu0 0
        %4541 = vmatpush1.bf16.msra.mxu0 0
        %4542 = vmatprep.subr.bf16.mxu0 0
        %4543 = vmatpush1.bf16.msra.mxu0 0
        %4544 = vmatprep.subr.bf16.mxu0 0
        %4545 = vmatpush1.bf16.msra.mxu0 0
        %4546 = vmatprep.subr.bf16.mxu0 0
        %4547 = vmatpush1.bf16.msra.mxu0 0
        %4548 = vmatprep.subr.bf16.mxu0 0
        %4549 = vmatpush1.bf16.msra.mxu0 0
        %4550 = vmatprep.subr.bf16.mxu0 0
        %4551 = vmatpush1.bf16.msra.mxu0 0
        %4552 = vmatprep.subr.bf16.mxu0 0
        %4553 = vmatpush1.bf16.msra.mxu0 %v4536
        %4554 = vmatprep.subr.bf16.mxu0 0
        %4555 = vmatpush2.bf16.msra.mxu0 0
        %4556 = vmatprep.subr.bf16.mxu0 0
        %4557 = vmatpush2.bf16.msra.mxu0 0
        %4558 = vmatprep.subr.bf16.mxu0 0
        %4559 = vmatpush2.bf16.msra.mxu0 0
        %4560 = vmatprep.subr.bf16.mxu0 0
        %4561 = vmatpush2.bf16.msra.mxu0 0
        %4562 = vmatprep.subr.bf16.mxu0 0
        %4563 = vmatpush2.bf16.msra.mxu0 0
        %4564 = vmatprep.subr.bf16.mxu0 0
        %4565 = vmatpush2.bf16.msra.mxu0 0
        %4566 = vmatprep.subr.bf16.mxu0 0
        %4567 = vmatpush2.bf16.msra.mxu0 0
        %4568 = vmatprep.subr.bf16.mxu0 0
        %4569 = vmatpush2.bf16.msra.mxu0 0
        %4570 = vmatprep.mubr.bf16.mxu0 0
        %4571 = vmatmul.mubr.bf16.gmra.mxu0 %v4533
        %v4572 = vpop.f32.mrf.mxu0
        %v4573 = vadd.f32 0.0, %v4572
        %v4574 = vpop.f32.mrf.mxu0
        %v4575 = vpop.f32.mrf.mxu0
        %v4576 = vpop.f32.mrf.mxu0
        %4577 = vdwg.mxu0
        %4578 = vrot.lane.b32.xlu0 %v4242, 32
        %v4579 = vpop.permute.xlu0 %4578
        %4580 = vrot.lane.b32.xlu0 %v4243, 32
        %v4581 = vpop.permute.xlu0 %4580
        %v4583 = vsel %vm3001, %v4579, 0
        %v4586 = vsel %vm3001, %v4581, 0
        %4588 = vmatprep.subr.bf16.mxu0 0
        %4589 = vmatpush1.bf16.xpose.msra.mxu0 0
        %4590 = vmatprep.subr.bf16.mxu0 0
        %4591 = vmatpush1.bf16.xpose.msra.mxu0 0
        %4592 = vmatprep.subr.bf16.mxu0 0
        %4593 = vmatpush1.bf16.xpose.msra.mxu0 0
        %4594 = vmatprep.subr.bf16.mxu0 0
        %4595 = vmatpush1.bf16.xpose.msra.mxu0 0
        %4596 = vmatprep.subr.bf16.mxu0 0
        %4597 = vmatpush1.bf16.xpose.msra.mxu0 0
        %4598 = vmatprep.subr.bf16.mxu0 0
        %4599 = vmatpush1.bf16.xpose.msra.mxu0 0
        %4600 = vmatprep.subr.bf16.mxu0 0
        %4601 = vmatpush1.bf16.xpose.msra.mxu0 0
        %4602 = vmatprep.subr.bf16.mxu0 0
        %4603 = vmatpush1.bf16.xpose.msra.mxu0 %v4586
        %4604 = vmatprep.subr.bf16.mxu0 0
        %4605 = vmatpush2.bf16.xpose.msra.mxu0 0
        %4606 = vmatprep.subr.bf16.mxu0 0
        %4607 = vmatpush2.bf16.xpose.msra.mxu0 0
        %4608 = vmatprep.subr.bf16.mxu0 0
        %4609 = vmatpush2.bf16.xpose.msra.mxu0 0
        %4610 = vmatprep.subr.bf16.mxu0 0
        %4611 = vmatpush2.bf16.xpose.msra.mxu0 0
        %4612 = vmatprep.subr.bf16.mxu0 0
        %4613 = vmatpush2.bf16.xpose.msra.mxu0 0
        %4614 = vmatprep.subr.bf16.mxu0 0
        %4615 = vmatpush2.bf16.xpose.msra.mxu0 0
        %4616 = vmatprep.subr.bf16.mxu0 0
        %4617 = vmatpush2.bf16.xpose.msra.mxu0 0
        %4618 = vmatprep.subr.bf16.mxu0 0
        %4619 = vmatpush2.bf16.xpose.msra.mxu0 0
        %4620 = vmatprep.mubr.bf16.mxu0 0
        %4621 = vmatmul.mubr.bf16.gmra.mxu0 %v4583
        %v4622 = vpop.f32.mrf.mxu0
        %v4623 = vadd.f32 0.0, %v4622
        %v4624 = vpop.f32.mrf.mxu0
        %v4625 = vpop.f32.mrf.mxu0
        %v4626 = vpop.f32.mrf.mxu0
        %4627 = vdwg.mxu0
        %v4628 = vmul.f32 %v4623, 0.17677669
        %v4629 = vadd.f32 %v4628, %v2710
        %v4630 = vsel %vm3050, %v4629, -inf
        %4631 = vmax.xlane.f32.xlu0 %v4630
        %v4632 = vpop.xlane.xlu0 %4631
        %v4633 = vsub.f32 %v4629, %v4632
        %v4634 = vmul.f32 %v4633, 1.442695
        %v4635 = vpow.pop %v4634
        %v4636 = vsel %vm3050, %v4635, 0.0
        %4637 = vadd.xlane.f32.xlu0 %v4636
        %v4638 = vpop.xlane.xlu0 %4637
        %v4639 = vrcp.pop %v4638
        %v4640 = vmul.f32 %v4635, %v4639
        %v4641 = vpack.c.bf16 %v4640, %v4640
        %4642 = vrot.lane.b32.xlu0 %v4244, 32
        %v4643 = vpop.permute.xlu0 %4642
        %v4645 = vsel %vm3050, %v4641, 0
        %v4648 = vsel %vm3066, %v4643, 0
        %4650 = vmatprep.subr.bf16.mxu0 0
        %4651 = vmatpush1.bf16.msra.mxu0 0
        %4652 = vmatprep.subr.bf16.mxu0 0
        %4653 = vmatpush1.bf16.msra.mxu0 0
        %4654 = vmatprep.subr.bf16.mxu0 0
        %4655 = vmatpush1.bf16.msra.mxu0 0
        %4656 = vmatprep.subr.bf16.mxu0 0
        %4657 = vmatpush1.bf16.msra.mxu0 0
        %4658 = vmatprep.subr.bf16.mxu0 0
        %4659 = vmatpush1.bf16.msra.mxu0 0
        %4660 = vmatprep.subr.bf16.mxu0 0
        %4661 = vmatpush1.bf16.msra.mxu0 0
        %4662 = vmatprep.subr.bf16.mxu0 0
        %4663 = vmatpush1.bf16.msra.mxu0 0
        %4664 = vmatprep.subr.bf16.mxu0 0
        %4665 = vmatpush1.bf16.msra.mxu0 %v4648
        %4666 = vmatprep.subr.bf16.mxu0 0
        %4667 = vmatpush2.bf16.msra.mxu0 0
        %4668 = vmatprep.subr.bf16.mxu0 0
        %4669 = vmatpush2.bf16.msra.mxu0 0
        %4670 = vmatprep.subr.bf16.mxu0 0
        %4671 = vmatpush2.bf16.msra.mxu0 0
        %4672 = vmatprep.subr.bf16.mxu0 0
        %4673 = vmatpush2.bf16.msra.mxu0 0
        %4674 = vmatprep.subr.bf16.mxu0 0
        %4675 = vmatpush2.bf16.msra.mxu0 0
        %4676 = vmatprep.subr.bf16.mxu0 0
        %4677 = vmatpush2.bf16.msra.mxu0 0
        %4678 = vmatprep.subr.bf16.mxu0 0
        %4679 = vmatpush2.bf16.msra.mxu0 0
        %4680 = vmatprep.subr.bf16.mxu0 0
        %4681 = vmatpush2.bf16.msra.mxu0 0
        %4682 = vmatprep.mubr.bf16.mxu0 0
        %4683 = vmatmul.mubr.bf16.gmra.mxu0 %v4645
        %v4684 = vpop.f32.mrf.mxu0
        %v4685 = vadd.f32 0.0, %v4684
        %v4686 = vpop.f32.mrf.mxu0
        %v4687 = vpop.f32.mrf.mxu0
        %v4688 = vpop.f32.mrf.mxu0
        %4689 = vdwg.mxu0
        %4691 = vrot.lane.b32.xlu0 %v4461, 32
        %v4692 = vpop.permute.xlu0 %4691
        %4695 = vrot.lane.b32.xlu0 %v4573, 64
        %v4696 = vpop.permute.xlu0 %4695
        %4699 = vrot.lane.b32.xlu0 %v4685, 96
        %v4700 = vpop.permute.xlu0 %4699
        %v4702 = vsel %vm3001, %v4346, %v4692
        %v4703 = vsel %vm3462, %v4702, %v4696
        %v4704 = vsel %vm3464, %v4703, %v4700
        %v4705 = vpack.c.bf16 %v4704, %v4704
        %s4706 = scalar_lea.vmem %s5, 64
        %v4707 = vld [vmem:[%s4706] sm:$0xf]
        %v4708 = vld [vmem:[%s4706 + $0x4] sm:$0xf]
        %v4709 = vld [vmem:[%s4706 + $0x8] sm:$0xf]
        %v4710 = vld [vmem:[%s4706 + $0xc] sm:$0xf]
        %v4711 = vld [vmem:[%s4706 + $0x10] sm:$0xf]
        %v4712 = vld [vmem:[%s4706 + $0x14] sm:$0xf]
        %v4713 = vld [vmem:[%s4706 + $0x18] sm:$0xf]
        %v4714 = vld [vmem:[%s4706 + $0x1c] sm:$0xf]
        %v4715 = vld [vmem:[%s4706 + $0x20] sm:$0xf]
        %v4716 = vld [vmem:[%s4706 + $0x24] sm:$0xf]
        %v4717 = vld [vmem:[%s4706 + $0x28] sm:$0xf]
        %v4718 = vld [vmem:[%s4706 + $0x2c] sm:$0xf]
        %v4719 = vld [vmem:[%s4706 + $0x30] sm:$0xf]
        %v4720 = vld [vmem:[%s4706 + $0x34] sm:$0xf]
        %v4721 = vld [vmem:[%s4706 + $0x38] sm:$0xf]
        %v4722 = vld [vmem:[%s4706 + $0x3c] sm:$0xf]
        %s4723 = scalar_lea.vmem %s6, 1
        %v4724 = vld [vmem:[%s4723] sm:$0x1]
        %v4726 = vlaneseq
        %v4727 = vshrl.u32 %v4726, 7
        %v4728 = vsub.s32 0, %v4727
        %v4729 = vrot.slane %v4724, %v4728
        %v4747 = vunpack.c.l.b16 %v4707
        %v4748 = vunpack.c.l.b16 %v4708
        %v4749 = vunpack.c.l.b16 %v4709
        %v4750 = vunpack.c.l.b16 %v4710
        %v4751 = vunpack.c.l.b16 %v4711
        %v4752 = vunpack.c.l.b16 %v4712
        %v4753 = vunpack.c.l.b16 %v4713
        %v4754 = vunpack.c.l.b16 %v4714
        %v4755 = vunpack.c.l.b16 %v4715
        %v4756 = vunpack.c.l.b16 %v4716
        %v4757 = vunpack.c.l.b16 %v4717
        %v4758 = vunpack.c.l.b16 %v4718
        %v4759 = vunpack.c.l.b16 %v4719
        %v4760 = vunpack.c.l.b16 %v4720
        %v4761 = vunpack.c.l.b16 %v4721
        %v4762 = vunpack.c.l.b16 %v4722
        %v4763 = vpack.c.b16 %v4748, %v4747
        %v4764 = vpack.c.b16 %v4750, %v4749
        %v4765 = vpack.c.b16 %v4752, %v4751
        %v4766 = vpack.c.b16 %v4754, %v4753
        %v4767 = vpack.c.b16 %v4756, %v4755
        %v4768 = vpack.c.b16 %v4758, %v4757
        %v4769 = vpack.c.b16 %v4760, %v4759
        %v4770 = vpack.c.b16 %v4762, %v4761
        %4779 = vmatprep.subr.bf16.mxu0 0
        %4780 = vmatpush1.bf16.msra.mxu0 %v4770
        %4781 = vmatprep.subr.bf16.mxu0 0
        %4782 = vmatpush1.bf16.msra.mxu0 %v4769
        %4783 = vmatprep.subr.bf16.mxu0 0
        %4784 = vmatpush1.bf16.msra.mxu0 %v4768
        %4785 = vmatprep.subr.bf16.mxu0 0
        %4786 = vmatpush1.bf16.msra.mxu0 %v4767
        %4787 = vmatprep.subr.bf16.mxu0 0
        %4788 = vmatpush1.bf16.msra.mxu0 %v4766
        %4789 = vmatprep.subr.bf16.mxu0 0
        %4790 = vmatpush1.bf16.msra.mxu0 %v4765
        %4791 = vmatprep.subr.bf16.mxu0 0
        %4792 = vmatpush1.bf16.msra.mxu0 %v4764
        %4793 = vmatprep.subr.bf16.mxu0 0
        %4794 = vmatpush1.bf16.msra.mxu0 %v4763
        %4795 = vmatprep.subr.bf16.mxu0 0
        %4796 = vmatpush2.bf16.msra.mxu0 0
        %4797 = vmatprep.subr.bf16.mxu0 0
        %4798 = vmatpush2.bf16.msra.mxu0 0
        %4799 = vmatprep.subr.bf16.mxu0 0
        %4800 = vmatpush2.bf16.msra.mxu0 0
        %4801 = vmatprep.subr.bf16.mxu0 0
        %4802 = vmatpush2.bf16.msra.mxu0 0
        %4803 = vmatprep.subr.bf16.mxu0 0
        %4804 = vmatpush2.bf16.msra.mxu0 0
        %4805 = vmatprep.subr.bf16.mxu0 0
        %4806 = vmatpush2.bf16.msra.mxu0 0
        %4807 = vmatprep.subr.bf16.mxu0 0
        %4808 = vmatpush2.bf16.msra.mxu0 0
        %4809 = vmatprep.subr.bf16.mxu0 0
        %4810 = vmatpush2.bf16.msra.mxu0 0
        %4811 = vmatprep.mubr.bf16.mxu0 0
        %4812 = vmatmul.mubr.bf16.gmra.mxu0 %v4705
        %v4813 = vpop.f32.mrf.mxu0
        %v4814 = vadd.f32 %v4729, %v4813
        %v4815 = vpop.f32.mrf.mxu0
        %v4816 = vpop.f32.mrf.mxu0
        %v4817 = vpop.f32.mrf.mxu0
        %4818 = vdwg.mxu0
        %v4819 = vadd.f32 %v3951, %v4814
        %s4820 = scalar_lea.vmem %s9, 1
        %v4821 = vld [vmem:[%s4820] sm:$0x1]
        %s4822 = scalar_lea.vmem %s10, 1
        %v4823 = vld [vmem:[%s4822] sm:$0x1]
        %4824 = vadd.xlane.f32.xlu0 %v4819
        %v4825 = vpop.xlane.xlu0 %4824
        %v4826 = vmul.f32 %v4825, %v2715
        %v4827 = vsub.f32 %v4819, %v4826
        %v4828 = vmul.f32 %v4827, %v4827
        %4829 = vadd.xlane.f32.xlu0 %v4828
        %v4830 = vpop.xlane.xlu0 %4829
        %v4831 = vmul.f32 %v4830, %v2715
        %v4832 = vadd.f32 %v4831, 1e-06
        %v4833 = vrsqrt.pop %v4832
        %v4834 = vmul.f32 %v4827, %v4833
        %v4836 = vlaneseq
        %v4837 = vshrl.u32 %v4836, 7
        %v4838 = vsub.s32 0, %v4837
        %v4839 = vrot.slane %v4821, %v4838
        %v4841 = vmul.f32 %v4834, %v4839
        %v4843 = vlaneseq
        %v4844 = vshrl.u32 %v4843, 7
        %v4845 = vsub.s32 0, %v4844
        %v4846 = vrot.slane %v4823, %v4845
        %v4848 = vadd.f32 %v4841, %v4846
        %v4849 = vpack.c.bf16 %v4848, %v4848
        %s4850 = scalar_lea.vmem %s11, 128
        %v4851 = vld [vmem:[%s4850] sm:$0xff]
        %v4852 = vld [vmem:[%s4850 + $0x8] sm:$0xff]
        %v4853 = vld [vmem:[%s4850 + $0x10] sm:$0xff]
        %v4854 = vld [vmem:[%s4850 + $0x18] sm:$0xff]
        %v4855 = vld [vmem:[%s4850 + $0x20] sm:$0xff]
        %v4856 = vld [vmem:[%s4850 + $0x28] sm:$0xff]
        %v4857 = vld [vmem:[%s4850 + $0x30] sm:$0xff]
        %v4858 = vld [vmem:[%s4850 + $0x38] sm:$0xff]
        %v4859 = vld [vmem:[%s4850 + $0x40] sm:$0xff]
        %v4860 = vld [vmem:[%s4850 + $0x48] sm:$0xff]
        %v4861 = vld [vmem:[%s4850 + $0x50] sm:$0xff]
        %v4862 = vld [vmem:[%s4850 + $0x58] sm:$0xff]
        %v4863 = vld [vmem:[%s4850 + $0x60] sm:$0xff]
        %v4864 = vld [vmem:[%s4850 + $0x68] sm:$0xff]
        %v4865 = vld [vmem:[%s4850 + $0x70] sm:$0xff]
        %v4866 = vld [vmem:[%s4850 + $0x78] sm:$0xff]
        %s4867 = scalar_lea.vmem %s12, 2
        %v4868 = vld [vmem:[%s4867] sm:$0x3]
        %v4870 = vlaneseq
        %v4871 = vshrl.u32 %v4870, 7
        %v4872 = vsub.s32 0, %v4871
        %v4873 = vrot.slane %v4868, %v4872
        %v4874 = vlaneseq
        %v4875 = vshrl.u32 %v4874, 7
        %v4876 = vsub.s32 1, %v4875
        %v4877 = vrot.slane %v4868, %v4876
        %v4896 = vunpack.c.l.b16 %v4851
        %v4897 = vunpack.c.h.b16 %v4851
        %v4898 = vunpack.c.l.b16 %v4852
        %v4899 = vunpack.c.h.b16 %v4852
        %v4900 = vunpack.c.l.b16 %v4853
        %v4901 = vunpack.c.h.b16 %v4853
        %v4902 = vunpack.c.l.b16 %v4854
        %v4903 = vunpack.c.h.b16 %v4854
        %v4904 = vunpack.c.l.b16 %v4855
        %v4905 = vunpack.c.h.b16 %v4855
        %v4906 = vunpack.c.l.b16 %v4856
        %v4907 = vunpack.c.h.b16 %v4856
        %v4908 = vunpack.c.l.b16 %v4857
        %v4909 = vunpack.c.h.b16 %v4857
        %v4910 = vunpack.c.l.b16 %v4858
        %v4911 = vunpack.c.h.b16 %v4858
        %v4912 = vunpack.c.l.b16 %v4859
        %v4913 = vunpack.c.h.b16 %v4859
        %v4914 = vunpack.c.l.b16 %v4860
        %v4915 = vunpack.c.h.b16 %v4860
        %v4916 = vunpack.c.l.b16 %v4861
        %v4917 = vunpack.c.h.b16 %v4861
        %v4918 = vunpack.c.l.b16 %v4862
        %v4919 = vunpack.c.h.b16 %v4862
        %v4920 = vunpack.c.l.b16 %v4863
        %v4921 = vunpack.c.h.b16 %v4863
        %v4922 = vunpack.c.l.b16 %v4864
        %v4923 = vunpack.c.h.b16 %v4864
        %v4924 = vunpack.c.l.b16 %v4865
        %v4925 = vunpack.c.h.b16 %v4865
        %v4926 = vunpack.c.l.b16 %v4866
        %v4927 = vunpack.c.h.b16 %v4866
        %v4928 = vpack.c.b16 %v4898, %v4896
        %v4929 = vpack.c.b16 %v4899, %v4897
        %v4930 = vpack.c.b16 %v4902, %v4900
        %v4931 = vpack.c.b16 %v4903, %v4901
        %v4932 = vpack.c.b16 %v4906, %v4904
        %v4933 = vpack.c.b16 %v4907, %v4905
        %v4934 = vpack.c.b16 %v4910, %v4908
        %v4935 = vpack.c.b16 %v4911, %v4909
        %v4936 = vpack.c.b16 %v4914, %v4912
        %v4937 = vpack.c.b16 %v4915, %v4913
        %v4938 = vpack.c.b16 %v4918, %v4916
        %v4939 = vpack.c.b16 %v4919, %v4917
        %v4940 = vpack.c.b16 %v4922, %v4920
        %v4941 = vpack.c.b16 %v4923, %v4921
        %v4942 = vpack.c.b16 %v4926, %v4924
        %v4943 = vpack.c.b16 %v4927, %v4925
        %4960 = vmatprep.subr.bf16.mxu0 %v4943
        %4961 = vmatpush1.bf16.msra.mxu0 %v4942
        %4962 = vmatprep.subr.bf16.mxu0 %v4941
        %4963 = vmatpush1.bf16.msra.mxu0 %v4940
        %4964 = vmatprep.subr.bf16.mxu0 %v4939
        %4965 = vmatpush1.bf16.msra.mxu0 %v4938
        %4966 = vmatprep.subr.bf16.mxu0 %v4937
        %4967 = vmatpush1.bf16.msra.mxu0 %v4936
        %4968 = vmatprep.subr.bf16.mxu0 %v4935
        %4969 = vmatpush1.bf16.msra.mxu0 %v4934
        %4970 = vmatprep.subr.bf16.mxu0 %v4933
        %4971 = vmatpush1.bf16.msra.mxu0 %v4932
        %4972 = vmatprep.subr.bf16.mxu0 %v4931
        %4973 = vmatpush1.bf16.msra.mxu0 %v4930
        %4974 = vmatprep.subr.bf16.mxu0 %v4929
        %4975 = vmatpush1.bf16.msra.mxu0 %v4928
        %4976 = vmatprep.subr.bf16.mxu0 0
        %4977 = vmatpush2.bf16.msra.mxu0 0
        %4978 = vmatprep.subr.bf16.mxu0 0
        %4979 = vmatpush2.bf16.msra.mxu0 0
        %4980 = vmatprep.subr.bf16.mxu0 0
        %4981 = vmatpush2.bf16.msra.mxu0 0
        %4982 = vmatprep.subr.bf16.mxu0 0
        %4983 = vmatpush2.bf16.msra.mxu0 0
        %4984 = vmatprep.subr.bf16.mxu0 0
        %4985 = vmatpush2.bf16.msra.mxu0 0
        %4986 = vmatprep.subr.bf16.mxu0 0
        %4987 = vmatpush2.bf16.msra.mxu0 0
        %4988 = vmatprep.subr.bf16.mxu0 0
        %4989 = vmatpush2.bf16.msra.mxu0 0
        %4990 = vmatprep.subr.bf16.mxu0 0
        %4991 = vmatpush2.bf16.msra.mxu0 0
        %4992 = vmatprep.mubr.bf16.mxu0 0
        %4993 = vmatmul.mubr.bf16.gmra.mxu0 %v4849
        %v4994 = vpop.f32.mrf.mxu0
        %v4995 = vadd.f32 %v4873, %v4994
        %v4996 = vpop.f32.mrf.mxu0
        %v4997 = vadd.f32 %v4877, %v4996
        %v4998 = vpop.f32.mrf.mxu0
        %v4999 = vpop.f32.mrf.mxu0
        %5000 = vdwg.mxu0
        %v5001 = vmul.f32 %v4995, 0.5
        %v5002 = vmul.f32 %v4997, 0.5
        %v5003 = vmul.f32 %v4995, 0.044715
        %v5004 = vmul.f32 %v4997, 0.044715
        %v5005 = vmul.f32 %v5003, %v4995
        %v5006 = vmul.f32 %v5004, %v4997
        %v5007 = vmul.f32 %v5005, %v4995
        %v5008 = vmul.f32 %v5006, %v4997
        %v5009 = vadd.f32 %v4995, %v5007
        %v5010 = vadd.f32 %v4997, %v5008
        %v5011 = vmul.f32 %v5009, 0.7978846
        %v5012 = vmul.f32 %v5010, 0.7978846
        %v5013 = vtanh.pop %v5011
        %v5014 = vtanh.pop %v5012
        %v5015 = vadd.f32 %v5013, 1.0
        %v5016 = vadd.f32 %v5014, 1.0
        %v5017 = vmul.f32 %v5001, %v5015
        %v5018 = vmul.f32 %v5002, %v5016
        %v5019 = vpack.c.bf16 %v5017, %v5017
        %v5020 = vpack.c.bf16 %v5018, %v5018
        %s5021 = scalar_lea.vmem %s13, 128
        %v5022 = vld [vmem:[%s5021] sm:$0xf]
        %v5023 = vld [vmem:[%s5021 + $0x4] sm:$0xf]
        %v5024 = vld [vmem:[%s5021 + $0x8] sm:$0xf]
        %v5025 = vld [vmem:[%s5021 + $0xc] sm:$0xf]
        %v5026 = vld [vmem:[%s5021 + $0x10] sm:$0xf]
        %v5027 = vld [vmem:[%s5021 + $0x14] sm:$0xf]
        %v5028 = vld [vmem:[%s5021 + $0x18] sm:$0xf]
        %v5029 = vld [vmem:[%s5021 + $0x1c] sm:$0xf]
        %v5030 = vld [vmem:[%s5021 + $0x20] sm:$0xf]
        %v5031 = vld [vmem:[%s5021 + $0x24] sm:$0xf]
        %v5032 = vld [vmem:[%s5021 + $0x28] sm:$0xf]
        %v5033 = vld [vmem:[%s5021 + $0x2c] sm:$0xf]
        %v5034 = vld [vmem:[%s5021 + $0x30] sm:$0xf]
        %v5035 = vld [vmem:[%s5021 + $0x34] sm:$0xf]
        %v5036 = vld [vmem:[%s5021 + $0x38] sm:$0xf]
        %v5037 = vld [vmem:[%s5021 + $0x3c] sm:$0xf]
        %v5038 = vld [vmem:[%s5021 + $0x40] sm:$0xf]
        %v5039 = vld [vmem:[%s5021 + $0x44] sm:$0xf]
        %v5040 = vld [vmem:[%s5021 + $0x48] sm:$0xf]
        %v5041 = vld [vmem:[%s5021 + $0x4c] sm:$0xf]
        %v5042 = vld [vmem:[%s5021 + $0x50] sm:$0xf]
        %v5043 = vld [vmem:[%s5021 + $0x54] sm:$0xf]
        %v5044 = vld [vmem:[%s5021 + $0x58] sm:$0xf]
        %v5045 = vld [vmem:[%s5021 + $0x5c] sm:$0xf]
        %v5046 = vld [vmem:[%s5021 + $0x60] sm:$0xf]
        %v5047 = vld [vmem:[%s5021 + $0x64] sm:$0xf]
        %v5048 = vld [vmem:[%s5021 + $0x68] sm:$0xf]
        %v5049 = vld [vmem:[%s5021 + $0x6c] sm:$0xf]
        %v5050 = vld [vmem:[%s5021 + $0x70] sm:$0xf]
        %v5051 = vld [vmem:[%s5021 + $0x74] sm:$0xf]
        %v5052 = vld [vmem:[%s5021 + $0x78] sm:$0xf]
        %v5053 = vld [vmem:[%s5021 + $0x7c] sm:$0xf]
        %s5054 = scalar_lea.vmem %s14, 1
        %v5055 = vld [vmem:[%s5054] sm:$0x1]
        %v5057 = vlaneseq
        %v5058 = vshrl.u32 %v5057, 7
        %v5059 = vsub.s32 0, %v5058
        %v5060 = vrot.slane %v5055, %v5059
        %v5094 = vunpack.c.l.b16 %v5022
        %v5095 = vunpack.c.l.b16 %v5023
        %v5096 = vunpack.c.l.b16 %v5024
        %v5097 = vunpack.c.l.b16 %v5025
        %v5098 = vunpack.c.l.b16 %v5026
        %v5099 = vunpack.c.l.b16 %v5027
        %v5100 = vunpack.c.l.b16 %v5028
        %v5101 = vunpack.c.l.b16 %v5029
        %v5102 = vunpack.c.l.b16 %v5030
        %v5103 = vunpack.c.l.b16 %v5031
        %v5104 = vunpack.c.l.b16 %v5032
        %v5105 = vunpack.c.l.b16 %v5033
        %v5106 = vunpack.c.l.b16 %v5034
        %v5107 = vunpack.c.l.b16 %v5035
        %v5108 = vunpack.c.l.b16 %v5036
        %v5109 = vunpack.c.l.b16 %v5037
        %v5110 = vunpack.c.l.b16 %v5038
        %v5111 = vunpack.c.l.b16 %v5039
        %v5112 = vunpack.c.l.b16 %v5040
        %v5113 = vunpack.c.l.b16 %v5041
        %v5114 = vunpack.c.l.b16 %v5042
        %v5115 = vunpack.c.l.b16 %v5043
        %v5116 = vunpack.c.l.b16 %v5044
        %v5117 = vunpack.c.l.b16 %v5045
        %v5118 = vunpack.c.l.b16 %v5046
        %v5119 = vunpack.c.l.b16 %v5047
        %v5120 = vunpack.c.l.b16 %v5048
        %v5121 = vunpack.c.l.b16 %v5049
        %v5122 = vunpack.c.l.b16 %v5050
        %v5123 = vunpack.c.l.b16 %v5051
        %v5124 = vunpack.c.l.b16 %v5052
        %v5125 = vunpack.c.l.b16 %v5053
        %v5126 = vpack.c.b16 %v5095, %v5094
        %v5127 = vpack.c.b16 %v5097, %v5096
        %v5128 = vpack.c.b16 %v5099, %v5098
        %v5129 = vpack.c.b16 %v5101, %v5100
        %v5130 = vpack.c.b16 %v5103, %v5102
        %v5131 = vpack.c.b16 %v5105, %v5104
        %v5132 = vpack.c.b16 %v5107, %v5106
        %v5133 = vpack.c.b16 %v5109, %v5108
        %v5134 = vpack.c.b16 %v5111, %v5110
        %v5135 = vpack.c.b16 %v5113, %v5112
        %v5136 = vpack.c.b16 %v5115, %v5114
        %v5137 = vpack.c.b16 %v5117, %v5116
        %v5138 = vpack.c.b16 %v5119, %v5118
        %v5139 = vpack.c.b16 %v5121, %v5120
        %v5140 = vpack.c.b16 %v5123, %v5122
        %v5141 = vpack.c.b16 %v5125, %v5124
        %5158 = vmatprep.subr.bf16.mxu0 0
        %5159 = vmatpush1.bf16.msra.mxu0 %v5133
        %5160 = vmatprep.subr.bf16.mxu0 0
        %5161 = vmatpush1.bf16.msra.mxu0 %v5132
        %5162 = vmatprep.subr.bf16.mxu0 0
        %5163 = vmatpush1.bf16.msra.mxu0 %v5131
        %5164 = vmatprep.subr.bf16.mxu0 0
        %5165 = vmatpush1.bf16.msra.mxu0 %v5130
        %5166 = vmatprep.subr.bf16.mxu0 0
        %5167 = vmatpush1.bf16.msra.mxu0 %v5129
        %5168 = vmatprep.subr.bf16.mxu0 0
        %5169 = vmatpush1.bf16.msra.mxu0 %v5128
        %5170 = vmatprep.subr.bf16.mxu0 0
        %5171 = vmatpush1.bf16.msra.mxu0 %v5127
        %5172 = vmatprep.subr.bf16.mxu0 0
        %5173 = vmatpush1.bf16.msra.mxu0 %v5126
        %5174 = vmatprep.subr.bf16.mxu0 0
        %5175 = vmatpush2.bf16.msra.mxu0 %v5141
        %5176 = vmatprep.subr.bf16.mxu0 0
        %5177 = vmatpush2.bf16.msra.mxu0 %v5140
        %5178 = vmatprep.subr.bf16.mxu0 0
        %5179 = vmatpush2.bf16.msra.mxu0 %v5139
        %5180 = vmatprep.subr.bf16.mxu0 0
        %5181 = vmatpush2.bf16.msra.mxu0 %v5138
        %5182 = vmatprep.subr.bf16.mxu0 0
        %5183 = vmatpush2.bf16.msra.mxu0 %v5137
        %5184 = vmatprep.subr.bf16.mxu0 0
        %5185 = vmatpush2.bf16.msra.mxu0 %v5136
        %5186 = vmatprep.subr.bf16.mxu0 0
        %5187 = vmatpush2.bf16.msra.mxu0 %v5135
        %5188 = vmatprep.subr.bf16.mxu0 0
        %5189 = vmatpush2.bf16.msra.mxu0 %v5134
        %5190 = vmatprep.mubr.bf16.mxu0 %v5020
        %5191 = vmatmul.mubr.bf16.gmra.mxu0 %v5019
        %v5192 = vpop.f32.mrf.mxu0
        %v5193 = vadd.f32 %v5060, %v5192
        %v5194 = vpop.f32.mrf.mxu0
        %v5195 = vpop.f32.mrf.mxu0
        %v5196 = vpop.f32.mrf.mxu0
        %5197 = vdwg.mxu0
        %v5198 = vadd.f32 %v4819, %v5193
        %v5199 = vld [vmem:[%s15] sm:$0x1]
        %v5200 = vld [vmem:[%s16] sm:$0x1]
        %vm5201 = vcmask 1040384
        %v5202 = vsel %vm5201, %v5198, 0.0
        %5203 = vadd.xlane.f32.xlu0 %v5202
        %v5204 = vpop.xlane.xlu0 %5203
        %v5205 = vmul.f32 %v5204, %v2715
        %v5206 = vsub.f32 %v5198, %v5205
        %v5207 = vmul.f32 %v5206, %v5206
        %v5208 = vsel %vm5201, %v5207, 0.0
        %5209 = vadd.xlane.f32.xlu0 %v5208
        %v5210 = vpop.xlane.xlu0 %5209
        %v5211 = vmul.f32 %v5210, %v2715
        %v5212 = vadd.f32 %v5211, 1e-06
        %v5213 = vrsqrt.pop %v5212
        %v5214 = vmul.f32 %v5206, %v5213
        %v5215 = vmul.f32 %v5214, %v5199
        %v5216 = vadd.f32 %v5215, %v5200
        %5217 = vst [vmem:[%s540] sm:$0x1] %v5216
        %s5218 = sand.u32 %s401, 1
        %s5219 = scalar_lea.sflag [#allocation4], %s5218
        %s5220 = sand.u32 %s401, 1
        %s5221 = scalar_lea.vmem [#allocation3], %s5220
        // Predicated region
        $region89: #{image_encoder_forward.1} parent=87 // pred_check
          %p5222 = pneg %p411
        $region90: #{image_encoder_forward.1} parent=87 // pred_check_branch
          %5224 = sbr.rel (%p5222) target = $region92
        $region91: #{image_encoder_forward.1} parent=87 // pred_region
          %s5226 = ssub.s32 16, 16
          %5227 = vsyncadd %s5219, %s5226
          %s5228 = smul.addr %s31, 16
          %s5229 = scalar_lea.hbm %s17, %s5228
          %s5231 = sshll.u32 %s5221, 4
          %s5232 = int_to_ptr.vmem [resolvable:$true] %s5231
          %5234 = dma.vmem_to_hbm [thread:$0]  %s5232, 16, %s5229, %s5219
        $region92: #{image_encoder_forward.1} parent=87 // pred_fallthru
          _
      $region88: #{image_encoder_forward.1} parent=5 // pred_fallthru
        _
      %p5235 = scmp.le.s32.totalorder 2, %s26
      // Predicated region
      $region93: #{image_encoder_forward.1} parent=5 // pred_check
        %p5236 = pneg %p5235
      $region94: #{image_encoder_forward.1} parent=5 // pred_check_branch
        %5238 = sbr.rel (%p5236) target = $region96
      $region95: #{image_encoder_forward.1} parent=5 // pred_region
        %s5239 = ssub.s32 %s26, 2
        // Predicated region
        $region97: #{image_encoder_forward.1} parent=95 // pred_check
          %p5240 = pneg %p417
        $region98: #{image_encoder_forward.1} parent=95 // pred_check_branch
          %5242 = sbr.rel (%p5240) target = $region100
        $region99: #{image_encoder_forward.1} parent=95 // pred_region
          %s5243 = sand.u32 %s402, 1
          %s5244 = scalar_lea.sflag [#allocation4], %s5243
          %s5245 = sand.u32 %s402, 1
          %s5246 = scalar_lea.vmem [#allocation3], %s5245
          %5247 = dma.done %s5244, 16
        $region100: #{image_encoder_forward.1} parent=95 // pred_fallthru
          _
      $region96: #{image_encoder_forward.1} parent=5 // pred_fallthru
        _
    $region6: #{image_encoder_forward.1} parent=1 // loop_footer
      %s30 = sadd.s32 1, %s26
    $region7: #{image_encoder_forward.1} parent=1 // loop_footer_branch
      %25 = sbr.rel target = $region3
    $region8: #{image_encoder_forward.1} parent=1 // loop_exit
      _
    %5248 = vsyncpa [#allocation4], 1
    %s5249 = scalar_lea.sflag [#allocation4], 1
    %5250 = vsyncpa %s5249, 1

</llo_original>
